<compile_context>
chip_gen: v7x
topology: tpu7x:2x2x1
jax: 0.10.0
libtpu: 0.0.40
codegen_flags: <defaults>
</compile_context>

<pallas_src>
import functools

import jax
import jax.numpy as jnp
from jax.experimental import pallas as pl
from jax.experimental.pallas import tpu as pltpu


_STEP_OVERHEAD_BYTES = 450_000      # ~0.35 us of HBM time per extra grid step


def _round_up(x, m):
    return (x + m - 1) // m * m


def _cdiv(a, b):
    return -(-a // b)


def _vmem_budget_bytes():
    """Generation-aware scoped-VMEM budget (~75% of physical per-core VMEM)."""
    cap = 64 * 1024 * 1024          # conservative fallback (v7x per-core)
    try:
        cap = int(pltpu.get_tpu_info().vmem_capacity_bytes)
    except Exception:
        pass
    return (cap * 3) // 4


def _vmem_bytes(blk_b, d, tile_v, w_itemsize):
    """Conservative per-grid-step VMEM footprint (double-buffered I/O)."""
    x_bytes = 2 * blk_b * d * 4                   # x tile (f32)
    w_bytes = 2 * d * tile_v * w_itemsize         # W tile
    b_bytes = 2 * 8 * tile_v * 4                  # bias tile (sublane padded)
    out_bytes = 2 * 2 * blk_b * tile_v * 4        # logits + scores (f32)
    return x_bytes + w_bytes + b_bytes + out_bytes


def _choose_tile_v(vocab, d, blk_b, w_itemsize, budget):
    """Full-vocab tile if it fits (no padding, no output slice, one step);
    otherwise the lane-dense tile minimising padded-W traffic + step overhead."""
    if _vmem_bytes(blk_b, d, vocab, w_itemsize) <= budget:
        return vocab
    best_t, best_cost = 128, None
    t, t_hi = 128, _round_up(vocab, 128)
    while t <= t_hi:
        if _vmem_bytes(blk_b, d, t, w_itemsize) <= budget:
            steps = _cdiv(vocab, t)
            cost = steps * t * d * w_itemsize + steps * _STEP_OVERHEAD_BYTES
            if best_cost is None or cost <= best_cost:    # ties -> larger tile
                best_t, best_cost = t, cost
        t += 128
    return best_t


def _choose_blk_b(batch, d, tile_v, w_itemsize, budget):
    """Full batch when it fits; otherwise the fewest near-equal 8-aligned
    tiles that fit the VMEM budget (minimises batch padding)."""
    n_b = 1
    while True:
        blk_b = batch if n_b == 1 else min(batch, _round_up(_cdiv(batch, n_b), 8))
        if _vmem_bytes(blk_b, d, tile_v, w_itemsize) <= budget or blk_b <= 8:
            return blk_b
        n_b *= 2


def _answer_classifier_kernel(x_ref, w_ref, b_ref, logits_ref, scores_ref):
    # ReLU of the resident batch tile is trivial VPU work hidden under the W
    # DMA, so it is recomputed inline (no scratch, no init ordering -> both
    # grid axes stay "parallel").
    h = jnp.maximum(x_ref[...], 0.0).astype(w_ref.dtype)
    logits = jnp.dot(h, w_ref[...], preferred_element_type=jnp.float32)
    logits = logits + b_ref[...]
    logits_ref[...] = logits.astype(logits_ref.dtype)
    # sigmoid = 1 / (1 + exp(-x)); exp + approximate reciprocal on the EUP slot.
    scores_ref[...] = pl.reciprocal(1.0 + jnp.exp(-logits),
                                    approx=True).astype(scores_ref.dtype)


def prepare_answer_classifier_params(weight, bias, *,
                                     weight_dtype=jnp.bfloat16,
                                     planning_batch=256):
    """One-time parameter preparation (call once at init, NOT per step).

    Casting W to the streaming dtype and padding it to the vocab-tile grid are
    full HBM passes over W, so they happen once here; the per-call path then
    streams W from HBM exactly once.

    Args:
        weight: [input_dim, vocab_size] (transpose of nn.Linear.weight).
        bias:   [vocab_size].
        weight_dtype: persistent streaming dtype for W (bf16 default halves W
            HBM bytes; f32 MXU accumulation keeps logits within a few e-3).
        planning_batch: batch-tile assumption used only for vocab-tile sizing.
    """
    d, v = weight.shape
    itemsize = jnp.dtype(weight_dtype).itemsize
    budget = _vmem_budget_bytes()
    blk_b_plan = _choose_blk_b(planning_batch, d, min(v, 128), itemsize, budget)
    tile_v = _choose_tile_v(v, d, blk_b_plan, itemsize, budget)
    v_pad = v if tile_v == v else _round_up(v, tile_v)

    w = weight.astype(weight_dtype)
    b = bias.astype(jnp.float32)
    if v_pad != v:
        w = jnp.pad(w, ((0, 0), (0, v_pad - v)))
        b = jnp.pad(b, (0, v_pad - v))
    return {"w": w, "b2": b.reshape(1, v_pad), "vocab_size": v, "tile_v": tile_v}


@functools.partial(jax.jit, static_argnames=("vocab_size", "tile_v"))
def answer_classifier_apply(fused_features, w, b2, *, vocab_size, tile_v):
    """Per-call path. `w`/`b2` come from prepare_answer_classifier_params."""
    B, D = fused_features.shape
    Dw, V_pad = w.shape
    assert D == Dw, "weight must be [input_dim, vocab_size]"
    itemsize = jnp.dtype(w.dtype).itemsize
    budget = _vmem_budget_bytes()

    blk_b = _choose_blk_b(B, D, tile_v, itemsize, budget)
    # TODO(synk): no K-reduction grid axis, so an input_dim so large that even
    # (blk_b=8, tile_v=128) exceeds the VMEM budget is unsupported.
    B_pad = _round_up(B, blk_b)

    x = fused_features.astype(jnp.float32)
    if B_pad != B:
        x = jnp.pad(x, ((0, B_pad - B), (0, 0)))

    n_v = V_pad // tile_v
    n_b = B_pad // blk_b
    # Vocab OUTER, batch INNER: the W block index is constant across the inner
    # batch loop, so Pallas keeps the W tile resident -> W streams from HBM
    # exactly once per call regardless of batch tiling.
    grid = (n_v, n_b)

    footprint = _vmem_bytes(blk_b, D, tile_v, itemsize)
    vmem_limit = int(min(max(footprint + (4 << 20), 32 << 20),
                         budget + (4 << 20)))
    cost = pl.CostEstimate(
        flops=2 * B_pad * D * V_pad,
        transcendentals=B_pad * V_pad,
        bytes_accessed=(B_pad * D * 4 + D * V_pad * itemsize
                        + V_pad * 4 + 2 * B_pad * V_pad * 4),
    )

    logits, scores = pl.pallas_call(
        _answer_classifier_kernel,
        out_shape=(jax.ShapeDtypeStruct((B_pad, V_pad), jnp.float32),
                   jax.ShapeDtypeStruct((B_pad, V_pad), jnp.float32)),
        grid_spec=pltpu.PrefetchScalarGridSpec(
            num_scalar_prefetch=0,
            grid=grid,
            in_specs=[
                pl.BlockSpec((blk_b, D), lambda j, i: (i, 0)),       # x
                pl.BlockSpec((D, tile_v), lambda j, i: (0, j)),      # W
                pl.BlockSpec((1, tile_v), lambda j, i: (0, j)),      # bias
            ],
            out_specs=[
                pl.BlockSpec((blk_b, tile_v), lambda j, i: (i, j)),  # logits
                pl.BlockSpec((blk_b, tile_v), lambda j, i: (i, j)),  # scores
            ],
        ),
        compiler_params=pltpu.CompilerParams(
            dimension_semantics=("parallel", "parallel"),
            vmem_limit_bytes=vmem_limit,
        ),
        cost_estimate=cost,
    )(x, w, b2)

    if B_pad != B or V_pad != vocab_size:
        # Rare path (huge vocab / VMEM-forced batch split); common configs use
        # tile_v == vocab_size and blk_b == B, so no extra HBM pass happens.
        logits = logits[:B, :vocab_size]
        scores = scores[:B, :vocab_size]
    return logits, scores


def answer_classifier(fused_features, weight, bias, *, weight_dtype=jnp.bfloat16):
    """One-shot convenience wrapper.  For repeated use, call
    prepare_answer_classifier_params() once and answer_classifier_apply()
    per step so W is cast/padded only once."""
    p = prepare_answer_classifier_params(weight, bias, weight_dtype=weight_dtype)
    return answer_classifier_apply(fused_features, p["w"], p["b2"],
                                   vocab_size=p["vocab_size"], tile_v=p["tile_v"])


if __name__ == "__main__":
    # Shapes consistent with the module defaults; vocab deliberately ragged
    # (not a multiple of 128) and batch small (< 8) to exercise the
    # full-array-block paths.
    batch = 4
    input_dim = 512
    vocab_size = 3129

    key = jax.random.PRNGKey(0)
    kx, kw, kb = jax.random.split(key, 3)
    fused_features = jax.random.normal(kx, (batch, input_dim), dtype=jnp.float32)
    weight = jax.random.normal(kw, (input_dim, vocab_size), dtype=jnp.float32) * 0.02
    bias = jax.random.normal(kb, (vocab_size,), dtype=jnp.float32) * 0.01

    # Plain-JAX reference.
    h_ref = jnp.maximum(fused_features, 0.0)
    logits_ref = h_ref @ weight + bias
    scores_ref = jax.nn.sigmoid(logits_ref)

    # Default path: persistent bf16 weights (prepared once), f32 accumulation.
    params = prepare_answer_classifier_params(weight, bias)
    logits, scores = answer_classifier_apply(
        fused_features, params["w"], params["b2"],
        vocab_size=params["vocab_size"], tile_v=params["tile_v"])
    jax.block_until_ready((logits, scores))

    assert logits.shape == (batch, vocab_size)
    assert scores.shape == (batch, vocab_size)
    assert jnp.allclose(logits, logits_ref, atol=5e-2, rtol=5e-2)
    assert jnp.allclose(scores, scores_ref, atol=2e-2, rtol=2e-2)

    # f32 weight path (tight tolerance against the reference).
    params32 = prepare_answer_classifier_params(weight, bias,
                                                weight_dtype=jnp.float32)
    logits32, scores32 = answer_classifier_apply(
        fused_features, params32["w"], params32["b2"],
        vocab_size=params32["vocab_size"], tile_v=params32["tile_v"])
    jax.block_until_ready((logits32, scores32))
    assert jnp.allclose(logits32, logits_ref, atol=1e-3, rtol=1e-3)
    assert jnp.allclose(scores32, scores_ref, atol=2e-3, rtol=2e-3)

    print("KERNEL_OK")
</pallas_src>

<mosaic_0001>
module attributes {stable_mosaic.version = 11 : i64} {
  func.func @_answer_classifier_kernel(%arg0: i32, %arg1: i32, %arg2: memref<4x512xf32, #tpu.memory_space<vmem>>, %arg3: memref<512x3129xbf16, #tpu.memory_space<vmem>>, %arg4: memref<1x3129xf32, #tpu.memory_space<vmem>>, %arg5: memref<4x3129xf32, #tpu.memory_space<vmem>>, %arg6: memref<4x3129xf32, #tpu.memory_space<vmem>>) attributes {dimension_semantics = [#tpu.dimension_semantics<parallel>, #tpu.dimension_semantics<parallel>], iteration_bounds = array<i64: 1, 1>, scalar_prefetch = 0 : i64, scratch_operands = 0 : i64, tpu.core_type = #tpu.core_type<tc>, window_params = [{transform_indices = @transform_0, window_bounds = array<i64: 4, 512>}, {transform_indices = @transform_1, window_bounds = array<i64: 512, 3129>}, {transform_indices = @transform_2, window_bounds = array<i64: 1, 3129>}, {transform_indices = @transform_3, window_bounds = array<i64: 4, 3129>}, {transform_indices = @transform_4, window_bounds = array<i64: 4, 3129>}]} {
    %c0 = arith.constant 0 : index
    %c0_0 = arith.constant 0 : index
    %0 = vector.load %arg2[%c0, %c0_0] : memref<4x512xf32, #tpu.memory_space<vmem>>, vector<4x512xf32>
    %cst = arith.constant 0.000000e+00 : f32
    %1 = vector.broadcast %cst : f32 to vector<4x512xf32>
    %2 = arith.maximumf %0, %1 : vector<4x512xf32>
    %3 = arith.truncf %2 : vector<4x512xf32> to vector<4x512xbf16>
    %c0_1 = arith.constant 0 : index
    %c0_2 = arith.constant 0 : index
    %4 = vector.load %arg3[%c0_1, %c0_2] : memref<512x3129xbf16, #tpu.memory_space<vmem>>, vector<512x3129xbf16>
    %cst_3 = arith.constant dense<0.000000e+00> : vector<4x3129xf32>
    %5 = tpu.matmul %3, %4, %cst_3 {dimension_numbers = #tpu.dot_dimension_numbers<[1], [0], [0], [1], [0, 0, 1, 1], [], []>} : vector<4x512xbf16>, vector<512x3129xbf16>, vector<4x3129xf32> -> vector<4x3129xf32>
    %c0_4 = arith.constant 0 : index
    %c0_5 = arith.constant 0 : index
    %6 = vector.load %arg4[%c0_4, %c0_5] : memref<1x3129xf32, #tpu.memory_space<vmem>>, vector<1x3129xf32>
    %7 = vector.broadcast %6 : vector<1x3129xf32> to vector<4x3129xf32>
    %8 = arith.addf %5, %7 : vector<4x3129xf32>
    %c0_6 = arith.constant 0 : index
    %c0_7 = arith.constant 0 : index
    %9 = vector.load %arg5[%c0_6, %c0_7] : memref<4x3129xf32, #tpu.memory_space<vmem>>, vector<4x3129xf32>
    tpu.vector_store %arg5[%c0_6, %c0_7], %8 {strides = array<i32>} : memref<4x3129xf32, #tpu.memory_space<vmem>>, vector<4x3129xf32>,
    %cst_8 = arith.constant 0.000000e+00 : f32
    %10 = vector.broadcast %cst_8 : f32 to vector<4x3129xf32>
    %11 = arith.subf %10, %8 : vector<4x3129xf32>
    %12 = math.exp %11 : vector<4x3129xf32>
    %cst_9 = arith.constant 1.000000e+00 : f32
    %13 = vector.broadcast %cst_9 : f32 to vector<4x3129xf32>
    %14 = arith.addf %13, %12 : vector<4x3129xf32>
    %15 = tpu.reciprocal %14 {approx = true} : vector<4x3129xf32> -> vector<4x3129xf32>
    %c0_10 = arith.constant 0 : index
    %c0_11 = arith.constant 0 : index
    %16 = vector.load %arg6[%c0_10, %c0_11] : memref<4x3129xf32, #tpu.memory_space<vmem>>, vector<4x3129xf32>
    tpu.vector_store %arg6[%c0_10, %c0_11], %15 {strides = array<i32>} : memref<4x3129xf32, #tpu.memory_space<vmem>>, vector<4x3129xf32>,
    return
  }
  func.func @transform_0(%arg0: i32, %arg1: i32) -> (i32, i32) {
    %c0_i32 = arith.constant 0 : i32
    %c0_i32_0 = arith.constant 0 : i32
    return %arg1, %c0_i32 : i32, i32
  }
  func.func @transform_1(%arg0: i32, %arg1: i32) -> (i32, i32) {
    %c0_i32 = arith.constant 0 : i32
    %c0_i32_0 = arith.constant 0 : i32
    return %c0_i32, %arg0 : i32, i32
  }
  func.func @transform_2(%arg0: i32, %arg1: i32) -> (i32, i32) {
    %c0_i32 = arith.constant 0 : i32
    %c0_i32_0 = arith.constant 0 : i32
    return %c0_i32, %arg0 : i32, i32
  }
  func.func @transform_3(%arg0: i32, %arg1: i32) -> (i32, i32) {
    %c0_i32 = arith.constant 0 : i32
    return %arg1, %arg0 : i32, i32
  }
  func.func @transform_4(%arg0: i32, %arg1: i32) -> (i32, i32) {
    %c0_i32 = arith.constant 0 : i32
    return %arg1, %arg0 : i32, i32
  }
}

</mosaic_0001>

<llo_original>
// kernel: answer_classifier_apply.1
$region0: #{answer_classifier_apply.1}
  #allocation0 [shape = 'u32[]', space=smem, size = 0x4, offset = 0x4, fixed_abs, tag = 'smem constant byte address 0x4 - core index']
  #allocation1 [shape = 'u32[144,128]{1,0:T(1,128)}', space=vmem, size = 0x12000, scoped, tag = 'internal scratch']
  %s0 = inlined_call_operand.vmem [shape: f32[4,512], index: 0, kind: input, shape index: {}]
  %s1 = inlined_call_operand.vmem [shape: bf16[512,3129], index: 1, kind: input, shape index: {}]
  %s2 = inlined_call_operand.vmem [shape: f32[1,3129], index: 2, kind: input, shape index: {}]
  %s3 = inlined_call_operand.hbm [shape: f32[4,3129], index: 3, kind: output, shape index: {0}]
  %s4 = inlined_call_operand.hbm [shape: f32[4,3129], index: 4, kind: output, shape index: {1}]
  %5 = xla_tuple %s3, %s4
  %s6 = sld [smem:[#allocation0]]
  $region30: #{answer_classifier_apply.1} parent=0
    _
  %s8 = ssub.s32 1, %s6
  %s9 = scalar_select 0, %s8, %s6
  $region1: #{answer_classifier_apply.1} parent=0
    #allocation2 [shape = 'u8[51200]{0}', space=vmem, size = 0xc800, scoped, tag = 'output window, operand 0, single buffered']
    #allocation3 [shape = 's32[1]{0}', space=sflag, size = 0x4, scoped, tag = 'scoped memory for answer_classifier_apply.1']
    #allocation4 [shape = 'u8[51200]{0}', space=vmem, size = 0xc800, scoped, tag = 'output window, operand 1, single buffered']
    #allocation5 [shape = 's32[1]{0}', space=sflag, size = 0x4, scoped, tag = 'scoped memory for answer_classifier_apply.1']
    %10 = vsyncpa [#allocation3], 0
    %11 = vsyncpa [#allocation5], 0
    // Predicated region
    $region2: #{answer_classifier_apply.1} parent=1 // pred_check
      _
    $region3: #{answer_classifier_apply.1} parent=1 // pred_check_branch
      %13 = sbr.rel (0) target = $region5
    $region4: #{answer_classifier_apply.1} parent=1 // pred_region
      _
    $region5: #{answer_classifier_apply.1} parent=1 // pred_fallthru
      _
    // Predicated region
    $region6: #{answer_classifier_apply.1} parent=1 // pred_check
      _
    $region7: #{answer_classifier_apply.1} parent=1 // pred_check_branch
      %15 = sbr.rel (0) target = $region9
    $region8: #{answer_classifier_apply.1} parent=1 // pred_region
      _
    $region9: #{answer_classifier_apply.1} parent=1 // pred_fallthru
      _
    // Predicated region
    $region10: #{answer_classifier_apply.1} parent=1 // pred_check
      _
    $region11: #{answer_classifier_apply.1} parent=1 // pred_check_branch
      %17 = sbr.rel (0) target = $region13
    $region12: #{answer_classifier_apply.1} parent=1 // pred_region
      _
    $region13: #{answer_classifier_apply.1} parent=1 // pred_fallthru
      _
    %v19 = vld [vmem:[%s0] sm:$0xff]
    %v20 = vld [vmem:[%s0 + $0x8] sm:$0xff]
    %v21 = vmax.f32 %v19, 0.0
    %v22 = vmax.f32 %v20, 0.0
    %v25 = vcombine.high %v21, %v21
    %v26 = vcombine.high %v22, %v22
    %v29 = vpack.c.bf16 %v21, %v21
    %v30 = vpack.c.bf16 %v25, %v25
    %v31 = vpack.c.bf16 %v22, %v22
    %v32 = vpack.c.bf16 %v26, %v26
    %v33 = vld [vmem:[%s1] sm:$0xff]
    %v34 = vld [vmem:[%s1 + $0x8] sm:$0xff]
    %v35 = vld [vmem:[%s1 + $0x10] sm:$0xff]
    %v36 = vld [vmem:[%s1 + $0x18] sm:$0xff]
    %v37 = vld [vmem:[%s1 + $0x20] sm:$0xff]
    %v38 = vld [vmem:[%s1 + $0x28] sm:$0xff]
    %v39 = vld [vmem:[%s1 + $0x30] sm:$0xff]
    %v40 = vld [vmem:[%s1 + $0x38] sm:$0xff]
    %v41 = vld [vmem:[%s1 + $0x40] sm:$0xff]
    %v42 = vld [vmem:[%s1 + $0x48] sm:$0xff]
    %v43 = vld [vmem:[%s1 + $0x50] sm:$0xff]
    %v44 = vld [vmem:[%s1 + $0x58] sm:$0xff]
    %v45 = vld [vmem:[%s1 + $0x60] sm:$0xf]
    %v46 = vld [vmem:[%s1 + $0x64] sm:$0xff]
    %v47 = vld [vmem:[%s1 + $0x6c] sm:$0xff]
    %v48 = vld [vmem:[%s1 + $0x74] sm:$0xff]
    %v49 = vld [vmem:[%s1 + $0x7c] sm:$0xff]
    %v50 = vld [vmem:[%s1 + $0x84] sm:$0xff]
    %v51 = vld [vmem:[%s1 + $0x8c] sm:$0xff]
    %v52 = vld [vmem:[%s1 + $0x94] sm:$0xff]
    %v53 = vld [vmem:[%s1 + $0x9c] sm:$0xff]
    %v54 = vld [vmem:[%s1 + $0xa4] sm:$0xff]
    %v55 = vld [vmem:[%s1 + $0xac] sm:$0xff]
    %v56 = vld [vmem:[%s1 + $0xb4] sm:$0xff]
    %v57 = vld [vmem:[%s1 + $0xbc] sm:$0xff]
    %v58 = vld [vmem:[%s1 + $0xc4] sm:$0xf]
    %v59 = vld [vmem:[%s1 + $0xc8] sm:$0xff]
    %v60 = vld [vmem:[%s1 + $0xd0] sm:$0xff]
    %v61 = vld [vmem:[%s1 + $0xd8] sm:$0xff]
    %v62 = vld [vmem:[%s1 + $0xe0] sm:$0xff]
    %v63 = vld [vmem:[%s1 + $0xe8] sm:$0xff]
    %v64 = vld [vmem:[%s1 + $0xf0] sm:$0xff]
    %v65 = vld [vmem:[%s1 + $0xf8] sm:$0xff]
    %v66 = vld [vmem:[%s1 + $0x100] sm:$0xff]
    %v67 = vld [vmem:[%s1 + $0x108] sm:$0xff]
    %v68 = vld [vmem:[%s1 + $0x110] sm:$0xff]
    %v69 = vld [vmem:[%s1 + $0x118] sm:$0xff]
    %v70 = vld [vmem:[%s1 + $0x120] sm:$0xff]
    %v71 = vld [vmem:[%s1 + $0x128] sm:$0xf]
    %v72 = vld [vmem:[%s1 + $0x12c] sm:$0xff]
    %v73 = vld [vmem:[%s1 + $0x134] sm:$0xff]
    %v74 = vld [vmem:[%s1 + $0x13c] sm:$0xff]
    %v75 = vld [vmem:[%s1 + $0x144] sm:$0xff]
    %v76 = vld [vmem:[%s1 + $0x14c] sm:$0xff]
    %v77 = vld [vmem:[%s1 + $0x154] sm:$0xff]
    %v78 = vld [vmem:[%s1 + $0x15c] sm:$0xff]
    %v79 = vld [vmem:[%s1 + $0x164] sm:$0xff]
    %v80 = vld [vmem:[%s1 + $0x16c] sm:$0xff]
    %v81 = vld [vmem:[%s1 + $0x174] sm:$0xff]
    %v82 = vld [vmem:[%s1 + $0x17c] sm:$0xff]
    %v83 = vld [vmem:[%s1 + $0x184] sm:$0xff]
    %v84 = vld [vmem:[%s1 + $0x18c] sm:$0xf]
    %v85 = vld [vmem:[%s1 + $0x190] sm:$0xff]
    %v86 = vld [vmem:[%s1 + $0x198] sm:$0xff]
    %v87 = vld [vmem:[%s1 + $0x1a0] sm:$0xff]
    %v88 = vld [vmem:[%s1 + $0x1a8] sm:$0xff]
    %v89 = vld [vmem:[%s1 + $0x1b0] sm:$0xff]
    %v90 = vld [vmem:[%s1 + $0x1b8] sm:$0xff]
    %v91 = vld [vmem:[%s1 + $0x1c0] sm:$0xff]
    %v92 = vld [vmem:[%s1 + $0x1c8] sm:$0xff]
    %v93 = vld [vmem:[%s1 + $0x1d0] sm:$0xff]
    %v94 = vld [vmem:[%s1 + $0x1d8] sm:$0xff]
    %v95 = vld [vmem:[%s1 + $0x1e0] sm:$0xff]
    %v96 = vld [vmem:[%s1 + $0x1e8] sm:$0xff]
    %v97 = vld [vmem:[%s1 + $0x1f0] sm:$0xf]
    %v98 = vld [vmem:[%s1 + $0x1f4] sm:$0xff]
    %v99 = vld [vmem:[%s1 + $0x1fc] sm:$0xff]
    %v100 = vld [vmem:[%s1 + $0x204] sm:$0xff]
    %v101 = vld [vmem:[%s1 + $0x20c] sm:$0xff]
    %v102 = vld [vmem:[%s1 + $0x214] sm:$0xff]
    %v103 = vld [vmem:[%s1 + $0x21c] sm:$0xff]
    %v104 = vld [vmem:[%s1 + $0x224] sm:$0xff]
    %v105 = vld [vmem:[%s1 + $0x22c] sm:$0xff]
    %v106 = vld [vmem:[%s1 + $0x234] sm:$0xff]
    %v107 = vld [vmem:[%s1 + $0x23c] sm:$0xff]
    %v108 = vld [vmem:[%s1 + $0x244] sm:$0xff]
    %v109 = vld [vmem:[%s1 + $0x24c] sm:$0xff]
    %v110 = vld [vmem:[%s1 + $0x254] sm:$0xf]
    %v111 = vld [vmem:[%s1 + $0x258] sm:$0xff]
    %v112 = vld [vmem:[%s1 + $0x260] sm:$0xff]
    %v113 = vld [vmem:[%s1 + $0x268] sm:$0xff]
    %v114 = vld [vmem:[%s1 + $0x270] sm:$0xff]
    %v115 = vld [vmem:[%s1 + $0x278] sm:$0xff]
    %v116 = vld [vmem:[%s1 + $0x280] sm:$0xff]
    %v117 = vld [vmem:[%s1 + $0x288] sm:$0xff]
    %v118 = vld [vmem:[%s1 + $0x290] sm:$0xff]
    %v119 = vld [vmem:[%s1 + $0x298] sm:$0xff]
    %v120 = vld [vmem:[%s1 + $0x2a0] sm:$0xff]
    %v121 = vld [vmem:[%s1 + $0x2a8] sm:$0xff]
    %v122 = vld [vmem:[%s1 + $0x2b0] sm:$0xff]
    %v123 = vld [vmem:[%s1 + $0x2b8] sm:$0xf]
    %v124 = vld [vmem:[%s1 + $0x2bc] sm:$0xff]
    %v125 = vld [vmem:[%s1 + $0x2c4] sm:$0xff]
    %v126 = vld [vmem:[%s1 + $0x2cc] sm:$0xff]
    %v127 = vld [vmem:[%s1 + $0x2d4] sm:$0xff]
    %v128 = vld [vmem:[%s1 + $0x2dc] sm:$0xff]
    %v129 = vld [vmem:[%s1 + $0x2e4] sm:$0xff]
    %v130 = vld [vmem:[%s1 + $0x2ec] sm:$0xff]
    %v131 = vld [vmem:[%s1 + $0x2f4] sm:$0xff]
    %v132 = vld [vmem:[%s1 + $0x2fc] sm:$0xff]
    %v133 = vld [vmem:[%s1 + $0x304] sm:$0xff]
    %v134 = vld [vmem:[%s1 + $0x30c] sm:$0xff]
    %v135 = vld [vmem:[%s1 + $0x314] sm:$0xff]
    %v136 = vld [vmem:[%s1 + $0x31c] sm:$0xf]
    %v137 = vld [vmem:[%s1 + $0x320] sm:$0xff]
    %v138 = vld [vmem:[%s1 + $0x328] sm:$0xff]
    %v139 = vld [vmem:[%s1 + $0x330] sm:$0xff]
    %v140 = vld [vmem:[%s1 + $0x338] sm:$0xff]
    %v141 = vld [vmem:[%s1 + $0x340] sm:$0xff]
    %v142 = vld [vmem:[%s1 + $0x348] sm:$0xff]
    %v143 = vld [vmem:[%s1 + $0x350] sm:$0xff]
    %v144 = vld [vmem:[%s1 + $0x358] sm:$0xff]
    %v145 = vld [vmem:[%s1 + $0x360] sm:$0xff]
    %v146 = vld [vmem:[%s1 + $0x368] sm:$0xff]
    %v147 = vld [vmem:[%s1 + $0x370] sm:$0xff]
    %v148 = vld [vmem:[%s1 + $0x378] sm:$0xff]
    %v149 = vld [vmem:[%s1 + $0x380] sm:$0xf]
    %v150 = vld [vmem:[%s1 + $0x384] sm:$0xff]
    %v151 = vld [vmem:[%s1 + $0x38c] sm:$0xff]
    %v152 = vld [vmem:[%s1 + $0x394] sm:$0xff]
    %v153 = vld [vmem:[%s1 + $0x39c] sm:$0xff]
    %v154 = vld [vmem:[%s1 + $0x3a4] sm:$0xff]
    %v155 = vld [vmem:[%s1 + $0x3ac] sm:$0xff]
    %v156 = vld [vmem:[%s1 + $0x3b4] sm:$0xff]
    %v157 = vld [vmem:[%s1 + $0x3bc] sm:$0xff]
    %v158 = vld [vmem:[%s1 + $0x3c4] sm:$0xff]
    %v159 = vld [vmem:[%s1 + $0x3cc] sm:$0xff]
    %v160 = vld [vmem:[%s1 + $0x3d4] sm:$0xff]
    %v161 = vld [vmem:[%s1 + $0x3dc] sm:$0xff]
    %v162 = vld [vmem:[%s1 + $0x3e4] sm:$0xf]
    %v163 = vld [vmem:[%s1 + $0x3e8] sm:$0xff]
    %v164 = vld [vmem:[%s1 + $0x3f0] sm:$0xff]
    %v165 = vld [vmem:[%s1 + $0x3f8] sm:$0xff]
    %v166 = vld [vmem:[%s1 + $0x400] sm:$0xff]
    %v167 = vld [vmem:[%s1 + $0x408] sm:$0xff]
    %v168 = vld [vmem:[%s1 + $0x410] sm:$0xff]
    %v169 = vld [vmem:[%s1 + $0x418] sm:$0xff]
    %v170 = vld [vmem:[%s1 + $0x420] sm:$0xff]
    %v171 = vld [vmem:[%s1 + $0x428] sm:$0xff]
    %v172 = vld [vmem:[%s1 + $0x430] sm:$0xff]
    %v173 = vld [vmem:[%s1 + $0x438] sm:$0xff]
    %v174 = vld [vmem:[%s1 + $0x440] sm:$0xff]
    %v175 = vld [vmem:[%s1 + $0x448] sm:$0xf]
    %v176 = vld [vmem:[%s1 + $0x44c] sm:$0xff]
    %v177 = vld [vmem:[%s1 + $0x454] sm:$0xff]
    %v178 = vld [vmem:[%s1 + $0x45c] sm:$0xff]
    %v179 = vld [vmem:[%s1 + $0x464] sm:$0xff]
    %v180 = vld [vmem:[%s1 + $0x46c] sm:$0xff]
    %v181 = vld [vmem:[%s1 + $0x474] sm:$0xff]
    %v182 = vld [vmem:[%s1 + $0x47c] sm:$0xff]
    %v183 = vld [vmem:[%s1 + $0x484] sm:$0xff]
    %v184 = vld [vmem:[%s1 + $0x48c] sm:$0xff]
    %v185 = vld [vmem:[%s1 + $0x494] sm:$0xff]
    %v186 = vld [vmem:[%s1 + $0x49c] sm:$0xff]
    %v187 = vld [vmem:[%s1 + $0x4a4] sm:$0xff]
    %v188 = vld [vmem:[%s1 + $0x4ac] sm:$0xf]
    %v189 = vld [vmem:[%s1 + $0x4b0] sm:$0xff]
    %v190 = vld [vmem:[%s1 + $0x4b8] sm:$0xff]
    %v191 = vld [vmem:[%s1 + $0x4c0] sm:$0xff]
    %v192 = vld [vmem:[%s1 + $0x4c8] sm:$0xff]
    %v193 = vld [vmem:[%s1 + $0x4d0] sm:$0xff]
    %v194 = vld [vmem:[%s1 + $0x4d8] sm:$0xff]
    %v195 = vld [vmem:[%s1 + $0x4e0] sm:$0xff]
    %v196 = vld [vmem:[%s1 + $0x4e8] sm:$0xff]
    %v197 = vld [vmem:[%s1 + $0x4f0] sm:$0xff]
    %v198 = vld [vmem:[%s1 + $0x4f8] sm:$0xff]
    %v199 = vld [vmem:[%s1 + $0x500] sm:$0xff]
    %v200 = vld [vmem:[%s1 + $0x508] sm:$0xff]
    %v201 = vld [vmem:[%s1 + $0x510] sm:$0xf]
    %v202 = vld [vmem:[%s1 + $0x514] sm:$0xff]
    %v203 = vld [vmem:[%s1 + $0x51c] sm:$0xff]
    %v204 = vld [vmem:[%s1 + $0x524] sm:$0xff]
    %v205 = vld [vmem:[%s1 + $0x52c] sm:$0xff]
    %v206 = vld [vmem:[%s1 + $0x534] sm:$0xff]
    %v207 = vld [vmem:[%s1 + $0x53c] sm:$0xff]
    %v208 = vld [vmem:[%s1 + $0x544] sm:$0xff]
    %v209 = vld [vmem:[%s1 + $0x54c] sm:$0xff]
    %v210 = vld [vmem:[%s1 + $0x554] sm:$0xff]
    %v211 = vld [vmem:[%s1 + $0x55c] sm:$0xff]
    %v212 = vld [vmem:[%s1 + $0x564] sm:$0xff]
    %v213 = vld [vmem:[%s1 + $0x56c] sm:$0xff]
    %v214 = vld [vmem:[%s1 + $0x574] sm:$0xf]
    %v215 = vld [vmem:[%s1 + $0x578] sm:$0xff]
    %v216 = vld [vmem:[%s1 + $0x580] sm:$0xff]
    %v217 = vld [vmem:[%s1 + $0x588] sm:$0xff]
    %v218 = vld [vmem:[%s1 + $0x590] sm:$0xff]
    %v219 = vld [vmem:[%s1 + $0x598] sm:$0xff]
    %v220 = vld [vmem:[%s1 + $0x5a0] sm:$0xff]
    %v221 = vld [vmem:[%s1 + $0x5a8] sm:$0xff]
    %v222 = vld [vmem:[%s1 + $0x5b0] sm:$0xff]
    %v223 = vld [vmem:[%s1 + $0x5b8] sm:$0xff]
    %v224 = vld [vmem:[%s1 + $0x5c0] sm:$0xff]
    %v225 = vld [vmem:[%s1 + $0x5c8] sm:$0xff]
    %v226 = vld [vmem:[%s1 + $0x5d0] sm:$0xff]
    %v227 = vld [vmem:[%s1 + $0x5d8] sm:$0xf]
    %v228 = vld [vmem:[%s1 + $0x5dc] sm:$0xff]
    %v229 = vld [vmem:[%s1 + $0x5e4] sm:$0xff]
    %v230 = vld [vmem:[%s1 + $0x5ec] sm:$0xff]
    %v231 = vld [vmem:[%s1 + $0x5f4] sm:$0xff]
    %v232 = vld [vmem:[%s1 + $0x5fc] sm:$0xff]
    %v233 = vld [vmem:[%s1 + $0x604] sm:$0xff]
    %v234 = vld [vmem:[%s1 + $0x60c] sm:$0xff]
    %v235 = vld [vmem:[%s1 + $0x614] sm:$0xff]
    %v236 = vld [vmem:[%s1 + $0x61c] sm:$0xff]
    %v237 = vld [vmem:[%s1 + $0x624] sm:$0xff]
    %v238 = vld [vmem:[%s1 + $0x62c] sm:$0xff]
    %v239 = vld [vmem:[%s1 + $0x634] sm:$0xff]
    %v240 = vld [vmem:[%s1 + $0x63c] sm:$0xf]
    %v241 = vld [vmem:[%s1 + $0x640] sm:$0xff]
    %v242 = vld [vmem:[%s1 + $0x648] sm:$0xff]
    %v243 = vld [vmem:[%s1 + $0x650] sm:$0xff]
    %v244 = vld [vmem:[%s1 + $0x658] sm:$0xff]
    %v245 = vld [vmem:[%s1 + $0x660] sm:$0xff]
    %v246 = vld [vmem:[%s1 + $0x668] sm:$0xff]
    %v247 = vld [vmem:[%s1 + $0x670] sm:$0xff]
    %v248 = vld [vmem:[%s1 + $0x678] sm:$0xff]
    %v249 = vld [vmem:[%s1 + $0x680] sm:$0xff]
    %v250 = vld [vmem:[%s1 + $0x688] sm:$0xff]
    %v251 = vld [vmem:[%s1 + $0x690] sm:$0xff]
    %v252 = vld [vmem:[%s1 + $0x698] sm:$0xff]
    %v253 = vld [vmem:[%s1 + $0x6a0] sm:$0xf]
    %v254 = vld [vmem:[%s1 + $0x6a4] sm:$0xff]
    %v255 = vld [vmem:[%s1 + $0x6ac] sm:$0xff]
    %v256 = vld [vmem:[%s1 + $0x6b4] sm:$0xff]
    %v257 = vld [vmem:[%s1 + $0x6bc] sm:$0xff]
    %v258 = vld [vmem:[%s1 + $0x6c4] sm:$0xff]
    %v259 = vld [vmem:[%s1 + $0x6cc] sm:$0xff]
    %v260 = vld [vmem:[%s1 + $0x6d4] sm:$0xff]
    %v261 = vld [vmem:[%s1 + $0x6dc] sm:$0xff]
    %v262 = vld [vmem:[%s1 + $0x6e4] sm:$0xff]
    %v263 = vld [vmem:[%s1 + $0x6ec] sm:$0xff]
    %v264 = vld [vmem:[%s1 + $0x6f4] sm:$0xff]
    %v265 = vld [vmem:[%s1 + $0x6fc] sm:$0xff]
    %v266 = vld [vmem:[%s1 + $0x704] sm:$0xf]
    %v267 = vld [vmem:[%s1 + $0x708] sm:$0xff]
    %v268 = vld [vmem:[%s1 + $0x710] sm:$0xff]
    %v269 = vld [vmem:[%s1 + $0x718] sm:$0xff]
    %v270 = vld [vmem:[%s1 + $0x720] sm:$0xff]
    %v271 = vld [vmem:[%s1 + $0x728] sm:$0xff]
    %v272 = vld [vmem:[%s1 + $0x730] sm:$0xff]
    %v273 = vld [vmem:[%s1 + $0x738] sm:$0xff]
    %v274 = vld [vmem:[%s1 + $0x740] sm:$0xff]
    %v275 = vld [vmem:[%s1 + $0x748] sm:$0xff]
    %v276 = vld [vmem:[%s1 + $0x750] sm:$0xff]
    %v277 = vld [vmem:[%s1 + $0x758] sm:$0xff]
    %v278 = vld [vmem:[%s1 + $0x760] sm:$0xff]
    %v279 = vld [vmem:[%s1 + $0x768] sm:$0xf]
    %v280 = vld [vmem:[%s1 + $0x76c] sm:$0xff]
    %v281 = vld [vmem:[%s1 + $0x774] sm:$0xff]
    %v282 = vld [vmem:[%s1 + $0x77c] sm:$0xff]
    %v283 = vld [vmem:[%s1 + $0x784] sm:$0xff]
    %v284 = vld [vmem:[%s1 + $0x78c] sm:$0xff]
    %v285 = vld [vmem:[%s1 + $0x794] sm:$0xff]
    %v286 = vld [vmem:[%s1 + $0x79c] sm:$0xff]
    %v287 = vld [vmem:[%s1 + $0x7a4] sm:$0xff]
    %v288 = vld [vmem:[%s1 + $0x7ac] sm:$0xff]
    %v289 = vld [vmem:[%s1 + $0x7b4] sm:$0xff]
    %v290 = vld [vmem:[%s1 + $0x7bc] sm:$0xff]
    %v291 = vld [vmem:[%s1 + $0x7c4] sm:$0xff]
    %v292 = vld [vmem:[%s1 + $0x7cc] sm:$0xf]
    %v293 = vld [vmem:[%s1 + $0x7d0] sm:$0xff]
    %v294 = vld [vmem:[%s1 + $0x7d8] sm:$0xff]
    %v295 = vld [vmem:[%s1 + $0x7e0] sm:$0xff]
    %v296 = vld [vmem:[%s1 + $0x7e8] sm:$0xff]
    %v297 = vld [vmem:[%s1 + $0x7f0] sm:$0xff]
    %v298 = vld [vmem:[%s1 + $0x7f8] sm:$0xff]
    %v299 = vld [vmem:[%s1 + $0x800] sm:$0xff]
    %v300 = vld [vmem:[%s1 + $0x808] sm:$0xff]
    %v301 = vld [vmem:[%s1 + $0x810] sm:$0xff]
    %v302 = vld [vmem:[%s1 + $0x818] sm:$0xff]
    %v303 = vld [vmem:[%s1 + $0x820] sm:$0xff]
    %v304 = vld [vmem:[%s1 + $0x828] sm:$0xff]
    %v305 = vld [vmem:[%s1 + $0x830] sm:$0xf]
    %v306 = vld [vmem:[%s1 + $0x834] sm:$0xff]
    %v307 = vld [vmem:[%s1 + $0x83c] sm:$0xff]
    %v308 = vld [vmem:[%s1 + $0x844] sm:$0xff]
    %v309 = vld [vmem:[%s1 + $0x84c] sm:$0xff]
    %v310 = vld [vmem:[%s1 + $0x854] sm:$0xff]
    %v311 = vld [vmem:[%s1 + $0x85c] sm:$0xff]
    %v312 = vld [vmem:[%s1 + $0x864] sm:$0xff]
    %v313 = vld [vmem:[%s1 + $0x86c] sm:$0xff]
    %v314 = vld [vmem:[%s1 + $0x874] sm:$0xff]
    %v315 = vld [vmem:[%s1 + $0x87c] sm:$0xff]
    %v316 = vld [vmem:[%s1 + $0x884] sm:$0xff]
    %v317 = vld [vmem:[%s1 + $0x88c] sm:$0xff]
    %v318 = vld [vmem:[%s1 + $0x894] sm:$0xf]
    %v319 = vld [vmem:[%s1 + $0x898] sm:$0xff]
    %v320 = vld [vmem:[%s1 + $0x8a0] sm:$0xff]
    %v321 = vld [vmem:[%s1 + $0x8a8] sm:$0xff]
    %v322 = vld [vmem:[%s1 + $0x8b0] sm:$0xff]
    %v323 = vld [vmem:[%s1 + $0x8b8] sm:$0xff]
    %v324 = vld [vmem:[%s1 + $0x8c0] sm:$0xff]
    %v325 = vld [vmem:[%s1 + $0x8c8] sm:$0xff]
    %v326 = vld [vmem:[%s1 + $0x8d0] sm:$0xff]
    %v327 = vld [vmem:[%s1 + $0x8d8] sm:$0xff]
    %v328 = vld [vmem:[%s1 + $0x8e0] sm:$0xff]
    %v329 = vld [vmem:[%s1 + $0x8e8] sm:$0xff]
    %v330 = vld [vmem:[%s1 + $0x8f0] sm:$0xff]
    %v331 = vld [vmem:[%s1 + $0x8f8] sm:$0xf]
    %v332 = vld [vmem:[%s1 + $0x8fc] sm:$0xff]
    %v333 = vld [vmem:[%s1 + $0x904] sm:$0xff]
    %v334 = vld [vmem:[%s1 + $0x90c] sm:$0xff]
    %v335 = vld [vmem:[%s1 + $0x914] sm:$0xff]
    %v336 = vld [vmem:[%s1 + $0x91c] sm:$0xff]
    %v337 = vld [vmem:[%s1 + $0x924] sm:$0xff]
    %v338 = vld [vmem:[%s1 + $0x92c] sm:$0xff]
    %v339 = vld [vmem:[%s1 + $0x934] sm:$0xff]
    %v340 = vld [vmem:[%s1 + $0x93c] sm:$0xff]
    %v341 = vld [vmem:[%s1 + $0x944] sm:$0xff]
    %v342 = vld [vmem:[%s1 + $0x94c] sm:$0xff]
    %v343 = vld [vmem:[%s1 + $0x954] sm:$0xff]
    %v344 = vld [vmem:[%s1 + $0x95c] sm:$0xf]
    %v345 = vld [vmem:[%s1 + $0x960] sm:$0xff]
    %v346 = vld [vmem:[%s1 + $0x968] sm:$0xff]
    %v347 = vld [vmem:[%s1 + $0x970] sm:$0xff]
    %v348 = vld [vmem:[%s1 + $0x978] sm:$0xff]
    %v349 = vld [vmem:[%s1 + $0x980] sm:$0xff]
    %v350 = vld [vmem:[%s1 + $0x988] sm:$0xff]
    %v351 = vld [vmem:[%s1 + $0x990] sm:$0xff]
    %v352 = vld [vmem:[%s1 + $0x998] sm:$0xff]
    %v353 = vld [vmem:[%s1 + $0x9a0] sm:$0xff]
    %v354 = vld [vmem:[%s1 + $0x9a8] sm:$0xff]
    %v355 = vld [vmem:[%s1 + $0x9b0] sm:$0xff]
    %v356 = vld [vmem:[%s1 + $0x9b8] sm:$0xff]
    %v357 = vld [vmem:[%s1 + $0x9c0] sm:$0xf]
    %v358 = vld [vmem:[%s1 + $0x9c4] sm:$0xff]
    %v359 = vld [vmem:[%s1 + $0x9cc] sm:$0xff]
    %v360 = vld [vmem:[%s1 + $0x9d4] sm:$0xff]
    %v361 = vld [vmem:[%s1 + $0x9dc] sm:$0xff]
    %v362 = vld [vmem:[%s1 + $0x9e4] sm:$0xff]
    %v363 = vld [vmem:[%s1 + $0x9ec] sm:$0xff]
    %v364 = vld [vmem:[%s1 + $0x9f4] sm:$0xff]
    %v365 = vld [vmem:[%s1 + $0x9fc] sm:$0xff]
    %v366 = vld [vmem:[%s1 + $0xa04] sm:$0xff]
    %v367 = vld [vmem:[%s1 + $0xa0c] sm:$0xff]
    %v368 = vld [vmem:[%s1 + $0xa14] sm:$0xff]
    %v369 = vld [vmem:[%s1 + $0xa1c] sm:$0xff]
    %v370 = vld [vmem:[%s1 + $0xa24] sm:$0xf]
    %v371 = vld [vmem:[%s1 + $0xa28] sm:$0xff]
    %v372 = vld [vmem:[%s1 + $0xa30] sm:$0xff]
    %v373 = vld [vmem:[%s1 + $0xa38] sm:$0xff]
    %v374 = vld [vmem:[%s1 + $0xa40] sm:$0xff]
    %v375 = vld [vmem:[%s1 + $0xa48] sm:$0xff]
    %v376 = vld [vmem:[%s1 + $0xa50] sm:$0xff]
    %v377 = vld [vmem:[%s1 + $0xa58] sm:$0xff]
    %v378 = vld [vmem:[%s1 + $0xa60] sm:$0xff]
    %v379 = vld [vmem:[%s1 + $0xa68] sm:$0xff]
    %v380 = vld [vmem:[%s1 + $0xa70] sm:$0xff]
    %v381 = vld [vmem:[%s1 + $0xa78] sm:$0xff]
    %v382 = vld [vmem:[%s1 + $0xa80] sm:$0xff]
    %v383 = vld [vmem:[%s1 + $0xa88] sm:$0xf]
    %v384 = vld [vmem:[%s1 + $0xa8c] sm:$0xff]
    %v385 = vld [vmem:[%s1 + $0xa94] sm:$0xff]
    %v386 = vld [vmem:[%s1 + $0xa9c] sm:$0xff]
    %v387 = vld [vmem:[%s1 + $0xaa4] sm:$0xff]
    %v388 = vld [vmem:[%s1 + $0xaac] sm:$0xff]
    %v389 = vld [vmem:[%s1 + $0xab4] sm:$0xff]
    %v390 = vld [vmem:[%s1 + $0xabc] sm:$0xff]
    %v391 = vld [vmem:[%s1 + $0xac4] sm:$0xff]
    %v392 = vld [vmem:[%s1 + $0xacc] sm:$0xff]
    %v393 = vld [vmem:[%s1 + $0xad4] sm:$0xff]
    %v394 = vld [vmem:[%s1 + $0xadc] sm:$0xff]
    %v395 = vld [vmem:[%s1 + $0xae4] sm:$0xff]
    %v396 = vld [vmem:[%s1 + $0xaec] sm:$0xf]
    %v397 = vld [vmem:[%s1 + $0xaf0] sm:$0xff]
    %v398 = vld [vmem:[%s1 + $0xaf8] sm:$0xff]
    %v399 = vld [vmem:[%s1 + $0xb00] sm:$0xff]
    %v400 = vld [vmem:[%s1 + $0xb08] sm:$0xff]
    %v401 = vld [vmem:[%s1 + $0xb10] sm:$0xff]
    %v402 = vld [vmem:[%s1 + $0xb18] sm:$0xff]
    %v403 = vld [vmem:[%s1 + $0xb20] sm:$0xff]
    %v404 = vld [vmem:[%s1 + $0xb28] sm:$0xff]
    %v405 = vld [vmem:[%s1 + $0xb30] sm:$0xff]
    %v406 = vld [vmem:[%s1 + $0xb38] sm:$0xff]
    %v407 = vld [vmem:[%s1 + $0xb40] sm:$0xff]
    %v408 = vld [vmem:[%s1 + $0xb48] sm:$0xff]
    %v409 = vld [vmem:[%s1 + $0xb50] sm:$0xf]
    %v410 = vld [vmem:[%s1 + $0xb54] sm:$0xff]
    %v411 = vld [vmem:[%s1 + $0xb5c] sm:$0xff]
    %v412 = vld [vmem:[%s1 + $0xb64] sm:$0xff]
    %v413 = vld [vmem:[%s1 + $0xb6c] sm:$0xff]
    %v414 = vld [vmem:[%s1 + $0xb74] sm:$0xff]
    %v415 = vld [vmem:[%s1 + $0xb7c] sm:$0xff]
    %v416 = vld [vmem:[%s1 + $0xb84] sm:$0xff]
    %v417 = vld [vmem:[%s1 + $0xb8c] sm:$0xff]
    %v418 = vld [vmem:[%s1 + $0xb94] sm:$0xff]
    %v419 = vld [vmem:[%s1 + $0xb9c] sm:$0xff]
    %v420 = vld [vmem:[%s1 + $0xba4] sm:$0xff]
    %v421 = vld [vmem:[%s1 + $0xbac] sm:$0xff]
    %v422 = vld [vmem:[%s1 + $0xbb4] sm:$0xf]
    %v423 = vld [vmem:[%s1 + $0xbb8] sm:$0xff]
    %v424 = vld [vmem:[%s1 + $0xbc0] sm:$0xff]
    %v425 = vld [vmem:[%s1 + $0xbc8] sm:$0xff]
    %v426 = vld [vmem:[%s1 + $0xbd0] sm:$0xff]
    %v427 = vld [vmem:[%s1 + $0xbd8] sm:$0xff]
    %v428 = vld [vmem:[%s1 + $0xbe0] sm:$0xff]
    %v429 = vld [vmem:[%s1 + $0xbe8] sm:$0xff]
    %v430 = vld [vmem:[%s1 + $0xbf0] sm:$0xff]
    %v431 = vld [vmem:[%s1 + $0xbf8] sm:$0xff]
    %v432 = vld [vmem:[%s1 + $0xc00] sm:$0xff]
    %v433 = vld [vmem:[%s1 + $0xc08] sm:$0xff]
    %v434 = vld [vmem:[%s1 + $0xc10] sm:$0xff]
    %v435 = vld [vmem:[%s1 + $0xc18] sm:$0xf]
    %v436 = vld [vmem:[%s1 + $0xc1c] sm:$0xff]
    %v437 = vld [vmem:[%s1 + $0xc24] sm:$0xff]
    %v438 = vld [vmem:[%s1 + $0xc2c] sm:$0xff]
    %v439 = vld [vmem:[%s1 + $0xc34] sm:$0xff]
    %v440 = vld [vmem:[%s1 + $0xc3c] sm:$0xff]
    %v441 = vld [vmem:[%s1 + $0xc44] sm:$0xff]
    %v442 = vld [vmem:[%s1 + $0xc4c] sm:$0xff]
    %v443 = vld [vmem:[%s1 + $0xc54] sm:$0xff]
    %v444 = vld [vmem:[%s1 + $0xc5c] sm:$0xff]
    %v445 = vld [vmem:[%s1 + $0xc64] sm:$0xff]
    %v446 = vld [vmem:[%s1 + $0xc6c] sm:$0xff]
    %v447 = vld [vmem:[%s1 + $0xc74] sm:$0xff]
    %v448 = vld [vmem:[%s1 + $0xc7c] sm:$0xf]
    %v449 = vld [vmem:[%s1 + $0xc80] sm:$0xff]
    %v450 = vld [vmem:[%s1 + $0xc88] sm:$0xff]
    %v451 = vld [vmem:[%s1 + $0xc90] sm:$0xff]
    %v452 = vld [vmem:[%s1 + $0xc98] sm:$0xff]
    %v453 = vld [vmem:[%s1 + $0xca0] sm:$0xff]
    %v454 = vld [vmem:[%s1 + $0xca8] sm:$0xff]
    %v455 = vld [vmem:[%s1 + $0xcb0] sm:$0xff]
    %v456 = vld [vmem:[%s1 + $0xcb8] sm:$0xff]
    %v457 = vld [vmem:[%s1 + $0xcc0] sm:$0xff]
    %v458 = vld [vmem:[%s1 + $0xcc8] sm:$0xff]
    %v459 = vld [vmem:[%s1 + $0xcd0] sm:$0xff]
    %v460 = vld [vmem:[%s1 + $0xcd8] sm:$0xff]
    %v461 = vld [vmem:[%s1 + $0xce0] sm:$0xf]
    %v462 = vld [vmem:[%s1 + $0xce4] sm:$0xff]
    %v463 = vld [vmem:[%s1 + $0xcec] sm:$0xff]
    %v464 = vld [vmem:[%s1 + $0xcf4] sm:$0xff]
    %v465 = vld [vmem:[%s1 + $0xcfc] sm:$0xff]
    %v466 = vld [vmem:[%s1 + $0xd04] sm:$0xff]
    %v467 = vld [vmem:[%s1 + $0xd0c] sm:$0xff]
    %v468 = vld [vmem:[%s1 + $0xd14] sm:$0xff]
    %v469 = vld [vmem:[%s1 + $0xd1c] sm:$0xff]
    %v470 = vld [vmem:[%s1 + $0xd24] sm:$0xff]
    %v471 = vld [vmem:[%s1 + $0xd2c] sm:$0xff]
    %v472 = vld [vmem:[%s1 + $0xd34] sm:$0xff]
    %v473 = vld [vmem:[%s1 + $0xd3c] sm:$0xff]
    %v474 = vld [vmem:[%s1 + $0xd44] sm:$0xf]
    %v475 = vld [vmem:[%s1 + $0xd48] sm:$0xff]
    %v476 = vld [vmem:[%s1 + $0xd50] sm:$0xff]
    %v477 = vld [vmem:[%s1 + $0xd58] sm:$0xff]
    %v478 = vld [vmem:[%s1 + $0xd60] sm:$0xff]
    %v479 = vld [vmem:[%s1 + $0xd68] sm:$0xff]
    %v480 = vld [vmem:[%s1 + $0xd70] sm:$0xff]
    %v481 = vld [vmem:[%s1 + $0xd78] sm:$0xff]
    %v482 = vld [vmem:[%s1 + $0xd80] sm:$0xff]
    %v483 = vld [vmem:[%s1 + $0xd88] sm:$0xff]
    %v484 = vld [vmem:[%s1 + $0xd90] sm:$0xff]
    %v485 = vld [vmem:[%s1 + $0xd98] sm:$0xff]
    %v486 = vld [vmem:[%s1 + $0xda0] sm:$0xff]
    %v487 = vld [vmem:[%s1 + $0xda8] sm:$0xf]
    %v488 = vld [vmem:[%s1 + $0xdac] sm:$0xff]
    %v489 = vld [vmem:[%s1 + $0xdb4] sm:$0xff]
    %v490 = vld [vmem:[%s1 + $0xdbc] sm:$0xff]
    %v491 = vld [vmem:[%s1 + $0xdc4] sm:$0xff]
    %v492 = vld [vmem:[%s1 + $0xdcc] sm:$0xff]
    %v493 = vld [vmem:[%s1 + $0xdd4] sm:$0xff]
    %v494 = vld [vmem:[%s1 + $0xddc] sm:$0xff]
    %v495 = vld [vmem:[%s1 + $0xde4] sm:$0xff]
    %v496 = vld [vmem:[%s1 + $0xdec] sm:$0xff]
    %v497 = vld [vmem:[%s1 + $0xdf4] sm:$0xff]
    %v498 = vld [vmem:[%s1 + $0xdfc] sm:$0xff]
    %v499 = vld [vmem:[%s1 + $0xe04] sm:$0xff]
    %v500 = vld [vmem:[%s1 + $0xe0c] sm:$0xf]
    %v501 = vld [vmem:[%s1 + $0xe10] sm:$0xff]
    %v502 = vld [vmem:[%s1 + $0xe18] sm:$0xff]
    %v503 = vld [vmem:[%s1 + $0xe20] sm:$0xff]
    %v504 = vld [vmem:[%s1 + $0xe28] sm:$0xff]
    %v505 = vld [vmem:[%s1 + $0xe30] sm:$0xff]
    %v506 = vld [vmem:[%s1 + $0xe38] sm:$0xff]
    %v507 = vld [vmem:[%s1 + $0xe40] sm:$0xff]
    %v508 = vld [vmem:[%s1 + $0xe48] sm:$0xff]
    %v509 = vld [vmem:[%s1 + $0xe50] sm:$0xff]
    %v510 = vld [vmem:[%s1 + $0xe58] sm:$0xff]
    %v511 = vld [vmem:[%s1 + $0xe60] sm:$0xff]
    %v512 = vld [vmem:[%s1 + $0xe68] sm:$0xff]
    %v513 = vld [vmem:[%s1 + $0xe70] sm:$0xf]
    %v514 = vld [vmem:[%s1 + $0xe74] sm:$0xff]
    %v515 = vld [vmem:[%s1 + $0xe7c] sm:$0xff]
    %v516 = vld [vmem:[%s1 + $0xe84] sm:$0xff]
    %v517 = vld [vmem:[%s1 + $0xe8c] sm:$0xff]
    %v518 = vld [vmem:[%s1 + $0xe94] sm:$0xff]
    %v519 = vld [vmem:[%s1 + $0xe9c] sm:$0xff]
    %v520 = vld [vmem:[%s1 + $0xea4] sm:$0xff]
    %v521 = vld [vmem:[%s1 + $0xeac] sm:$0xff]
    %v522 = vld [vmem:[%s1 + $0xeb4] sm:$0xff]
    %v523 = vld [vmem:[%s1 + $0xebc] sm:$0xff]
    %v524 = vld [vmem:[%s1 + $0xec4] sm:$0xff]
    %v525 = vld [vmem:[%s1 + $0xecc] sm:$0xff]
    %v526 = vld [vmem:[%s1 + $0xed4] sm:$0xf]
    %v527 = vld [vmem:[%s1 + $0xed8] sm:$0xff]
    %v528 = vld [vmem:[%s1 + $0xee0] sm:$0xff]
    %v529 = vld [vmem:[%s1 + $0xee8] sm:$0xff]
    %v530 = vld [vmem:[%s1 + $0xef0] sm:$0xff]
    %v531 = vld [vmem:[%s1 + $0xef8] sm:$0xff]
    %v532 = vld [vmem:[%s1 + $0xf00] sm:$0xff]
    %v533 = vld [vmem:[%s1 + $0xf08] sm:$0xff]
    %v534 = vld [vmem:[%s1 + $0xf10] sm:$0xff]
    %v535 = vld [vmem:[%s1 + $0xf18] sm:$0xff]
    %v536 = vld [vmem:[%s1 + $0xf20] sm:$0xff]
    %v537 = vld [vmem:[%s1 + $0xf28] sm:$0xff]
    %v538 = vld [vmem:[%s1 + $0xf30] sm:$0xff]
    %v539 = vld [vmem:[%s1 + $0xf38] sm:$0xf]
    %v540 = vld [vmem:[%s1 + $0xf3c] sm:$0xff]
    %v541 = vld [vmem:[%s1 + $0xf44] sm:$0xff]
    %v542 = vld [vmem:[%s1 + $0xf4c] sm:$0xff]
    %v543 = vld [vmem:[%s1 + $0xf54] sm:$0xff]
    %v544 = vld [vmem:[%s1 + $0xf5c] sm:$0xff]
    %v545 = vld [vmem:[%s1 + $0xf64] sm:$0xff]
    %v546 = vld [vmem:[%s1 + $0xf6c] sm:$0xff]
    %v547 = vld [vmem:[%s1 + $0xf74] sm:$0xff]
    %v548 = vld [vmem:[%s1 + $0xf7c] sm:$0xff]
    %v549 = vld [vmem:[%s1 + $0xf84] sm:$0xff]
    %v550 = vld [vmem:[%s1 + $0xf8c] sm:$0xff]
    %v551 = vld [vmem:[%s1 + $0xf94] sm:$0xff]
    %v552 = vld [vmem:[%s1 + $0xf9c] sm:$0xf]
    %v553 = vld [vmem:[%s1 + $0xfa0] sm:$0xff]
    %v554 = vld [vmem:[%s1 + $0xfa8] sm:$0xff]
    %v555 = vld [vmem:[%s1 + $0xfb0] sm:$0xff]
    %v556 = vld [vmem:[%s1 + $0xfb8] sm:$0xff]
    %v557 = vld [vmem:[%s1 + $0xfc0] sm:$0xff]
    %v558 = vld [vmem:[%s1 + $0xfc8] sm:$0xff]
    %v559 = vld [vmem:[%s1 + $0xfd0] sm:$0xff]
    %v560 = vld [vmem:[%s1 + $0xfd8] sm:$0xff]
    %v561 = vld [vmem:[%s1 + $0xfe0] sm:$0xff]
    %v562 = vld [vmem:[%s1 + $0xfe8] sm:$0xff]
    %v563 = vld [vmem:[%s1 + $0xff0] sm:$0xff]
    %v564 = vld [vmem:[%s1 + $0xff8] sm:$0xff]
    %v565 = vld [vmem:[%s1 + $0x1000] sm:$0xf]
    %v566 = vld [vmem:[%s1 + $0x1004] sm:$0xff]
    %v567 = vld [vmem:[%s1 + $0x100c] sm:$0xff]
    %v568 = vld [vmem:[%s1 + $0x1014] sm:$0xff]
    %v569 = vld [vmem:[%s1 + $0x101c] sm:$0xff]
    %v570 = vld [vmem:[%s1 + $0x1024] sm:$0xff]
    %v571 = vld [vmem:[%s1 + $0x102c] sm:$0xff]
    %v572 = vld [vmem:[%s1 + $0x1034] sm:$0xff]
    %v573 = vld [vmem:[%s1 + $0x103c] sm:$0xff]
    %v574 = vld [vmem:[%s1 + $0x1044] sm:$0xff]
    %v575 = vld [vmem:[%s1 + $0x104c] sm:$0xff]
    %v576 = vld [vmem:[%s1 + $0x1054] sm:$0xff]
    %v577 = vld [vmem:[%s1 + $0x105c] sm:$0xff]
    %v578 = vld [vmem:[%s1 + $0x1064] sm:$0xf]
    %v579 = vld [vmem:[%s1 + $0x1068] sm:$0xff]
    %v580 = vld [vmem:[%s1 + $0x1070] sm:$0xff]
    %v581 = vld [vmem:[%s1 + $0x1078] sm:$0xff]
    %v582 = vld [vmem:[%s1 + $0x1080] sm:$0xff]
    %v583 = vld [vmem:[%s1 + $0x1088] sm:$0xff]
    %v584 = vld [vmem:[%s1 + $0x1090] sm:$0xff]
    %v585 = vld [vmem:[%s1 + $0x1098] sm:$0xff]
    %v586 = vld [vmem:[%s1 + $0x10a0] sm:$0xff]
    %v587 = vld [vmem:[%s1 + $0x10a8] sm:$0xff]
    %v588 = vld [vmem:[%s1 + $0x10b0] sm:$0xff]
    %v589 = vld [vmem:[%s1 + $0x10b8] sm:$0xff]
    %v590 = vld [vmem:[%s1 + $0x10c0] sm:$0xff]
    %v591 = vld [vmem:[%s1 + $0x10c8] sm:$0xf]
    %v592 = vld [vmem:[%s1 + $0x10cc] sm:$0xff]
    %v593 = vld [vmem:[%s1 + $0x10d4] sm:$0xff]
    %v594 = vld [vmem:[%s1 + $0x10dc] sm:$0xff]
    %v595 = vld [vmem:[%s1 + $0x10e4] sm:$0xff]
    %v596 = vld [vmem:[%s1 + $0x10ec] sm:$0xff]
    %v597 = vld [vmem:[%s1 + $0x10f4] sm:$0xff]
    %v598 = vld [vmem:[%s1 + $0x10fc] sm:$0xff]
    %v599 = vld [vmem:[%s1 + $0x1104] sm:$0xff]
    %v600 = vld [vmem:[%s1 + $0x110c] sm:$0xff]
    %v601 = vld [vmem:[%s1 + $0x1114] sm:$0xff]
    %v602 = vld [vmem:[%s1 + $0x111c] sm:$0xff]
    %v603 = vld [vmem:[%s1 + $0x1124] sm:$0xff]
    %v604 = vld [vmem:[%s1 + $0x112c] sm:$0xf]
    %v605 = vld [vmem:[%s1 + $0x1130] sm:$0xff]
    %v606 = vld [vmem:[%s1 + $0x1138] sm:$0xff]
    %v607 = vld [vmem:[%s1 + $0x1140] sm:$0xff]
    %v608 = vld [vmem:[%s1 + $0x1148] sm:$0xff]
    %v609 = vld [vmem:[%s1 + $0x1150] sm:$0xff]
    %v610 = vld [vmem:[%s1 + $0x1158] sm:$0xff]
    %v611 = vld [vmem:[%s1 + $0x1160] sm:$0xff]
    %v612 = vld [vmem:[%s1 + $0x1168] sm:$0xff]
    %v613 = vld [vmem:[%s1 + $0x1170] sm:$0xff]
    %v614 = vld [vmem:[%s1 + $0x1178] sm:$0xff]
    %v615 = vld [vmem:[%s1 + $0x1180] sm:$0xff]
    %v616 = vld [vmem:[%s1 + $0x1188] sm:$0xff]
    %v617 = vld [vmem:[%s1 + $0x1190] sm:$0xf]
    %v618 = vld [vmem:[%s1 + $0x1194] sm:$0xff]
    %v619 = vld [vmem:[%s1 + $0x119c] sm:$0xff]
    %v620 = vld [vmem:[%s1 + $0x11a4] sm:$0xff]
    %v621 = vld [vmem:[%s1 + $0x11ac] sm:$0xff]
    %v622 = vld [vmem:[%s1 + $0x11b4] sm:$0xff]
    %v623 = vld [vmem:[%s1 + $0x11bc] sm:$0xff]
    %v624 = vld [vmem:[%s1 + $0x11c4] sm:$0xff]
    %v625 = vld [vmem:[%s1 + $0x11cc] sm:$0xff]
    %v626 = vld [vmem:[%s1 + $0x11d4] sm:$0xff]
    %v627 = vld [vmem:[%s1 + $0x11dc] sm:$0xff]
    %v628 = vld [vmem:[%s1 + $0x11e4] sm:$0xff]
    %v629 = vld [vmem:[%s1 + $0x11ec] sm:$0xff]
    %v630 = vld [vmem:[%s1 + $0x11f4] sm:$0xf]
    %v631 = vld [vmem:[%s1 + $0x11f8] sm:$0xff]
    %v632 = vld [vmem:[%s1 + $0x1200] sm:$0xff]
    %v633 = vld [vmem:[%s1 + $0x1208] sm:$0xff]
    %v634 = vld [vmem:[%s1 + $0x1210] sm:$0xff]
    %v635 = vld [vmem:[%s1 + $0x1218] sm:$0xff]
    %v636 = vld [vmem:[%s1 + $0x1220] sm:$0xff]
    %v637 = vld [vmem:[%s1 + $0x1228] sm:$0xff]
    %v638 = vld [vmem:[%s1 + $0x1230] sm:$0xff]
    %v639 = vld [vmem:[%s1 + $0x1238] sm:$0xff]
    %v640 = vld [vmem:[%s1 + $0x1240] sm:$0xff]
    %v641 = vld [vmem:[%s1 + $0x1248] sm:$0xff]
    %v642 = vld [vmem:[%s1 + $0x1250] sm:$0xff]
    %v643 = vld [vmem:[%s1 + $0x1258] sm:$0xf]
    %v644 = vld [vmem:[%s1 + $0x125c] sm:$0xff]
    %v645 = vld [vmem:[%s1 + $0x1264] sm:$0xff]
    %v646 = vld [vmem:[%s1 + $0x126c] sm:$0xff]
    %v647 = vld [vmem:[%s1 + $0x1274] sm:$0xff]
    %v648 = vld [vmem:[%s1 + $0x127c] sm:$0xff]
    %v649 = vld [vmem:[%s1 + $0x1284] sm:$0xff]
    %v650 = vld [vmem:[%s1 + $0x128c] sm:$0xff]
    %v651 = vld [vmem:[%s1 + $0x1294] sm:$0xff]
    %v652 = vld [vmem:[%s1 + $0x129c] sm:$0xff]
    %v653 = vld [vmem:[%s1 + $0x12a4] sm:$0xff]
    %v654 = vld [vmem:[%s1 + $0x12ac] sm:$0xff]
    %v655 = vld [vmem:[%s1 + $0x12b4] sm:$0xff]
    %v656 = vld [vmem:[%s1 + $0x12bc] sm:$0xf]
    %v657 = vld [vmem:[%s1 + $0x12c0] sm:$0xff]
    %v658 = vld [vmem:[%s1 + $0x12c8] sm:$0xff]
    %v659 = vld [vmem:[%s1 + $0x12d0] sm:$0xff]
    %v660 = vld [vmem:[%s1 + $0x12d8] sm:$0xff]
    %v661 = vld [vmem:[%s1 + $0x12e0] sm:$0xff]
    %v662 = vld [vmem:[%s1 + $0x12e8] sm:$0xff]
    %v663 = vld [vmem:[%s1 + $0x12f0] sm:$0xff]
    %v664 = vld [vmem:[%s1 + $0x12f8] sm:$0xff]
    %v665 = vld [vmem:[%s1 + $0x1300] sm:$0xff]
    %v666 = vld [vmem:[%s1 + $0x1308] sm:$0xff]
    %v667 = vld [vmem:[%s1 + $0x1310] sm:$0xff]
    %v668 = vld [vmem:[%s1 + $0x1318] sm:$0xff]
    %v669 = vld [vmem:[%s1 + $0x1320] sm:$0xf]
    %v670 = vld [vmem:[%s1 + $0x1324] sm:$0xff]
    %v671 = vld [vmem:[%s1 + $0x132c] sm:$0xff]
    %v672 = vld [vmem:[%s1 + $0x1334] sm:$0xff]
    %v673 = vld [vmem:[%s1 + $0x133c] sm:$0xff]
    %v674 = vld [vmem:[%s1 + $0x1344] sm:$0xff]
    %v675 = vld [vmem:[%s1 + $0x134c] sm:$0xff]
    %v676 = vld [vmem:[%s1 + $0x1354] sm:$0xff]
    %v677 = vld [vmem:[%s1 + $0x135c] sm:$0xff]
    %v678 = vld [vmem:[%s1 + $0x1364] sm:$0xff]
    %v679 = vld [vmem:[%s1 + $0x136c] sm:$0xff]
    %v680 = vld [vmem:[%s1 + $0x1374] sm:$0xff]
    %v681 = vld [vmem:[%s1 + $0x137c] sm:$0xff]
    %v682 = vld [vmem:[%s1 + $0x1384] sm:$0xf]
    %v683 = vld [vmem:[%s1 + $0x1388] sm:$0xff]
    %v684 = vld [vmem:[%s1 + $0x1390] sm:$0xff]
    %v685 = vld [vmem:[%s1 + $0x1398] sm:$0xff]
    %v686 = vld [vmem:[%s1 + $0x13a0] sm:$0xff]
    %v687 = vld [vmem:[%s1 + $0x13a8] sm:$0xff]
    %v688 = vld [vmem:[%s1 + $0x13b0] sm:$0xff]
    %v689 = vld [vmem:[%s1 + $0x13b8] sm:$0xff]
    %v690 = vld [vmem:[%s1 + $0x13c0] sm:$0xff]
    %v691 = vld [vmem:[%s1 + $0x13c8] sm:$0xff]
    %v692 = vld [vmem:[%s1 + $0x13d0] sm:$0xff]
    %v693 = vld [vmem:[%s1 + $0x13d8] sm:$0xff]
    %v694 = vld [vmem:[%s1 + $0x13e0] sm:$0xff]
    %v695 = vld [vmem:[%s1 + $0x13e8] sm:$0xf]
    %v696 = vld [vmem:[%s1 + $0x13ec] sm:$0xff]
    %v697 = vld [vmem:[%s1 + $0x13f4] sm:$0xff]
    %v698 = vld [vmem:[%s1 + $0x13fc] sm:$0xff]
    %v699 = vld [vmem:[%s1 + $0x1404] sm:$0xff]
    %v700 = vld [vmem:[%s1 + $0x140c] sm:$0xff]
    %v701 = vld [vmem:[%s1 + $0x1414] sm:$0xff]
    %v702 = vld [vmem:[%s1 + $0x141c] sm:$0xff]
    %v703 = vld [vmem:[%s1 + $0x1424] sm:$0xff]
    %v704 = vld [vmem:[%s1 + $0x142c] sm:$0xff]
    %v705 = vld [vmem:[%s1 + $0x1434] sm:$0xff]
    %v706 = vld [vmem:[%s1 + $0x143c] sm:$0xff]
    %v707 = vld [vmem:[%s1 + $0x1444] sm:$0xff]
    %v708 = vld [vmem:[%s1 + $0x144c] sm:$0xf]
    %v709 = vld [vmem:[%s1 + $0x1450] sm:$0xff]
    %v710 = vld [vmem:[%s1 + $0x1458] sm:$0xff]
    %v711 = vld [vmem:[%s1 + $0x1460] sm:$0xff]
    %v712 = vld [vmem:[%s1 + $0x1468] sm:$0xff]
    %v713 = vld [vmem:[%s1 + $0x1470] sm:$0xff]
    %v714 = vld [vmem:[%s1 + $0x1478] sm:$0xff]
    %v715 = vld [vmem:[%s1 + $0x1480] sm:$0xff]
    %v716 = vld [vmem:[%s1 + $0x1488] sm:$0xff]
    %v717 = vld [vmem:[%s1 + $0x1490] sm:$0xff]
    %v718 = vld [vmem:[%s1 + $0x1498] sm:$0xff]
    %v719 = vld [vmem:[%s1 + $0x14a0] sm:$0xff]
    %v720 = vld [vmem:[%s1 + $0x14a8] sm:$0xff]
    %v721 = vld [vmem:[%s1 + $0x14b0] sm:$0xf]
    %v722 = vld [vmem:[%s1 + $0x14b4] sm:$0xff]
    %v723 = vld [vmem:[%s1 + $0x14bc] sm:$0xff]
    %v724 = vld [vmem:[%s1 + $0x14c4] sm:$0xff]
    %v725 = vld [vmem:[%s1 + $0x14cc] sm:$0xff]
    %v726 = vld [vmem:[%s1 + $0x14d4] sm:$0xff]
    %v727 = vld [vmem:[%s1 + $0x14dc] sm:$0xff]
    %v728 = vld [vmem:[%s1 + $0x14e4] sm:$0xff]
    %v729 = vld [vmem:[%s1 + $0x14ec] sm:$0xff]
    %v730 = vld [vmem:[%s1 + $0x14f4] sm:$0xff]
    %v731 = vld [vmem:[%s1 + $0x14fc] sm:$0xff]
    %v732 = vld [vmem:[%s1 + $0x1504] sm:$0xff]
    %v733 = vld [vmem:[%s1 + $0x150c] sm:$0xff]
    %v734 = vld [vmem:[%s1 + $0x1514] sm:$0xf]
    %v735 = vld [vmem:[%s1 + $0x1518] sm:$0xff]
    %v736 = vld [vmem:[%s1 + $0x1520] sm:$0xff]
    %v737 = vld [vmem:[%s1 + $0x1528] sm:$0xff]
    %v738 = vld [vmem:[%s1 + $0x1530] sm:$0xff]
    %v739 = vld [vmem:[%s1 + $0x1538] sm:$0xff]
    %v740 = vld [vmem:[%s1 + $0x1540] sm:$0xff]
    %v741 = vld [vmem:[%s1 + $0x1548] sm:$0xff]
    %v742 = vld [vmem:[%s1 + $0x1550] sm:$0xff]
    %v743 = vld [vmem:[%s1 + $0x1558] sm:$0xff]
    %v744 = vld [vmem:[%s1 + $0x1560] sm:$0xff]
    %v745 = vld [vmem:[%s1 + $0x1568] sm:$0xff]
    %v746 = vld [vmem:[%s1 + $0x1570] sm:$0xff]
    %v747 = vld [vmem:[%s1 + $0x1578] sm:$0xf]
    %v748 = vld [vmem:[%s1 + $0x157c] sm:$0xff]
    %v749 = vld [vmem:[%s1 + $0x1584] sm:$0xff]
    %v750 = vld [vmem:[%s1 + $0x158c] sm:$0xff]
    %v751 = vld [vmem:[%s1 + $0x1594] sm:$0xff]
    %v752 = vld [vmem:[%s1 + $0x159c] sm:$0xff]
    %v753 = vld [vmem:[%s1 + $0x15a4] sm:$0xff]
    %v754 = vld [vmem:[%s1 + $0x15ac] sm:$0xff]
    %v755 = vld [vmem:[%s1 + $0x15b4] sm:$0xff]
    %v756 = vld [vmem:[%s1 + $0x15bc] sm:$0xff]
    %v757 = vld [vmem:[%s1 + $0x15c4] sm:$0xff]
    %v758 = vld [vmem:[%s1 + $0x15cc] sm:$0xff]
    %v759 = vld [vmem:[%s1 + $0x15d4] sm:$0xff]
    %v760 = vld [vmem:[%s1 + $0x15dc] sm:$0xf]
    %v761 = vld [vmem:[%s1 + $0x15e0] sm:$0xff]
    %v762 = vld [vmem:[%s1 + $0x15e8] sm:$0xff]
    %v763 = vld [vmem:[%s1 + $0x15f0] sm:$0xff]
    %v764 = vld [vmem:[%s1 + $0x15f8] sm:$0xff]
    %v765 = vld [vmem:[%s1 + $0x1600] sm:$0xff]
    %v766 = vld [vmem:[%s1 + $0x1608] sm:$0xff]
    %v767 = vld [vmem:[%s1 + $0x1610] sm:$0xff]
    %v768 = vld [vmem:[%s1 + $0x1618] sm:$0xff]
    %v769 = vld [vmem:[%s1 + $0x1620] sm:$0xff]
    %v770 = vld [vmem:[%s1 + $0x1628] sm:$0xff]
    %v771 = vld [vmem:[%s1 + $0x1630] sm:$0xff]
    %v772 = vld [vmem:[%s1 + $0x1638] sm:$0xff]
    %v773 = vld [vmem:[%s1 + $0x1640] sm:$0xf]
    %v774 = vld [vmem:[%s1 + $0x1644] sm:$0xff]
    %v775 = vld [vmem:[%s1 + $0x164c] sm:$0xff]
    %v776 = vld [vmem:[%s1 + $0x1654] sm:$0xff]
    %v777 = vld [vmem:[%s1 + $0x165c] sm:$0xff]
    %v778 = vld [vmem:[%s1 + $0x1664] sm:$0xff]
    %v779 = vld [vmem:[%s1 + $0x166c] sm:$0xff]
    %v780 = vld [vmem:[%s1 + $0x1674] sm:$0xff]
    %v781 = vld [vmem:[%s1 + $0x167c] sm:$0xff]
    %v782 = vld [vmem:[%s1 + $0x1684] sm:$0xff]
    %v783 = vld [vmem:[%s1 + $0x168c] sm:$0xff]
    %v784 = vld [vmem:[%s1 + $0x1694] sm:$0xff]
    %v785 = vld [vmem:[%s1 + $0x169c] sm:$0xff]
    %v786 = vld [vmem:[%s1 + $0x16a4] sm:$0xf]
    %v787 = vld [vmem:[%s1 + $0x16a8] sm:$0xff]
    %v788 = vld [vmem:[%s1 + $0x16b0] sm:$0xff]
    %v789 = vld [vmem:[%s1 + $0x16b8] sm:$0xff]
    %v790 = vld [vmem:[%s1 + $0x16c0] sm:$0xff]
    %v791 = vld [vmem:[%s1 + $0x16c8] sm:$0xff]
    %v792 = vld [vmem:[%s1 + $0x16d0] sm:$0xff]
    %v793 = vld [vmem:[%s1 + $0x16d8] sm:$0xff]
    %v794 = vld [vmem:[%s1 + $0x16e0] sm:$0xff]
    %v795 = vld [vmem:[%s1 + $0x16e8] sm:$0xff]
    %v796 = vld [vmem:[%s1 + $0x16f0] sm:$0xff]
    %v797 = vld [vmem:[%s1 + $0x16f8] sm:$0xff]
    %v798 = vld [vmem:[%s1 + $0x1700] sm:$0xff]
    %v799 = vld [vmem:[%s1 + $0x1708] sm:$0xf]
    %v800 = vld [vmem:[%s1 + $0x170c] sm:$0xff]
    %v801 = vld [vmem:[%s1 + $0x1714] sm:$0xff]
    %v802 = vld [vmem:[%s1 + $0x171c] sm:$0xff]
    %v803 = vld [vmem:[%s1 + $0x1724] sm:$0xff]
    %v804 = vld [vmem:[%s1 + $0x172c] sm:$0xff]
    %v805 = vld [vmem:[%s1 + $0x1734] sm:$0xff]
    %v806 = vld [vmem:[%s1 + $0x173c] sm:$0xff]
    %v807 = vld [vmem:[%s1 + $0x1744] sm:$0xff]
    %v808 = vld [vmem:[%s1 + $0x174c] sm:$0xff]
    %v809 = vld [vmem:[%s1 + $0x1754] sm:$0xff]
    %v810 = vld [vmem:[%s1 + $0x175c] sm:$0xff]
    %v811 = vld [vmem:[%s1 + $0x1764] sm:$0xff]
    %v812 = vld [vmem:[%s1 + $0x176c] sm:$0xf]
    %v813 = vld [vmem:[%s1 + $0x1770] sm:$0xff]
    %v814 = vld [vmem:[%s1 + $0x1778] sm:$0xff]
    %v815 = vld [vmem:[%s1 + $0x1780] sm:$0xff]
    %v816 = vld [vmem:[%s1 + $0x1788] sm:$0xff]
    %v817 = vld [vmem:[%s1 + $0x1790] sm:$0xff]
    %v818 = vld [vmem:[%s1 + $0x1798] sm:$0xff]
    %v819 = vld [vmem:[%s1 + $0x17a0] sm:$0xff]
    %v820 = vld [vmem:[%s1 + $0x17a8] sm:$0xff]
    %v821 = vld [vmem:[%s1 + $0x17b0] sm:$0xff]
    %v822 = vld [vmem:[%s1 + $0x17b8] sm:$0xff]
    %v823 = vld [vmem:[%s1 + $0x17c0] sm:$0xff]
    %v824 = vld [vmem:[%s1 + $0x17c8] sm:$0xff]
    %v825 = vld [vmem:[%s1 + $0x17d0] sm:$0xf]
    %v826 = vld [vmem:[%s1 + $0x17d4] sm:$0xff]
    %v827 = vld [vmem:[%s1 + $0x17dc] sm:$0xff]
    %v828 = vld [vmem:[%s1 + $0x17e4] sm:$0xff]
    %v829 = vld [vmem:[%s1 + $0x17ec] sm:$0xff]
    %v830 = vld [vmem:[%s1 + $0x17f4] sm:$0xff]
    %v831 = vld [vmem:[%s1 + $0x17fc] sm:$0xff]
    %v832 = vld [vmem:[%s1 + $0x1804] sm:$0xff]
    %v833 = vld [vmem:[%s1 + $0x180c] sm:$0xff]
    %v834 = vld [vmem:[%s1 + $0x1814] sm:$0xff]
    %v835 = vld [vmem:[%s1 + $0x181c] sm:$0xff]
    %v836 = vld [vmem:[%s1 + $0x1824] sm:$0xff]
    %v837 = vld [vmem:[%s1 + $0x182c] sm:$0xff]
    %v838 = vld [vmem:[%s1 + $0x1834] sm:$0xf]
    %v839 = vld [vmem:[%s1 + $0x1838] sm:$0xff]
    %v840 = vld [vmem:[%s1 + $0x1840] sm:$0xff]
    %v841 = vld [vmem:[%s1 + $0x1848] sm:$0xff]
    %v842 = vld [vmem:[%s1 + $0x1850] sm:$0xff]
    %v843 = vld [vmem:[%s1 + $0x1858] sm:$0xff]
    %v844 = vld [vmem:[%s1 + $0x1860] sm:$0xff]
    %v845 = vld [vmem:[%s1 + $0x1868] sm:$0xff]
    %v846 = vld [vmem:[%s1 + $0x1870] sm:$0xff]
    %v847 = vld [vmem:[%s1 + $0x1878] sm:$0xff]
    %v848 = vld [vmem:[%s1 + $0x1880] sm:$0xff]
    %v849 = vld [vmem:[%s1 + $0x1888] sm:$0xff]
    %v850 = vld [vmem:[%s1 + $0x1890] sm:$0xff]
    %v851 = vld [vmem:[%s1 + $0x1898] sm:$0xf]
    %v852 = vld [vmem:[%s1 + $0x189c] sm:$0xff]
    %v853 = vld [vmem:[%s1 + $0x18a4] sm:$0xff]
    %v854 = vld [vmem:[%s1 + $0x18ac] sm:$0xff]
    %v855 = vld [vmem:[%s1 + $0x18b4] sm:$0xff]
    %v856 = vld [vmem:[%s1 + $0x18bc] sm:$0xff]
    %v857 = vld [vmem:[%s1 + $0x18c4] sm:$0xff]
    %v858 = vld [vmem:[%s1 + $0x18cc] sm:$0xff]
    %v859 = vld [vmem:[%s1 + $0x18d4] sm:$0xff]
    %v860 = vld [vmem:[%s1 + $0x18dc] sm:$0xff]
    %v861 = vld [vmem:[%s1 + $0x18e4] sm:$0xff]
    %v862 = vld [vmem:[%s1 + $0x18ec] sm:$0xff]
    %v863 = vld [vmem:[%s1 + $0x18f4] sm:$0xff]
    %v864 = vld [vmem:[%s1 + $0x18fc] sm:$0xf]
    %v865 = vld [vmem:[%s2] sm:$0xff]
    %v866 = vld [vmem:[%s2 + $0x8] sm:$0xff]
    %v867 = vld [vmem:[%s2 + $0x10] sm:$0xff]
    %v868 = vld [vmem:[%s2 + $0x18] sm:$0x1]
    %v873 = vlaneseq
    %v874 = vshrl.u32 %v873, 7
    %v875 = vsub.s32 0, %v874
    %v876 = vrot.slane %v865, %v875
    %v877 = vlaneseq
    %v878 = vshrl.u32 %v877, 7
    %v879 = vsub.s32 1, %v878
    %v880 = vrot.slane %v865, %v879
    %v881 = vlaneseq
    %v882 = vshrl.u32 %v881, 7
    %v883 = vsub.s32 2, %v882
    %v884 = vrot.slane %v865, %v883
    %v885 = vlaneseq
    %v886 = vshrl.u32 %v885, 7
    %v887 = vsub.s32 3, %v886
    %v888 = vrot.slane %v865, %v887
    %v889 = vlaneseq
    %v890 = vshrl.u32 %v889, 7
    %v891 = vsub.s32 4, %v890
    %v892 = vrot.slane %v865, %v891
    %v893 = vlaneseq
    %v894 = vshrl.u32 %v893, 7
    %v895 = vsub.s32 5, %v894
    %v896 = vrot.slane %v865, %v895
    %v897 = vlaneseq
    %v898 = vshrl.u32 %v897, 7
    %v899 = vsub.s32 6, %v898
    %v900 = vrot.slane %v865, %v899
    %v901 = vlaneseq
    %v902 = vshrl.u32 %v901, 7
    %v903 = vsub.s32 7, %v902
    %v904 = vrot.slane %v865, %v903
    %v905 = vlaneseq
    %v906 = vshrl.u32 %v905, 7
    %v907 = vsub.s32 0, %v906
    %v908 = vrot.slane %v866, %v907
    %v909 = vlaneseq
    %v910 = vshrl.u32 %v909, 7
    %v911 = vsub.s32 1, %v910
    %v912 = vrot.slane %v866, %v911
    %v913 = vlaneseq
    %v914 = vshrl.u32 %v913, 7
    %v915 = vsub.s32 2, %v914
    %v916 = vrot.slane %v866, %v915
    %v917 = vlaneseq
    %v918 = vshrl.u32 %v917, 7
    %v919 = vsub.s32 3, %v918
    %v920 = vrot.slane %v866, %v919
    %v921 = vlaneseq
    %v922 = vshrl.u32 %v921, 7
    %v923 = vsub.s32 4, %v922
    %v924 = vrot.slane %v866, %v923
    %v925 = vlaneseq
    %v926 = vshrl.u32 %v925, 7
    %v927 = vsub.s32 5, %v926
    %v928 = vrot.slane %v866, %v927
    %v929 = vlaneseq
    %v930 = vshrl.u32 %v929, 7
    %v931 = vsub.s32 6, %v930
    %v932 = vrot.slane %v866, %v931
    %v933 = vlaneseq
    %v934 = vshrl.u32 %v933, 7
    %v935 = vsub.s32 7, %v934
    %v936 = vrot.slane %v866, %v935
    %v937 = vlaneseq
    %v938 = vshrl.u32 %v937, 7
    %v939 = vsub.s32 0, %v938
    %v940 = vrot.slane %v867, %v939
    %v941 = vlaneseq
    %v942 = vshrl.u32 %v941, 7
    %v943 = vsub.s32 1, %v942
    %v944 = vrot.slane %v867, %v943
    %v945 = vlaneseq
    %v946 = vshrl.u32 %v945, 7
    %v947 = vsub.s32 2, %v946
    %v948 = vrot.slane %v867, %v947
    %v949 = vlaneseq
    %v950 = vshrl.u32 %v949, 7
    %v951 = vsub.s32 3, %v950
    %v952 = vrot.slane %v867, %v951
    %v953 = vlaneseq
    %v954 = vshrl.u32 %v953, 7
    %v955 = vsub.s32 4, %v954
    %v956 = vrot.slane %v867, %v955
    %v957 = vlaneseq
    %v958 = vshrl.u32 %v957, 7
    %v959 = vsub.s32 5, %v958
    %v960 = vrot.slane %v867, %v959
    %v961 = vlaneseq
    %v962 = vshrl.u32 %v961, 7
    %v963 = vsub.s32 6, %v962
    %v964 = vrot.slane %v867, %v963
    %v965 = vlaneseq
    %v966 = vshrl.u32 %v965, 7
    %v967 = vsub.s32 7, %v966
    %v968 = vrot.slane %v867, %v967
    %v969 = vlaneseq
    %v970 = vshrl.u32 %v969, 7
    %v971 = vsub.s32 0, %v970
    %v972 = vrot.slane %v868, %v971
    %v1830 = vunpack.c.l.b16 %v33
    %v1831 = vunpack.c.h.b16 %v33
    %v1832 = vunpack.c.l.b16 %v34
    %v1833 = vunpack.c.h.b16 %v34
    %v1834 = vunpack.c.l.b16 %v35
    %v1835 = vunpack.c.h.b16 %v35
    %v1836 = vunpack.c.l.b16 %v36
    %v1837 = vunpack.c.h.b16 %v36
    %v1838 = vunpack.c.l.b16 %v37
    %v1839 = vunpack.c.h.b16 %v37
    %v1840 = vunpack.c.l.b16 %v38
    %v1841 = vunpack.c.h.b16 %v38
    %v1842 = vunpack.c.l.b16 %v39
    %v1843 = vunpack.c.h.b16 %v39
    %v1844 = vunpack.c.l.b16 %v40
    %v1845 = vunpack.c.h.b16 %v40
    %v1846 = vunpack.c.l.b16 %v41
    %v1847 = vunpack.c.h.b16 %v41
    %v1848 = vunpack.c.l.b16 %v42
    %v1849 = vunpack.c.h.b16 %v42
    %v1850 = vunpack.c.l.b16 %v43
    %v1851 = vunpack.c.h.b16 %v43
    %v1852 = vunpack.c.l.b16 %v44
    %v1853 = vunpack.c.h.b16 %v44
    %v1854 = vunpack.c.l.b16 %v45
    %v1855 = vunpack.c.l.b16 %v46
    %v1856 = vunpack.c.h.b16 %v46
    %v1857 = vunpack.c.l.b16 %v47
    %v1858 = vunpack.c.h.b16 %v47
    %v1859 = vunpack.c.l.b16 %v48
    %v1860 = vunpack.c.h.b16 %v48
    %v1861 = vunpack.c.l.b16 %v49
    %v1862 = vunpack.c.h.b16 %v49
    %v1863 = vunpack.c.l.b16 %v50
    %v1864 = vunpack.c.h.b16 %v50
    %v1865 = vunpack.c.l.b16 %v51
    %v1866 = vunpack.c.h.b16 %v51
    %v1867 = vunpack.c.l.b16 %v52
    %v1868 = vunpack.c.h.b16 %v52
    %v1869 = vunpack.c.l.b16 %v53
    %v1870 = vunpack.c.h.b16 %v53
    %v1871 = vunpack.c.l.b16 %v54
    %v1872 = vunpack.c.h.b16 %v54
    %v1873 = vunpack.c.l.b16 %v55
    %v1874 = vunpack.c.h.b16 %v55
    %v1875 = vunpack.c.l.b16 %v56
    %v1876 = vunpack.c.h.b16 %v56
    %v1877 = vunpack.c.l.b16 %v57
    %v1878 = vunpack.c.h.b16 %v57
    %v1879 = vunpack.c.l.b16 %v58
    %v1880 = vunpack.c.l.b16 %v59
    %v1881 = vunpack.c.h.b16 %v59
    %v1882 = vunpack.c.l.b16 %v60
    %v1883 = vunpack.c.h.b16 %v60
    %v1884 = vunpack.c.l.b16 %v61
    %v1885 = vunpack.c.h.b16 %v61
    %v1886 = vunpack.c.l.b16 %v62
    %v1887 = vunpack.c.h.b16 %v62
    %v1888 = vunpack.c.l.b16 %v63
    %v1889 = vunpack.c.h.b16 %v63
    %v1890 = vunpack.c.l.b16 %v64
    %v1891 = vunpack.c.h.b16 %v64
    %v1892 = vunpack.c.l.b16 %v65
    %v1893 = vunpack.c.h.b16 %v65
    %v1894 = vunpack.c.l.b16 %v66
    %v1895 = vunpack.c.h.b16 %v66
    %v1896 = vunpack.c.l.b16 %v67
    %v1897 = vunpack.c.h.b16 %v67
    %v1898 = vunpack.c.l.b16 %v68
    %v1899 = vunpack.c.h.b16 %v68
    %v1900 = vunpack.c.l.b16 %v69
    %v1901 = vunpack.c.h.b16 %v69
    %v1902 = vunpack.c.l.b16 %v70
    %v1903 = vunpack.c.h.b16 %v70
    %v1904 = vunpack.c.l.b16 %v71
    %v1905 = vunpack.c.l.b16 %v72
    %v1906 = vunpack.c.h.b16 %v72
    %v1907 = vunpack.c.l.b16 %v73
    %v1908 = vunpack.c.h.b16 %v73
    %v1909 = vunpack.c.l.b16 %v74
    %v1910 = vunpack.c.h.b16 %v74
    %v1911 = vunpack.c.l.b16 %v75
    %v1912 = vunpack.c.h.b16 %v75
    %v1913 = vunpack.c.l.b16 %v76
    %v1914 = vunpack.c.h.b16 %v76
    %v1915 = vunpack.c.l.b16 %v77
    %v1916 = vunpack.c.h.b16 %v77
    %v1917 = vunpack.c.l.b16 %v78
    %v1918 = vunpack.c.h.b16 %v78
    %v1919 = vunpack.c.l.b16 %v79
    %v1920 = vunpack.c.h.b16 %v79
    %v1921 = vunpack.c.l.b16 %v80
    %v1922 = vunpack.c.h.b16 %v80
    %v1923 = vunpack.c.l.b16 %v81
    %v1924 = vunpack.c.h.b16 %v81
    %v1925 = vunpack.c.l.b16 %v82
    %v1926 = vunpack.c.h.b16 %v82
    %v1927 = vunpack.c.l.b16 %v83
    %v1928 = vunpack.c.h.b16 %v83
    %v1929 = vunpack.c.l.b16 %v84
    %v1930 = vunpack.c.l.b16 %v85
    %v1931 = vunpack.c.h.b16 %v85
    %v1932 = vunpack.c.l.b16 %v86
    %v1933 = vunpack.c.h.b16 %v86
    %v1934 = vunpack.c.l.b16 %v87
    %v1935 = vunpack.c.h.b16 %v87
    %v1936 = vunpack.c.l.b16 %v88
    %v1937 = vunpack.c.h.b16 %v88
    %v1938 = vunpack.c.l.b16 %v89
    %v1939 = vunpack.c.h.b16 %v89
    %v1940 = vunpack.c.l.b16 %v90
    %v1941 = vunpack.c.h.b16 %v90
    %v1942 = vunpack.c.l.b16 %v91
    %v1943 = vunpack.c.h.b16 %v91
    %v1944 = vunpack.c.l.b16 %v92
    %v1945 = vunpack.c.h.b16 %v92
    %v1946 = vunpack.c.l.b16 %v93
    %v1947 = vunpack.c.h.b16 %v93
    %v1948 = vunpack.c.l.b16 %v94
    %v1949 = vunpack.c.h.b16 %v94
    %v1950 = vunpack.c.l.b16 %v95
    %v1951 = vunpack.c.h.b16 %v95
    %v1952 = vunpack.c.l.b16 %v96
    %v1953 = vunpack.c.h.b16 %v96
    %v1954 = vunpack.c.l.b16 %v97
    %v1955 = vunpack.c.l.b16 %v98
    %v1956 = vunpack.c.h.b16 %v98
    %v1957 = vunpack.c.l.b16 %v99
    %v1958 = vunpack.c.h.b16 %v99
    %v1959 = vunpack.c.l.b16 %v100
    %v1960 = vunpack.c.h.b16 %v100
    %v1961 = vunpack.c.l.b16 %v101
    %v1962 = vunpack.c.h.b16 %v101
    %v1963 = vunpack.c.l.b16 %v102
    %v1964 = vunpack.c.h.b16 %v102
    %v1965 = vunpack.c.l.b16 %v103
    %v1966 = vunpack.c.h.b16 %v103
    %v1967 = vunpack.c.l.b16 %v104
    %v1968 = vunpack.c.h.b16 %v104
    %v1969 = vunpack.c.l.b16 %v105
    %v1970 = vunpack.c.h.b16 %v105
    %v1971 = vunpack.c.l.b16 %v106
    %v1972 = vunpack.c.h.b16 %v106
    %v1973 = vunpack.c.l.b16 %v107
    %v1974 = vunpack.c.h.b16 %v107
    %v1975 = vunpack.c.l.b16 %v108
    %v1976 = vunpack.c.h.b16 %v108
    %v1977 = vunpack.c.l.b16 %v109
    %v1978 = vunpack.c.h.b16 %v109
    %v1979 = vunpack.c.l.b16 %v110
    %v1980 = vunpack.c.l.b16 %v111
    %v1981 = vunpack.c.h.b16 %v111
    %v1982 = vunpack.c.l.b16 %v112
    %v1983 = vunpack.c.h.b16 %v112
    %v1984 = vunpack.c.l.b16 %v113
    %v1985 = vunpack.c.h.b16 %v113
    %v1986 = vunpack.c.l.b16 %v114
    %v1987 = vunpack.c.h.b16 %v114
    %v1988 = vunpack.c.l.b16 %v115
    %v1989 = vunpack.c.h.b16 %v115
    %v1990 = vunpack.c.l.b16 %v116
    %v1991 = vunpack.c.h.b16 %v116
    %v1992 = vunpack.c.l.b16 %v117
    %v1993 = vunpack.c.h.b16 %v117
    %v1994 = vunpack.c.l.b16 %v118
    %v1995 = vunpack.c.h.b16 %v118
    %v1996 = vunpack.c.l.b16 %v119
    %v1997 = vunpack.c.h.b16 %v119
    %v1998 = vunpack.c.l.b16 %v120
    %v1999 = vunpack.c.h.b16 %v120
    %v2000 = vunpack.c.l.b16 %v121
    %v2001 = vunpack.c.h.b16 %v121
    %v2002 = vunpack.c.l.b16 %v122
    %v2003 = vunpack.c.h.b16 %v122
    %v2004 = vunpack.c.l.b16 %v123
    %v2005 = vunpack.c.l.b16 %v124
    %v2006 = vunpack.c.h.b16 %v124
    %v2007 = vunpack.c.l.b16 %v125
    %v2008 = vunpack.c.h.b16 %v125
    %v2009 = vunpack.c.l.b16 %v126
    %v2010 = vunpack.c.h.b16 %v126
    %v2011 = vunpack.c.l.b16 %v127
    %v2012 = vunpack.c.h.b16 %v127
    %v2013 = vunpack.c.l.b16 %v128
    %v2014 = vunpack.c.h.b16 %v128
    %v2015 = vunpack.c.l.b16 %v129
    %v2016 = vunpack.c.h.b16 %v129
    %v2017 = vunpack.c.l.b16 %v130
    %v2018 = vunpack.c.h.b16 %v130
    %v2019 = vunpack.c.l.b16 %v131
    %v2020 = vunpack.c.h.b16 %v131
    %v2021 = vunpack.c.l.b16 %v132
    %v2022 = vunpack.c.h.b16 %v132
    %v2023 = vunpack.c.l.b16 %v133
    %v2024 = vunpack.c.h.b16 %v133
    %v2025 = vunpack.c.l.b16 %v134
    %v2026 = vunpack.c.h.b16 %v134
    %v2027 = vunpack.c.l.b16 %v135
    %v2028 = vunpack.c.h.b16 %v135
    %v2029 = vunpack.c.l.b16 %v136
    %v2030 = vunpack.c.l.b16 %v137
    %v2031 = vunpack.c.h.b16 %v137
    %v2032 = vunpack.c.l.b16 %v138
    %v2033 = vunpack.c.h.b16 %v138
    %v2034 = vunpack.c.l.b16 %v139
    %v2035 = vunpack.c.h.b16 %v139
    %v2036 = vunpack.c.l.b16 %v140
    %v2037 = vunpack.c.h.b16 %v140
    %v2038 = vunpack.c.l.b16 %v141
    %v2039 = vunpack.c.h.b16 %v141
    %v2040 = vunpack.c.l.b16 %v142
    %v2041 = vunpack.c.h.b16 %v142
    %v2042 = vunpack.c.l.b16 %v143
    %v2043 = vunpack.c.h.b16 %v143
    %v2044 = vunpack.c.l.b16 %v144
    %v2045 = vunpack.c.h.b16 %v144
    %v2046 = vunpack.c.l.b16 %v145
    %v2047 = vunpack.c.h.b16 %v145
    %v2048 = vunpack.c.l.b16 %v146
    %v2049 = vunpack.c.h.b16 %v146
    %v2050 = vunpack.c.l.b16 %v147
    %v2051 = vunpack.c.h.b16 %v147
    %v2052 = vunpack.c.l.b16 %v148
    %v2053 = vunpack.c.h.b16 %v148
    %v2054 = vunpack.c.l.b16 %v149
    %v2055 = vunpack.c.l.b16 %v150
    %v2056 = vunpack.c.h.b16 %v150
    %v2057 = vunpack.c.l.b16 %v151
    %v2058 = vunpack.c.h.b16 %v151
    %v2059 = vunpack.c.l.b16 %v152
    %v2060 = vunpack.c.h.b16 %v152
    %v2061 = vunpack.c.l.b16 %v153
    %v2062 = vunpack.c.h.b16 %v153
    %v2063 = vunpack.c.l.b16 %v154
    %v2064 = vunpack.c.h.b16 %v154
    %v2065 = vunpack.c.l.b16 %v155
    %v2066 = vunpack.c.h.b16 %v155
    %v2067 = vunpack.c.l.b16 %v156
    %v2068 = vunpack.c.h.b16 %v156
    %v2069 = vunpack.c.l.b16 %v157
    %v2070 = vunpack.c.h.b16 %v157
    %v2071 = vunpack.c.l.b16 %v158
    %v2072 = vunpack.c.h.b16 %v158
    %v2073 = vunpack.c.l.b16 %v159
    %v2074 = vunpack.c.h.b16 %v159
    %v2075 = vunpack.c.l.b16 %v160
    %v2076 = vunpack.c.h.b16 %v160
    %v2077 = vunpack.c.l.b16 %v161
    %v2078 = vunpack.c.h.b16 %v161
    %v2079 = vunpack.c.l.b16 %v162
    %v2080 = vunpack.c.l.b16 %v163
    %v2081 = vunpack.c.h.b16 %v163
    %v2082 = vunpack.c.l.b16 %v164
    %v2083 = vunpack.c.h.b16 %v164
    %v2084 = vunpack.c.l.b16 %v165
    %v2085 = vunpack.c.h.b16 %v165
    %v2086 = vunpack.c.l.b16 %v166
    %v2087 = vunpack.c.h.b16 %v166
    %v2088 = vunpack.c.l.b16 %v167
    %v2089 = vunpack.c.h.b16 %v167
    %v2090 = vunpack.c.l.b16 %v168
    %v2091 = vunpack.c.h.b16 %v168
    %v2092 = vunpack.c.l.b16 %v169
    %v2093 = vunpack.c.h.b16 %v169
    %v2094 = vunpack.c.l.b16 %v170
    %v2095 = vunpack.c.h.b16 %v170
    %v2096 = vunpack.c.l.b16 %v171
    %v2097 = vunpack.c.h.b16 %v171
    %v2098 = vunpack.c.l.b16 %v172
    %v2099 = vunpack.c.h.b16 %v172
    %v2100 = vunpack.c.l.b16 %v173
    %v2101 = vunpack.c.h.b16 %v173
    %v2102 = vunpack.c.l.b16 %v174
    %v2103 = vunpack.c.h.b16 %v174
    %v2104 = vunpack.c.l.b16 %v175
    %v2105 = vunpack.c.l.b16 %v176
    %v2106 = vunpack.c.h.b16 %v176
    %v2107 = vunpack.c.l.b16 %v177
    %v2108 = vunpack.c.h.b16 %v177
    %v2109 = vunpack.c.l.b16 %v178
    %v2110 = vunpack.c.h.b16 %v178
    %v2111 = vunpack.c.l.b16 %v179
    %v2112 = vunpack.c.h.b16 %v179
    %v2113 = vunpack.c.l.b16 %v180
    %v2114 = vunpack.c.h.b16 %v180
    %v2115 = vunpack.c.l.b16 %v181
    %v2116 = vunpack.c.h.b16 %v181
    %v2117 = vunpack.c.l.b16 %v182
    %v2118 = vunpack.c.h.b16 %v182
    %v2119 = vunpack.c.l.b16 %v183
    %v2120 = vunpack.c.h.b16 %v183
    %v2121 = vunpack.c.l.b16 %v184
    %v2122 = vunpack.c.h.b16 %v184
    %v2123 = vunpack.c.l.b16 %v185
    %v2124 = vunpack.c.h.b16 %v185
    %v2125 = vunpack.c.l.b16 %v186
    %v2126 = vunpack.c.h.b16 %v186
    %v2127 = vunpack.c.l.b16 %v187
    %v2128 = vunpack.c.h.b16 %v187
    %v2129 = vunpack.c.l.b16 %v188
    %v2130 = vunpack.c.l.b16 %v189
    %v2131 = vunpack.c.h.b16 %v189
    %v2132 = vunpack.c.l.b16 %v190
    %v2133 = vunpack.c.h.b16 %v190
    %v2134 = vunpack.c.l.b16 %v191
    %v2135 = vunpack.c.h.b16 %v191
    %v2136 = vunpack.c.l.b16 %v192
    %v2137 = vunpack.c.h.b16 %v192
    %v2138 = vunpack.c.l.b16 %v193
    %v2139 = vunpack.c.h.b16 %v193
    %v2140 = vunpack.c.l.b16 %v194
    %v2141 = vunpack.c.h.b16 %v194
    %v2142 = vunpack.c.l.b16 %v195
    %v2143 = vunpack.c.h.b16 %v195
    %v2144 = vunpack.c.l.b16 %v196
    %v2145 = vunpack.c.h.b16 %v196
    %v2146 = vunpack.c.l.b16 %v197
    %v2147 = vunpack.c.h.b16 %v197
    %v2148 = vunpack.c.l.b16 %v198
    %v2149 = vunpack.c.h.b16 %v198
    %v2150 = vunpack.c.l.b16 %v199
    %v2151 = vunpack.c.h.b16 %v199
    %v2152 = vunpack.c.l.b16 %v200
    %v2153 = vunpack.c.h.b16 %v200
    %v2154 = vunpack.c.l.b16 %v201
    %v2155 = vunpack.c.l.b16 %v202
    %v2156 = vunpack.c.h.b16 %v202
    %v2157 = vunpack.c.l.b16 %v203
    %v2158 = vunpack.c.h.b16 %v203
    %v2159 = vunpack.c.l.b16 %v204
    %v2160 = vunpack.c.h.b16 %v204
    %v2161 = vunpack.c.l.b16 %v205
    %v2162 = vunpack.c.h.b16 %v205
    %v2163 = vunpack.c.l.b16 %v206
    %v2164 = vunpack.c.h.b16 %v206
    %v2165 = vunpack.c.l.b16 %v207
    %v2166 = vunpack.c.h.b16 %v207
    %v2167 = vunpack.c.l.b16 %v208
    %v2168 = vunpack.c.h.b16 %v208
    %v2169 = vunpack.c.l.b16 %v209
    %v2170 = vunpack.c.h.b16 %v209
    %v2171 = vunpack.c.l.b16 %v210
    %v2172 = vunpack.c.h.b16 %v210
    %v2173 = vunpack.c.l.b16 %v211
    %v2174 = vunpack.c.h.b16 %v211
    %v2175 = vunpack.c.l.b16 %v212
    %v2176 = vunpack.c.h.b16 %v212
    %v2177 = vunpack.c.l.b16 %v213
    %v2178 = vunpack.c.h.b16 %v213
    %v2179 = vunpack.c.l.b16 %v214
    %v2180 = vunpack.c.l.b16 %v215
    %v2181 = vunpack.c.h.b16 %v215
    %v2182 = vunpack.c.l.b16 %v216
    %v2183 = vunpack.c.h.b16 %v216
    %v2184 = vunpack.c.l.b16 %v217
    %v2185 = vunpack.c.h.b16 %v217
    %v2186 = vunpack.c.l.b16 %v218
    %v2187 = vunpack.c.h.b16 %v218
    %v2188 = vunpack.c.l.b16 %v219
    %v2189 = vunpack.c.h.b16 %v219
    %v2190 = vunpack.c.l.b16 %v220
    %v2191 = vunpack.c.h.b16 %v220
    %v2192 = vunpack.c.l.b16 %v221
    %v2193 = vunpack.c.h.b16 %v221
    %v2194 = vunpack.c.l.b16 %v222
    %v2195 = vunpack.c.h.b16 %v222
    %v2196 = vunpack.c.l.b16 %v223
    %v2197 = vunpack.c.h.b16 %v223
    %v2198 = vunpack.c.l.b16 %v224
    %v2199 = vunpack.c.h.b16 %v224
    %v2200 = vunpack.c.l.b16 %v225
    %v2201 = vunpack.c.h.b16 %v225
    %v2202 = vunpack.c.l.b16 %v226
    %v2203 = vunpack.c.h.b16 %v226
    %v2204 = vunpack.c.l.b16 %v227
    %v2205 = vunpack.c.l.b16 %v228
    %v2206 = vunpack.c.h.b16 %v228
    %v2207 = vunpack.c.l.b16 %v229
    %v2208 = vunpack.c.h.b16 %v229
    %v2209 = vunpack.c.l.b16 %v230
    %v2210 = vunpack.c.h.b16 %v230
    %v2211 = vunpack.c.l.b16 %v231
    %v2212 = vunpack.c.h.b16 %v231
    %v2213 = vunpack.c.l.b16 %v232
    %v2214 = vunpack.c.h.b16 %v232
    %v2215 = vunpack.c.l.b16 %v233
    %v2216 = vunpack.c.h.b16 %v233
    %v2217 = vunpack.c.l.b16 %v234
    %v2218 = vunpack.c.h.b16 %v234
    %v2219 = vunpack.c.l.b16 %v235
    %v2220 = vunpack.c.h.b16 %v235
    %v2221 = vunpack.c.l.b16 %v236
    %v2222 = vunpack.c.h.b16 %v236
    %v2223 = vunpack.c.l.b16 %v237
    %v2224 = vunpack.c.h.b16 %v237
    %v2225 = vunpack.c.l.b16 %v238
    %v2226 = vunpack.c.h.b16 %v238
    %v2227 = vunpack.c.l.b16 %v239
    %v2228 = vunpack.c.h.b16 %v239
    %v2229 = vunpack.c.l.b16 %v240
    %v2230 = vunpack.c.l.b16 %v241
    %v2231 = vunpack.c.h.b16 %v241
    %v2232 = vunpack.c.l.b16 %v242
    %v2233 = vunpack.c.h.b16 %v242
    %v2234 = vunpack.c.l.b16 %v243
    %v2235 = vunpack.c.h.b16 %v243
    %v2236 = vunpack.c.l.b16 %v244
    %v2237 = vunpack.c.h.b16 %v244
    %v2238 = vunpack.c.l.b16 %v245
    %v2239 = vunpack.c.h.b16 %v245
    %v2240 = vunpack.c.l.b16 %v246
    %v2241 = vunpack.c.h.b16 %v246
    %v2242 = vunpack.c.l.b16 %v247
    %v2243 = vunpack.c.h.b16 %v247
    %v2244 = vunpack.c.l.b16 %v248
    %v2245 = vunpack.c.h.b16 %v248
    %v2246 = vunpack.c.l.b16 %v249
    %v2247 = vunpack.c.h.b16 %v249
    %v2248 = vunpack.c.l.b16 %v250
    %v2249 = vunpack.c.h.b16 %v250
    %v2250 = vunpack.c.l.b16 %v251
    %v2251 = vunpack.c.h.b16 %v251
    %v2252 = vunpack.c.l.b16 %v252
    %v2253 = vunpack.c.h.b16 %v252
    %v2254 = vunpack.c.l.b16 %v253
    %v2255 = vunpack.c.l.b16 %v254
    %v2256 = vunpack.c.h.b16 %v254
    %v2257 = vunpack.c.l.b16 %v255
    %v2258 = vunpack.c.h.b16 %v255
    %v2259 = vunpack.c.l.b16 %v256
    %v2260 = vunpack.c.h.b16 %v256
    %v2261 = vunpack.c.l.b16 %v257
    %v2262 = vunpack.c.h.b16 %v257
    %v2263 = vunpack.c.l.b16 %v258
    %v2264 = vunpack.c.h.b16 %v258
    %v2265 = vunpack.c.l.b16 %v259
    %v2266 = vunpack.c.h.b16 %v259
    %v2267 = vunpack.c.l.b16 %v260
    %v2268 = vunpack.c.h.b16 %v260
    %v2269 = vunpack.c.l.b16 %v261
    %v2270 = vunpack.c.h.b16 %v261
    %v2271 = vunpack.c.l.b16 %v262
    %v2272 = vunpack.c.h.b16 %v262
    %v2273 = vunpack.c.l.b16 %v263
    %v2274 = vunpack.c.h.b16 %v263
    %v2275 = vunpack.c.l.b16 %v264
    %v2276 = vunpack.c.h.b16 %v264
    %v2277 = vunpack.c.l.b16 %v265
    %v2278 = vunpack.c.h.b16 %v265
    %v2279 = vunpack.c.l.b16 %v266
    %v2280 = vunpack.c.l.b16 %v267
    %v2281 = vunpack.c.h.b16 %v267
    %v2282 = vunpack.c.l.b16 %v268
    %v2283 = vunpack.c.h.b16 %v268
    %v2284 = vunpack.c.l.b16 %v269
    %v2285 = vunpack.c.h.b16 %v269
    %v2286 = vunpack.c.l.b16 %v270
    %v2287 = vunpack.c.h.b16 %v270
    %v2288 = vunpack.c.l.b16 %v271
    %v2289 = vunpack.c.h.b16 %v271
    %v2290 = vunpack.c.l.b16 %v272
    %v2291 = vunpack.c.h.b16 %v272
    %v2292 = vunpack.c.l.b16 %v273
    %v2293 = vunpack.c.h.b16 %v273
    %v2294 = vunpack.c.l.b16 %v274
    %v2295 = vunpack.c.h.b16 %v274
    %v2296 = vunpack.c.l.b16 %v275
    %v2297 = vunpack.c.h.b16 %v275
    %v2298 = vunpack.c.l.b16 %v276
    %v2299 = vunpack.c.h.b16 %v276
    %v2300 = vunpack.c.l.b16 %v277
    %v2301 = vunpack.c.h.b16 %v277
    %v2302 = vunpack.c.l.b16 %v278
    %v2303 = vunpack.c.h.b16 %v278
    %v2304 = vunpack.c.l.b16 %v279
    %v2305 = vunpack.c.l.b16 %v280
    %v2306 = vunpack.c.h.b16 %v280
    %v2307 = vunpack.c.l.b16 %v281
    %v2308 = vunpack.c.h.b16 %v281
    %v2309 = vunpack.c.l.b16 %v282
    %v2310 = vunpack.c.h.b16 %v282
    %v2311 = vunpack.c.l.b16 %v283
    %v2312 = vunpack.c.h.b16 %v283
    %v2313 = vunpack.c.l.b16 %v284
    %v2314 = vunpack.c.h.b16 %v284
    %v2315 = vunpack.c.l.b16 %v285
    %v2316 = vunpack.c.h.b16 %v285
    %v2317 = vunpack.c.l.b16 %v286
    %v2318 = vunpack.c.h.b16 %v286
    %v2319 = vunpack.c.l.b16 %v287
    %v2320 = vunpack.c.h.b16 %v287
    %v2321 = vunpack.c.l.b16 %v288
    %v2322 = vunpack.c.h.b16 %v288
    %v2323 = vunpack.c.l.b16 %v289
    %v2324 = vunpack.c.h.b16 %v289
    %v2325 = vunpack.c.l.b16 %v290
    %v2326 = vunpack.c.h.b16 %v290
    %v2327 = vunpack.c.l.b16 %v291
    %v2328 = vunpack.c.h.b16 %v291
    %v2329 = vunpack.c.l.b16 %v292
    %v2330 = vunpack.c.l.b16 %v293
    %v2331 = vunpack.c.h.b16 %v293
    %v2332 = vunpack.c.l.b16 %v294
    %v2333 = vunpack.c.h.b16 %v294
    %v2334 = vunpack.c.l.b16 %v295
    %v2335 = vunpack.c.h.b16 %v295
    %v2336 = vunpack.c.l.b16 %v296
    %v2337 = vunpack.c.h.b16 %v296
    %v2338 = vunpack.c.l.b16 %v297
    %v2339 = vunpack.c.h.b16 %v297
    %v2340 = vunpack.c.l.b16 %v298
    %v2341 = vunpack.c.h.b16 %v298
    %v2342 = vunpack.c.l.b16 %v299
    %v2343 = vunpack.c.h.b16 %v299
    %v2344 = vunpack.c.l.b16 %v300
    %v2345 = vunpack.c.h.b16 %v300
    %v2346 = vunpack.c.l.b16 %v301
    %v2347 = vunpack.c.h.b16 %v301
    %v2348 = vunpack.c.l.b16 %v302
    %v2349 = vunpack.c.h.b16 %v302
    %v2350 = vunpack.c.l.b16 %v303
    %v2351 = vunpack.c.h.b16 %v303
    %v2352 = vunpack.c.l.b16 %v304
    %v2353 = vunpack.c.h.b16 %v304
    %v2354 = vunpack.c.l.b16 %v305
    %v2355 = vunpack.c.l.b16 %v306
    %v2356 = vunpack.c.h.b16 %v306
    %v2357 = vunpack.c.l.b16 %v307
    %v2358 = vunpack.c.h.b16 %v307
    %v2359 = vunpack.c.l.b16 %v308
    %v2360 = vunpack.c.h.b16 %v308
    %v2361 = vunpack.c.l.b16 %v309
    %v2362 = vunpack.c.h.b16 %v309
    %v2363 = vunpack.c.l.b16 %v310
    %v2364 = vunpack.c.h.b16 %v310
    %v2365 = vunpack.c.l.b16 %v311
    %v2366 = vunpack.c.h.b16 %v311
    %v2367 = vunpack.c.l.b16 %v312
    %v2368 = vunpack.c.h.b16 %v312
    %v2369 = vunpack.c.l.b16 %v313
    %v2370 = vunpack.c.h.b16 %v313
    %v2371 = vunpack.c.l.b16 %v314
    %v2372 = vunpack.c.h.b16 %v314
    %v2373 = vunpack.c.l.b16 %v315
    %v2374 = vunpack.c.h.b16 %v315
    %v2375 = vunpack.c.l.b16 %v316
    %v2376 = vunpack.c.h.b16 %v316
    %v2377 = vunpack.c.l.b16 %v317
    %v2378 = vunpack.c.h.b16 %v317
    %v2379 = vunpack.c.l.b16 %v318
    %v2380 = vunpack.c.l.b16 %v319
    %v2381 = vunpack.c.h.b16 %v319
    %v2382 = vunpack.c.l.b16 %v320
    %v2383 = vunpack.c.h.b16 %v320
    %v2384 = vunpack.c.l.b16 %v321
    %v2385 = vunpack.c.h.b16 %v321
    %v2386 = vunpack.c.l.b16 %v322
    %v2387 = vunpack.c.h.b16 %v322
    %v2388 = vunpack.c.l.b16 %v323
    %v2389 = vunpack.c.h.b16 %v323
    %v2390 = vunpack.c.l.b16 %v324
    %v2391 = vunpack.c.h.b16 %v324
    %v2392 = vunpack.c.l.b16 %v325
    %v2393 = vunpack.c.h.b16 %v325
    %v2394 = vunpack.c.l.b16 %v326
    %v2395 = vunpack.c.h.b16 %v326
    %v2396 = vunpack.c.l.b16 %v327
    %v2397 = vunpack.c.h.b16 %v327
    %v2398 = vunpack.c.l.b16 %v328
    %v2399 = vunpack.c.h.b16 %v328
    %v2400 = vunpack.c.l.b16 %v329
    %v2401 = vunpack.c.h.b16 %v329
    %v2402 = vunpack.c.l.b16 %v330
    %v2403 = vunpack.c.h.b16 %v330
    %v2404 = vunpack.c.l.b16 %v331
    %v2405 = vunpack.c.l.b16 %v332
    %v2406 = vunpack.c.h.b16 %v332
    %v2407 = vunpack.c.l.b16 %v333
    %v2408 = vunpack.c.h.b16 %v333
    %v2409 = vunpack.c.l.b16 %v334
    %v2410 = vunpack.c.h.b16 %v334
    %v2411 = vunpack.c.l.b16 %v335
    %v2412 = vunpack.c.h.b16 %v335
    %v2413 = vunpack.c.l.b16 %v336
    %v2414 = vunpack.c.h.b16 %v336
    %v2415 = vunpack.c.l.b16 %v337
    %v2416 = vunpack.c.h.b16 %v337
    %v2417 = vunpack.c.l.b16 %v338
    %v2418 = vunpack.c.h.b16 %v338
    %v2419 = vunpack.c.l.b16 %v339
    %v2420 = vunpack.c.h.b16 %v339
    %v2421 = vunpack.c.l.b16 %v340
    %v2422 = vunpack.c.h.b16 %v340
    %v2423 = vunpack.c.l.b16 %v341
    %v2424 = vunpack.c.h.b16 %v341
    %v2425 = vunpack.c.l.b16 %v342
    %v2426 = vunpack.c.h.b16 %v342
    %v2427 = vunpack.c.l.b16 %v343
    %v2428 = vunpack.c.h.b16 %v343
    %v2429 = vunpack.c.l.b16 %v344
    %v2430 = vunpack.c.l.b16 %v345
    %v2431 = vunpack.c.h.b16 %v345
    %v2432 = vunpack.c.l.b16 %v346
    %v2433 = vunpack.c.h.b16 %v346
    %v2434 = vunpack.c.l.b16 %v347
    %v2435 = vunpack.c.h.b16 %v347
    %v2436 = vunpack.c.l.b16 %v348
    %v2437 = vunpack.c.h.b16 %v348
    %v2438 = vunpack.c.l.b16 %v349
    %v2439 = vunpack.c.h.b16 %v349
    %v2440 = vunpack.c.l.b16 %v350
    %v2441 = vunpack.c.h.b16 %v350
    %v2442 = vunpack.c.l.b16 %v351
    %v2443 = vunpack.c.h.b16 %v351
    %v2444 = vunpack.c.l.b16 %v352
    %v2445 = vunpack.c.h.b16 %v352
    %v2446 = vunpack.c.l.b16 %v353
    %v2447 = vunpack.c.h.b16 %v353
    %v2448 = vunpack.c.l.b16 %v354
    %v2449 = vunpack.c.h.b16 %v354
    %v2450 = vunpack.c.l.b16 %v355
    %v2451 = vunpack.c.h.b16 %v355
    %v2452 = vunpack.c.l.b16 %v356
    %v2453 = vunpack.c.h.b16 %v356
    %v2454 = vunpack.c.l.b16 %v357
    %v2455 = vunpack.c.l.b16 %v358
    %v2456 = vunpack.c.h.b16 %v358
    %v2457 = vunpack.c.l.b16 %v359
    %v2458 = vunpack.c.h.b16 %v359
    %v2459 = vunpack.c.l.b16 %v360
    %v2460 = vunpack.c.h.b16 %v360
    %v2461 = vunpack.c.l.b16 %v361
    %v2462 = vunpack.c.h.b16 %v361
    %v2463 = vunpack.c.l.b16 %v362
    %v2464 = vunpack.c.h.b16 %v362
    %v2465 = vunpack.c.l.b16 %v363
    %v2466 = vunpack.c.h.b16 %v363
    %v2467 = vunpack.c.l.b16 %v364
    %v2468 = vunpack.c.h.b16 %v364
    %v2469 = vunpack.c.l.b16 %v365
    %v2470 = vunpack.c.h.b16 %v365
    %v2471 = vunpack.c.l.b16 %v366
    %v2472 = vunpack.c.h.b16 %v366
    %v2473 = vunpack.c.l.b16 %v367
    %v2474 = vunpack.c.h.b16 %v367
    %v2475 = vunpack.c.l.b16 %v368
    %v2476 = vunpack.c.h.b16 %v368
    %v2477 = vunpack.c.l.b16 %v369
    %v2478 = vunpack.c.h.b16 %v369
    %v2479 = vunpack.c.l.b16 %v370
    %v2480 = vunpack.c.l.b16 %v371
    %v2481 = vunpack.c.h.b16 %v371
    %v2482 = vunpack.c.l.b16 %v372
    %v2483 = vunpack.c.h.b16 %v372
    %v2484 = vunpack.c.l.b16 %v373
    %v2485 = vunpack.c.h.b16 %v373
    %v2486 = vunpack.c.l.b16 %v374
    %v2487 = vunpack.c.h.b16 %v374
    %v2488 = vunpack.c.l.b16 %v375
    %v2489 = vunpack.c.h.b16 %v375
    %v2490 = vunpack.c.l.b16 %v376
    %v2491 = vunpack.c.h.b16 %v376
    %v2492 = vunpack.c.l.b16 %v377
    %v2493 = vunpack.c.h.b16 %v377
    %v2494 = vunpack.c.l.b16 %v378
    %v2495 = vunpack.c.h.b16 %v378
    %v2496 = vunpack.c.l.b16 %v379
    %v2497 = vunpack.c.h.b16 %v379
    %v2498 = vunpack.c.l.b16 %v380
    %v2499 = vunpack.c.h.b16 %v380
    %v2500 = vunpack.c.l.b16 %v381
    %v2501 = vunpack.c.h.b16 %v381
    %v2502 = vunpack.c.l.b16 %v382
    %v2503 = vunpack.c.h.b16 %v382
    %v2504 = vunpack.c.l.b16 %v383
    %v2505 = vunpack.c.l.b16 %v384
    %v2506 = vunpack.c.h.b16 %v384
    %v2507 = vunpack.c.l.b16 %v385
    %v2508 = vunpack.c.h.b16 %v385
    %v2509 = vunpack.c.l.b16 %v386
    %v2510 = vunpack.c.h.b16 %v386
    %v2511 = vunpack.c.l.b16 %v387
    %v2512 = vunpack.c.h.b16 %v387
    %v2513 = vunpack.c.l.b16 %v388
    %v2514 = vunpack.c.h.b16 %v388
    %v2515 = vunpack.c.l.b16 %v389
    %v2516 = vunpack.c.h.b16 %v389
    %v2517 = vunpack.c.l.b16 %v390
    %v2518 = vunpack.c.h.b16 %v390
    %v2519 = vunpack.c.l.b16 %v391
    %v2520 = vunpack.c.h.b16 %v391
    %v2521 = vunpack.c.l.b16 %v392
    %v2522 = vunpack.c.h.b16 %v392
    %v2523 = vunpack.c.l.b16 %v393
    %v2524 = vunpack.c.h.b16 %v393
    %v2525 = vunpack.c.l.b16 %v394
    %v2526 = vunpack.c.h.b16 %v394
    %v2527 = vunpack.c.l.b16 %v395
    %v2528 = vunpack.c.h.b16 %v395
    %v2529 = vunpack.c.l.b16 %v396
    %v2530 = vunpack.c.l.b16 %v397
    %v2531 = vunpack.c.h.b16 %v397
    %v2532 = vunpack.c.l.b16 %v398
    %v2533 = vunpack.c.h.b16 %v398
    %v2534 = vunpack.c.l.b16 %v399
    %v2535 = vunpack.c.h.b16 %v399
    %v2536 = vunpack.c.l.b16 %v400
    %v2537 = vunpack.c.h.b16 %v400
    %v2538 = vunpack.c.l.b16 %v401
    %v2539 = vunpack.c.h.b16 %v401
    %v2540 = vunpack.c.l.b16 %v402
    %v2541 = vunpack.c.h.b16 %v402
    %v2542 = vunpack.c.l.b16 %v403
    %v2543 = vunpack.c.h.b16 %v403
    %v2544 = vunpack.c.l.b16 %v404
    %v2545 = vunpack.c.h.b16 %v404
    %v2546 = vunpack.c.l.b16 %v405
    %v2547 = vunpack.c.h.b16 %v405
    %v2548 = vunpack.c.l.b16 %v406
    %v2549 = vunpack.c.h.b16 %v406
    %v2550 = vunpack.c.l.b16 %v407
    %v2551 = vunpack.c.h.b16 %v407
    %v2552 = vunpack.c.l.b16 %v408
    %v2553 = vunpack.c.h.b16 %v408
    %v2554 = vunpack.c.l.b16 %v409
    %v2555 = vunpack.c.l.b16 %v410
    %v2556 = vunpack.c.h.b16 %v410
    %v2557 = vunpack.c.l.b16 %v411
    %v2558 = vunpack.c.h.b16 %v411
    %v2559 = vunpack.c.l.b16 %v412
    %v2560 = vunpack.c.h.b16 %v412
    %v2561 = vunpack.c.l.b16 %v413
    %v2562 = vunpack.c.h.b16 %v413
    %v2563 = vunpack.c.l.b16 %v414
    %v2564 = vunpack.c.h.b16 %v414
    %v2565 = vunpack.c.l.b16 %v415
    %v2566 = vunpack.c.h.b16 %v415
    %v2567 = vunpack.c.l.b16 %v416
    %v2568 = vunpack.c.h.b16 %v416
    %v2569 = vunpack.c.l.b16 %v417
    %v2570 = vunpack.c.h.b16 %v417
    %v2571 = vunpack.c.l.b16 %v418
    %v2572 = vunpack.c.h.b16 %v418
    %v2573 = vunpack.c.l.b16 %v419
    %v2574 = vunpack.c.h.b16 %v419
    %v2575 = vunpack.c.l.b16 %v420
    %v2576 = vunpack.c.h.b16 %v420
    %v2577 = vunpack.c.l.b16 %v421
    %v2578 = vunpack.c.h.b16 %v421
    %v2579 = vunpack.c.l.b16 %v422
    %v2580 = vunpack.c.l.b16 %v423
    %v2581 = vunpack.c.h.b16 %v423
    %v2582 = vunpack.c.l.b16 %v424
    %v2583 = vunpack.c.h.b16 %v424
    %v2584 = vunpack.c.l.b16 %v425
    %v2585 = vunpack.c.h.b16 %v425
    %v2586 = vunpack.c.l.b16 %v426
    %v2587 = vunpack.c.h.b16 %v426
    %v2588 = vunpack.c.l.b16 %v427
    %v2589 = vunpack.c.h.b16 %v427
    %v2590 = vunpack.c.l.b16 %v428
    %v2591 = vunpack.c.h.b16 %v428
    %v2592 = vunpack.c.l.b16 %v429
    %v2593 = vunpack.c.h.b16 %v429
    %v2594 = vunpack.c.l.b16 %v430
    %v2595 = vunpack.c.h.b16 %v430
    %v2596 = vunpack.c.l.b16 %v431
    %v2597 = vunpack.c.h.b16 %v431
    %v2598 = vunpack.c.l.b16 %v432
    %v2599 = vunpack.c.h.b16 %v432
    %v2600 = vunpack.c.l.b16 %v433
    %v2601 = vunpack.c.h.b16 %v433
    %v2602 = vunpack.c.l.b16 %v434
    %v2603 = vunpack.c.h.b16 %v434
    %v2604 = vunpack.c.l.b16 %v435
    %v2605 = vunpack.c.l.b16 %v436
    %v2606 = vunpack.c.h.b16 %v436
    %v2607 = vunpack.c.l.b16 %v437
    %v2608 = vunpack.c.h.b16 %v437
    %v2609 = vunpack.c.l.b16 %v438
    %v2610 = vunpack.c.h.b16 %v438
    %v2611 = vunpack.c.l.b16 %v439
    %v2612 = vunpack.c.h.b16 %v439
    %v2613 = vunpack.c.l.b16 %v440
    %v2614 = vunpack.c.h.b16 %v440
    %v2615 = vunpack.c.l.b16 %v441
    %v2616 = vunpack.c.h.b16 %v441
    %v2617 = vunpack.c.l.b16 %v442
    %v2618 = vunpack.c.h.b16 %v442
    %v2619 = vunpack.c.l.b16 %v443
    %v2620 = vunpack.c.h.b16 %v443
    %v2621 = vunpack.c.l.b16 %v444
    %v2622 = vunpack.c.h.b16 %v444
    %v2623 = vunpack.c.l.b16 %v445
    %v2624 = vunpack.c.h.b16 %v445
    %v2625 = vunpack.c.l.b16 %v446
    %v2626 = vunpack.c.h.b16 %v446
    %v2627 = vunpack.c.l.b16 %v447
    %v2628 = vunpack.c.h.b16 %v447
    %v2629 = vunpack.c.l.b16 %v448
    %v2630 = vunpack.c.l.b16 %v449
    %v2631 = vunpack.c.h.b16 %v449
    %v2632 = vunpack.c.l.b16 %v450
    %v2633 = vunpack.c.h.b16 %v450
    %v2634 = vunpack.c.l.b16 %v451
    %v2635 = vunpack.c.h.b16 %v451
    %v2636 = vunpack.c.l.b16 %v452
    %v2637 = vunpack.c.h.b16 %v452
    %v2638 = vunpack.c.l.b16 %v453
    %v2639 = vunpack.c.h.b16 %v453
    %v2640 = vunpack.c.l.b16 %v454
    %v2641 = vunpack.c.h.b16 %v454
    %v2642 = vunpack.c.l.b16 %v455
    %v2643 = vunpack.c.h.b16 %v455
    %v2644 = vunpack.c.l.b16 %v456
    %v2645 = vunpack.c.h.b16 %v456
    %v2646 = vunpack.c.l.b16 %v457
    %v2647 = vunpack.c.h.b16 %v457
    %v2648 = vunpack.c.l.b16 %v458
    %v2649 = vunpack.c.h.b16 %v458
    %v2650 = vunpack.c.l.b16 %v459
    %v2651 = vunpack.c.h.b16 %v459
    %v2652 = vunpack.c.l.b16 %v460
    %v2653 = vunpack.c.h.b16 %v460
    %v2654 = vunpack.c.l.b16 %v461
    %v2655 = vunpack.c.l.b16 %v462
    %v2656 = vunpack.c.h.b16 %v462
    %v2657 = vunpack.c.l.b16 %v463
    %v2658 = vunpack.c.h.b16 %v463
    %v2659 = vunpack.c.l.b16 %v464
    %v2660 = vunpack.c.h.b16 %v464
    %v2661 = vunpack.c.l.b16 %v465
    %v2662 = vunpack.c.h.b16 %v465
    %v2663 = vunpack.c.l.b16 %v466
    %v2664 = vunpack.c.h.b16 %v466
    %v2665 = vunpack.c.l.b16 %v467
    %v2666 = vunpack.c.h.b16 %v467
    %v2667 = vunpack.c.l.b16 %v468
    %v2668 = vunpack.c.h.b16 %v468
    %v2669 = vunpack.c.l.b16 %v469
    %v2670 = vunpack.c.h.b16 %v469
    %v2671 = vunpack.c.l.b16 %v470
    %v2672 = vunpack.c.h.b16 %v470
    %v2673 = vunpack.c.l.b16 %v471
    %v2674 = vunpack.c.h.b16 %v471
    %v2675 = vunpack.c.l.b16 %v472
    %v2676 = vunpack.c.h.b16 %v472
    %v2677 = vunpack.c.l.b16 %v473
    %v2678 = vunpack.c.h.b16 %v473
    %v2679 = vunpack.c.l.b16 %v474
    %v2680 = vunpack.c.l.b16 %v475
    %v2681 = vunpack.c.h.b16 %v475
    %v2682 = vunpack.c.l.b16 %v476
    %v2683 = vunpack.c.h.b16 %v476
    %v2684 = vunpack.c.l.b16 %v477
    %v2685 = vunpack.c.h.b16 %v477
    %v2686 = vunpack.c.l.b16 %v478
    %v2687 = vunpack.c.h.b16 %v478
    %v2688 = vunpack.c.l.b16 %v479
    %v2689 = vunpack.c.h.b16 %v479
    %v2690 = vunpack.c.l.b16 %v480
    %v2691 = vunpack.c.h.b16 %v480
    %v2692 = vunpack.c.l.b16 %v481
    %v2693 = vunpack.c.h.b16 %v481
    %v2694 = vunpack.c.l.b16 %v482
    %v2695 = vunpack.c.h.b16 %v482
    %v2696 = vunpack.c.l.b16 %v483
    %v2697 = vunpack.c.h.b16 %v483
    %v2698 = vunpack.c.l.b16 %v484
    %v2699 = vunpack.c.h.b16 %v484
    %v2700 = vunpack.c.l.b16 %v485
    %v2701 = vunpack.c.h.b16 %v485
    %v2702 = vunpack.c.l.b16 %v486
    %v2703 = vunpack.c.h.b16 %v486
    %v2704 = vunpack.c.l.b16 %v487
    %v2705 = vunpack.c.l.b16 %v488
    %v2706 = vunpack.c.h.b16 %v488
    %v2707 = vunpack.c.l.b16 %v489
    %v2708 = vunpack.c.h.b16 %v489
    %v2709 = vunpack.c.l.b16 %v490
    %v2710 = vunpack.c.h.b16 %v490
    %v2711 = vunpack.c.l.b16 %v491
    %v2712 = vunpack.c.h.b16 %v491
    %v2713 = vunpack.c.l.b16 %v492
    %v2714 = vunpack.c.h.b16 %v492
    %v2715 = vunpack.c.l.b16 %v493
    %v2716 = vunpack.c.h.b16 %v493
    %v2717 = vunpack.c.l.b16 %v494
    %v2718 = vunpack.c.h.b16 %v494
    %v2719 = vunpack.c.l.b16 %v495
    %v2720 = vunpack.c.h.b16 %v495
    %v2721 = vunpack.c.l.b16 %v496
    %v2722 = vunpack.c.h.b16 %v496
    %v2723 = vunpack.c.l.b16 %v497
    %v2724 = vunpack.c.h.b16 %v497
    %v2725 = vunpack.c.l.b16 %v498
    %v2726 = vunpack.c.h.b16 %v498
    %v2727 = vunpack.c.l.b16 %v499
    %v2728 = vunpack.c.h.b16 %v499
    %v2729 = vunpack.c.l.b16 %v500
    %v2730 = vunpack.c.l.b16 %v501
    %v2731 = vunpack.c.h.b16 %v501
    %v2732 = vunpack.c.l.b16 %v502
    %v2733 = vunpack.c.h.b16 %v502
    %v2734 = vunpack.c.l.b16 %v503
    %v2735 = vunpack.c.h.b16 %v503
    %v2736 = vunpack.c.l.b16 %v504
    %v2737 = vunpack.c.h.b16 %v504
    %v2738 = vunpack.c.l.b16 %v505
    %v2739 = vunpack.c.h.b16 %v505
    %v2740 = vunpack.c.l.b16 %v506
    %v2741 = vunpack.c.h.b16 %v506
    %v2742 = vunpack.c.l.b16 %v507
    %v2743 = vunpack.c.h.b16 %v507
    %v2744 = vunpack.c.l.b16 %v508
    %v2745 = vunpack.c.h.b16 %v508
    %v2746 = vunpack.c.l.b16 %v509
    %v2747 = vunpack.c.h.b16 %v509
    %v2748 = vunpack.c.l.b16 %v510
    %v2749 = vunpack.c.h.b16 %v510
    %v2750 = vunpack.c.l.b16 %v511
    %v2751 = vunpack.c.h.b16 %v511
    %v2752 = vunpack.c.l.b16 %v512
    %v2753 = vunpack.c.h.b16 %v512
    %v2754 = vunpack.c.l.b16 %v513
    %v2755 = vunpack.c.l.b16 %v514
    %v2756 = vunpack.c.h.b16 %v514
    %v2757 = vunpack.c.l.b16 %v515
    %v2758 = vunpack.c.h.b16 %v515
    %v2759 = vunpack.c.l.b16 %v516
    %v2760 = vunpack.c.h.b16 %v516
    %v2761 = vunpack.c.l.b16 %v517
    %v2762 = vunpack.c.h.b16 %v517
    %v2763 = vunpack.c.l.b16 %v518
    %v2764 = vunpack.c.h.b16 %v518
    %v2765 = vunpack.c.l.b16 %v519
    %v2766 = vunpack.c.h.b16 %v519
    %v2767 = vunpack.c.l.b16 %v520
    %v2768 = vunpack.c.h.b16 %v520
    %v2769 = vunpack.c.l.b16 %v521
    %v2770 = vunpack.c.h.b16 %v521
    %v2771 = vunpack.c.l.b16 %v522
    %v2772 = vunpack.c.h.b16 %v522
    %v2773 = vunpack.c.l.b16 %v523
    %v2774 = vunpack.c.h.b16 %v523
    %v2775 = vunpack.c.l.b16 %v524
    %v2776 = vunpack.c.h.b16 %v524
    %v2777 = vunpack.c.l.b16 %v525
    %v2778 = vunpack.c.h.b16 %v525
    %v2779 = vunpack.c.l.b16 %v526
    %v2780 = vunpack.c.l.b16 %v527
    %v2781 = vunpack.c.h.b16 %v527
    %v2782 = vunpack.c.l.b16 %v528
    %v2783 = vunpack.c.h.b16 %v528
    %v2784 = vunpack.c.l.b16 %v529
    %v2785 = vunpack.c.h.b16 %v529
    %v2786 = vunpack.c.l.b16 %v530
    %v2787 = vunpack.c.h.b16 %v530
    %v2788 = vunpack.c.l.b16 %v531
    %v2789 = vunpack.c.h.b16 %v531
    %v2790 = vunpack.c.l.b16 %v532
    %v2791 = vunpack.c.h.b16 %v532
    %v2792 = vunpack.c.l.b16 %v533
    %v2793 = vunpack.c.h.b16 %v533
    %v2794 = vunpack.c.l.b16 %v534
    %v2795 = vunpack.c.h.b16 %v534
    %v2796 = vunpack.c.l.b16 %v535
    %v2797 = vunpack.c.h.b16 %v535
    %v2798 = vunpack.c.l.b16 %v536
    %v2799 = vunpack.c.h.b16 %v536
    %v2800 = vunpack.c.l.b16 %v537
    %v2801 = vunpack.c.h.b16 %v537
    %v2802 = vunpack.c.l.b16 %v538
    %v2803 = vunpack.c.h.b16 %v538
    %v2804 = vunpack.c.l.b16 %v539
    %v2805 = vunpack.c.l.b16 %v540
    %v2806 = vunpack.c.h.b16 %v540
    %v2807 = vunpack.c.l.b16 %v541
    %v2808 = vunpack.c.h.b16 %v541
    %v2809 = vunpack.c.l.b16 %v542
    %v2810 = vunpack.c.h.b16 %v542
    %v2811 = vunpack.c.l.b16 %v543
    %v2812 = vunpack.c.h.b16 %v543
    %v2813 = vunpack.c.l.b16 %v544
    %v2814 = vunpack.c.h.b16 %v544
    %v2815 = vunpack.c.l.b16 %v545
    %v2816 = vunpack.c.h.b16 %v545
    %v2817 = vunpack.c.l.b16 %v546
    %v2818 = vunpack.c.h.b16 %v546
    %v2819 = vunpack.c.l.b16 %v547
    %v2820 = vunpack.c.h.b16 %v547
    %v2821 = vunpack.c.l.b16 %v548
    %v2822 = vunpack.c.h.b16 %v548
    %v2823 = vunpack.c.l.b16 %v549
    %v2824 = vunpack.c.h.b16 %v549
    %v2825 = vunpack.c.l.b16 %v550
    %v2826 = vunpack.c.h.b16 %v550
    %v2827 = vunpack.c.l.b16 %v551
    %v2828 = vunpack.c.h.b16 %v551
    %v2829 = vunpack.c.l.b16 %v552
    %v2830 = vunpack.c.l.b16 %v553
    %v2831 = vunpack.c.h.b16 %v553
    %v2832 = vunpack.c.l.b16 %v554
    %v2833 = vunpack.c.h.b16 %v554
    %v2834 = vunpack.c.l.b16 %v555
    %v2835 = vunpack.c.h.b16 %v555
    %v2836 = vunpack.c.l.b16 %v556
    %v2837 = vunpack.c.h.b16 %v556
    %v2838 = vunpack.c.l.b16 %v557
    %v2839 = vunpack.c.h.b16 %v557
    %v2840 = vunpack.c.l.b16 %v558
    %v2841 = vunpack.c.h.b16 %v558
    %v2842 = vunpack.c.l.b16 %v559
    %v2843 = vunpack.c.h.b16 %v559
    %v2844 = vunpack.c.l.b16 %v560
    %v2845 = vunpack.c.h.b16 %v560
    %v2846 = vunpack.c.l.b16 %v561
    %v2847 = vunpack.c.h.b16 %v561
    %v2848 = vunpack.c.l.b16 %v562
    %v2849 = vunpack.c.h.b16 %v562
    %v2850 = vunpack.c.l.b16 %v563
    %v2851 = vunpack.c.h.b16 %v563
    %v2852 = vunpack.c.l.b16 %v564
    %v2853 = vunpack.c.h.b16 %v564
    %v2854 = vunpack.c.l.b16 %v565
    %v2855 = vunpack.c.l.b16 %v566
    %v2856 = vunpack.c.h.b16 %v566
    %v2857 = vunpack.c.l.b16 %v567
    %v2858 = vunpack.c.h.b16 %v567
    %v2859 = vunpack.c.l.b16 %v568
    %v2860 = vunpack.c.h.b16 %v568
    %v2861 = vunpack.c.l.b16 %v569
    %v2862 = vunpack.c.h.b16 %v569
    %v2863 = vunpack.c.l.b16 %v570
    %v2864 = vunpack.c.h.b16 %v570
    %v2865 = vunpack.c.l.b16 %v571
    %v2866 = vunpack.c.h.b16 %v571
    %v2867 = vunpack.c.l.b16 %v572
    %v2868 = vunpack.c.h.b16 %v572
    %v2869 = vunpack.c.l.b16 %v573
    %v2870 = vunpack.c.h.b16 %v573
    %v2871 = vunpack.c.l.b16 %v574
    %v2872 = vunpack.c.h.b16 %v574
    %v2873 = vunpack.c.l.b16 %v575
    %v2874 = vunpack.c.h.b16 %v575
    %v2875 = vunpack.c.l.b16 %v576
    %v2876 = vunpack.c.h.b16 %v576
    %v2877 = vunpack.c.l.b16 %v577
    %v2878 = vunpack.c.h.b16 %v577
    %v2879 = vunpack.c.l.b16 %v578
    %v2880 = vunpack.c.l.b16 %v579
    %v2881 = vunpack.c.h.b16 %v579
    %v2882 = vunpack.c.l.b16 %v580
    %v2883 = vunpack.c.h.b16 %v580
    %v2884 = vunpack.c.l.b16 %v581
    %v2885 = vunpack.c.h.b16 %v581
    %v2886 = vunpack.c.l.b16 %v582
    %v2887 = vunpack.c.h.b16 %v582
    %v2888 = vunpack.c.l.b16 %v583
    %v2889 = vunpack.c.h.b16 %v583
    %v2890 = vunpack.c.l.b16 %v584
    %v2891 = vunpack.c.h.b16 %v584
    %v2892 = vunpack.c.l.b16 %v585
    %v2893 = vunpack.c.h.b16 %v585
    %v2894 = vunpack.c.l.b16 %v586
    %v2895 = vunpack.c.h.b16 %v586
    %v2896 = vunpack.c.l.b16 %v587
    %v2897 = vunpack.c.h.b16 %v587
    %v2898 = vunpack.c.l.b16 %v588
    %v2899 = vunpack.c.h.b16 %v588
    %v2900 = vunpack.c.l.b16 %v589
    %v2901 = vunpack.c.h.b16 %v589
    %v2902 = vunpack.c.l.b16 %v590
    %v2903 = vunpack.c.h.b16 %v590
    %v2904 = vunpack.c.l.b16 %v591
    %v2905 = vunpack.c.l.b16 %v592
    %v2906 = vunpack.c.h.b16 %v592
    %v2907 = vunpack.c.l.b16 %v593
    %v2908 = vunpack.c.h.b16 %v593
    %v2909 = vunpack.c.l.b16 %v594
    %v2910 = vunpack.c.h.b16 %v594
    %v2911 = vunpack.c.l.b16 %v595
    %v2912 = vunpack.c.h.b16 %v595
    %v2913 = vunpack.c.l.b16 %v596
    %v2914 = vunpack.c.h.b16 %v596
    %v2915 = vunpack.c.l.b16 %v597
    %v2916 = vunpack.c.h.b16 %v597
    %v2917 = vunpack.c.l.b16 %v598
    %v2918 = vunpack.c.h.b16 %v598
    %v2919 = vunpack.c.l.b16 %v599
    %v2920 = vunpack.c.h.b16 %v599
    %v2921 = vunpack.c.l.b16 %v600
    %v2922 = vunpack.c.h.b16 %v600
    %v2923 = vunpack.c.l.b16 %v601
    %v2924 = vunpack.c.h.b16 %v601
    %v2925 = vunpack.c.l.b16 %v602
    %v2926 = vunpack.c.h.b16 %v602
    %v2927 = vunpack.c.l.b16 %v603
    %v2928 = vunpack.c.h.b16 %v603
    %v2929 = vunpack.c.l.b16 %v604
    %v2930 = vunpack.c.l.b16 %v605
    %v2931 = vunpack.c.h.b16 %v605
    %v2932 = vunpack.c.l.b16 %v606
    %v2933 = vunpack.c.h.b16 %v606
    %v2934 = vunpack.c.l.b16 %v607
    %v2935 = vunpack.c.h.b16 %v607
    %v2936 = vunpack.c.l.b16 %v608
    %v2937 = vunpack.c.h.b16 %v608
    %v2938 = vunpack.c.l.b16 %v609
    %v2939 = vunpack.c.h.b16 %v609
    %v2940 = vunpack.c.l.b16 %v610
    %v2941 = vunpack.c.h.b16 %v610
    %v2942 = vunpack.c.l.b16 %v611
    %v2943 = vunpack.c.h.b16 %v611
    %v2944 = vunpack.c.l.b16 %v612
    %v2945 = vunpack.c.h.b16 %v612
    %v2946 = vunpack.c.l.b16 %v613
    %v2947 = vunpack.c.h.b16 %v613
    %v2948 = vunpack.c.l.b16 %v614
    %v2949 = vunpack.c.h.b16 %v614
    %v2950 = vunpack.c.l.b16 %v615
    %v2951 = vunpack.c.h.b16 %v615
    %v2952 = vunpack.c.l.b16 %v616
    %v2953 = vunpack.c.h.b16 %v616
    %v2954 = vunpack.c.l.b16 %v617
    %v2955 = vunpack.c.l.b16 %v618
    %v2956 = vunpack.c.h.b16 %v618
    %v2957 = vunpack.c.l.b16 %v619
    %v2958 = vunpack.c.h.b16 %v619
    %v2959 = vunpack.c.l.b16 %v620
    %v2960 = vunpack.c.h.b16 %v620
    %v2961 = vunpack.c.l.b16 %v621
    %v2962 = vunpack.c.h.b16 %v621
    %v2963 = vunpack.c.l.b16 %v622
    %v2964 = vunpack.c.h.b16 %v622
    %v2965 = vunpack.c.l.b16 %v623
    %v2966 = vunpack.c.h.b16 %v623
    %v2967 = vunpack.c.l.b16 %v624
    %v2968 = vunpack.c.h.b16 %v624
    %v2969 = vunpack.c.l.b16 %v625
    %v2970 = vunpack.c.h.b16 %v625
    %v2971 = vunpack.c.l.b16 %v626
    %v2972 = vunpack.c.h.b16 %v626
    %v2973 = vunpack.c.l.b16 %v627
    %v2974 = vunpack.c.h.b16 %v627
    %v2975 = vunpack.c.l.b16 %v628
    %v2976 = vunpack.c.h.b16 %v628
    %v2977 = vunpack.c.l.b16 %v629
    %v2978 = vunpack.c.h.b16 %v629
    %v2979 = vunpack.c.l.b16 %v630
    %v2980 = vunpack.c.l.b16 %v631
    %v2981 = vunpack.c.h.b16 %v631
    %v2982 = vunpack.c.l.b16 %v632
    %v2983 = vunpack.c.h.b16 %v632
    %v2984 = vunpack.c.l.b16 %v633
    %v2985 = vunpack.c.h.b16 %v633
    %v2986 = vunpack.c.l.b16 %v634
    %v2987 = vunpack.c.h.b16 %v634
    %v2988 = vunpack.c.l.b16 %v635
    %v2989 = vunpack.c.h.b16 %v635
    %v2990 = vunpack.c.l.b16 %v636
    %v2991 = vunpack.c.h.b16 %v636
    %v2992 = vunpack.c.l.b16 %v637
    %v2993 = vunpack.c.h.b16 %v637
    %v2994 = vunpack.c.l.b16 %v638
    %v2995 = vunpack.c.h.b16 %v638
    %v2996 = vunpack.c.l.b16 %v639
    %v2997 = vunpack.c.h.b16 %v639
    %v2998 = vunpack.c.l.b16 %v640
    %v2999 = vunpack.c.h.b16 %v640
    %v3000 = vunpack.c.l.b16 %v641
    %v3001 = vunpack.c.h.b16 %v641
    %v3002 = vunpack.c.l.b16 %v642
    %v3003 = vunpack.c.h.b16 %v642
    %v3004 = vunpack.c.l.b16 %v643
    %v3005 = vunpack.c.l.b16 %v644
    %v3006 = vunpack.c.h.b16 %v644
    %v3007 = vunpack.c.l.b16 %v645
    %v3008 = vunpack.c.h.b16 %v645
    %v3009 = vunpack.c.l.b16 %v646
    %v3010 = vunpack.c.h.b16 %v646
    %v3011 = vunpack.c.l.b16 %v647
    %v3012 = vunpack.c.h.b16 %v647
    %v3013 = vunpack.c.l.b16 %v648
    %v3014 = vunpack.c.h.b16 %v648
    %v3015 = vunpack.c.l.b16 %v649
    %v3016 = vunpack.c.h.b16 %v649
    %v3017 = vunpack.c.l.b16 %v650
    %v3018 = vunpack.c.h.b16 %v650
    %v3019 = vunpack.c.l.b16 %v651
    %v3020 = vunpack.c.h.b16 %v651
    %v3021 = vunpack.c.l.b16 %v652
    %v3022 = vunpack.c.h.b16 %v652
    %v3023 = vunpack.c.l.b16 %v653
    %v3024 = vunpack.c.h.b16 %v653
    %v3025 = vunpack.c.l.b16 %v654
    %v3026 = vunpack.c.h.b16 %v654
    %v3027 = vunpack.c.l.b16 %v655
    %v3028 = vunpack.c.h.b16 %v655
    %v3029 = vunpack.c.l.b16 %v656
    %v3030 = vunpack.c.l.b16 %v657
    %v3031 = vunpack.c.h.b16 %v657
    %v3032 = vunpack.c.l.b16 %v658
    %v3033 = vunpack.c.h.b16 %v658
    %v3034 = vunpack.c.l.b16 %v659
    %v3035 = vunpack.c.h.b16 %v659
    %v3036 = vunpack.c.l.b16 %v660
    %v3037 = vunpack.c.h.b16 %v660
    %v3038 = vunpack.c.l.b16 %v661
    %v3039 = vunpack.c.h.b16 %v661
    %v3040 = vunpack.c.l.b16 %v662
    %v3041 = vunpack.c.h.b16 %v662
    %v3042 = vunpack.c.l.b16 %v663
    %v3043 = vunpack.c.h.b16 %v663
    %v3044 = vunpack.c.l.b16 %v664
    %v3045 = vunpack.c.h.b16 %v664
    %v3046 = vunpack.c.l.b16 %v665
    %v3047 = vunpack.c.h.b16 %v665
    %v3048 = vunpack.c.l.b16 %v666
    %v3049 = vunpack.c.h.b16 %v666
    %v3050 = vunpack.c.l.b16 %v667
    %v3051 = vunpack.c.h.b16 %v667
    %v3052 = vunpack.c.l.b16 %v668
    %v3053 = vunpack.c.h.b16 %v668
    %v3054 = vunpack.c.l.b16 %v669
    %v3055 = vunpack.c.l.b16 %v670
    %v3056 = vunpack.c.h.b16 %v670
    %v3057 = vunpack.c.l.b16 %v671
    %v3058 = vunpack.c.h.b16 %v671
    %v3059 = vunpack.c.l.b16 %v672
    %v3060 = vunpack.c.h.b16 %v672
    %v3061 = vunpack.c.l.b16 %v673
    %v3062 = vunpack.c.h.b16 %v673
    %v3063 = vunpack.c.l.b16 %v674
    %v3064 = vunpack.c.h.b16 %v674
    %v3065 = vunpack.c.l.b16 %v675
    %v3066 = vunpack.c.h.b16 %v675
    %v3067 = vunpack.c.l.b16 %v676
    %v3068 = vunpack.c.h.b16 %v676
    %v3069 = vunpack.c.l.b16 %v677
    %v3070 = vunpack.c.h.b16 %v677
    %v3071 = vunpack.c.l.b16 %v678
    %v3072 = vunpack.c.h.b16 %v678
    %v3073 = vunpack.c.l.b16 %v679
    %v3074 = vunpack.c.h.b16 %v679
    %v3075 = vunpack.c.l.b16 %v680
    %v3076 = vunpack.c.h.b16 %v680
    %v3077 = vunpack.c.l.b16 %v681
    %v3078 = vunpack.c.h.b16 %v681
    %v3079 = vunpack.c.l.b16 %v682
    %v3080 = vunpack.c.l.b16 %v683
    %v3081 = vunpack.c.h.b16 %v683
    %v3082 = vunpack.c.l.b16 %v684
    %v3083 = vunpack.c.h.b16 %v684
    %v3084 = vunpack.c.l.b16 %v685
    %v3085 = vunpack.c.h.b16 %v685
    %v3086 = vunpack.c.l.b16 %v686
    %v3087 = vunpack.c.h.b16 %v686
    %v3088 = vunpack.c.l.b16 %v687
    %v3089 = vunpack.c.h.b16 %v687
    %v3090 = vunpack.c.l.b16 %v688
    %v3091 = vunpack.c.h.b16 %v688
    %v3092 = vunpack.c.l.b16 %v689
    %v3093 = vunpack.c.h.b16 %v689
    %v3094 = vunpack.c.l.b16 %v690
    %v3095 = vunpack.c.h.b16 %v690
    %v3096 = vunpack.c.l.b16 %v691
    %v3097 = vunpack.c.h.b16 %v691
    %v3098 = vunpack.c.l.b16 %v692
    %v3099 = vunpack.c.h.b16 %v692
    %v3100 = vunpack.c.l.b16 %v693
    %v3101 = vunpack.c.h.b16 %v693
    %v3102 = vunpack.c.l.b16 %v694
    %v3103 = vunpack.c.h.b16 %v694
    %v3104 = vunpack.c.l.b16 %v695
    %v3105 = vunpack.c.l.b16 %v696
    %v3106 = vunpack.c.h.b16 %v696
    %v3107 = vunpack.c.l.b16 %v697
    %v3108 = vunpack.c.h.b16 %v697
    %v3109 = vunpack.c.l.b16 %v698
    %v3110 = vunpack.c.h.b16 %v698
    %v3111 = vunpack.c.l.b16 %v699
    %v3112 = vunpack.c.h.b16 %v699
    %v3113 = vunpack.c.l.b16 %v700
    %v3114 = vunpack.c.h.b16 %v700
    %v3115 = vunpack.c.l.b16 %v701
    %v3116 = vunpack.c.h.b16 %v701
    %v3117 = vunpack.c.l.b16 %v702
    %v3118 = vunpack.c.h.b16 %v702
    %v3119 = vunpack.c.l.b16 %v703
    %v3120 = vunpack.c.h.b16 %v703
    %v3121 = vunpack.c.l.b16 %v704
    %v3122 = vunpack.c.h.b16 %v704
    %v3123 = vunpack.c.l.b16 %v705
    %v3124 = vunpack.c.h.b16 %v705
    %v3125 = vunpack.c.l.b16 %v706
    %v3126 = vunpack.c.h.b16 %v706
    %v3127 = vunpack.c.l.b16 %v707
    %v3128 = vunpack.c.h.b16 %v707
    %v3129 = vunpack.c.l.b16 %v708
    %v3130 = vunpack.c.l.b16 %v709
    %v3131 = vunpack.c.h.b16 %v709
    %v3132 = vunpack.c.l.b16 %v710
    %v3133 = vunpack.c.h.b16 %v710
    %v3134 = vunpack.c.l.b16 %v711
    %v3135 = vunpack.c.h.b16 %v711
    %v3136 = vunpack.c.l.b16 %v712
    %v3137 = vunpack.c.h.b16 %v712
    %v3138 = vunpack.c.l.b16 %v713
    %v3139 = vunpack.c.h.b16 %v713
    %v3140 = vunpack.c.l.b16 %v714
    %v3141 = vunpack.c.h.b16 %v714
    %v3142 = vunpack.c.l.b16 %v715
    %v3143 = vunpack.c.h.b16 %v715
    %v3144 = vunpack.c.l.b16 %v716
    %v3145 = vunpack.c.h.b16 %v716
    %v3146 = vunpack.c.l.b16 %v717
    %v3147 = vunpack.c.h.b16 %v717
    %v3148 = vunpack.c.l.b16 %v718
    %v3149 = vunpack.c.h.b16 %v718
    %v3150 = vunpack.c.l.b16 %v719
    %v3151 = vunpack.c.h.b16 %v719
    %v3152 = vunpack.c.l.b16 %v720
    %v3153 = vunpack.c.h.b16 %v720
    %v3154 = vunpack.c.l.b16 %v721
    %v3155 = vunpack.c.l.b16 %v722
    %v3156 = vunpack.c.h.b16 %v722
    %v3157 = vunpack.c.l.b16 %v723
    %v3158 = vunpack.c.h.b16 %v723
    %v3159 = vunpack.c.l.b16 %v724
    %v3160 = vunpack.c.h.b16 %v724
    %v3161 = vunpack.c.l.b16 %v725
    %v3162 = vunpack.c.h.b16 %v725
    %v3163 = vunpack.c.l.b16 %v726
    %v3164 = vunpack.c.h.b16 %v726
    %v3165 = vunpack.c.l.b16 %v727
    %v3166 = vunpack.c.h.b16 %v727
    %v3167 = vunpack.c.l.b16 %v728
    %v3168 = vunpack.c.h.b16 %v728
    %v3169 = vunpack.c.l.b16 %v729
    %v3170 = vunpack.c.h.b16 %v729
    %v3171 = vunpack.c.l.b16 %v730
    %v3172 = vunpack.c.h.b16 %v730
    %v3173 = vunpack.c.l.b16 %v731
    %v3174 = vunpack.c.h.b16 %v731
    %v3175 = vunpack.c.l.b16 %v732
    %v3176 = vunpack.c.h.b16 %v732
    %v3177 = vunpack.c.l.b16 %v733
    %v3178 = vunpack.c.h.b16 %v733
    %v3179 = vunpack.c.l.b16 %v734
    %v3180 = vunpack.c.l.b16 %v735
    %v3181 = vunpack.c.h.b16 %v735
    %v3182 = vunpack.c.l.b16 %v736
    %v3183 = vunpack.c.h.b16 %v736
    %v3184 = vunpack.c.l.b16 %v737
    %v3185 = vunpack.c.h.b16 %v737
    %v3186 = vunpack.c.l.b16 %v738
    %v3187 = vunpack.c.h.b16 %v738
    %v3188 = vunpack.c.l.b16 %v739
    %v3189 = vunpack.c.h.b16 %v739
    %v3190 = vunpack.c.l.b16 %v740
    %v3191 = vunpack.c.h.b16 %v740
    %v3192 = vunpack.c.l.b16 %v741
    %v3193 = vunpack.c.h.b16 %v741
    %v3194 = vunpack.c.l.b16 %v742
    %v3195 = vunpack.c.h.b16 %v742
    %v3196 = vunpack.c.l.b16 %v743
    %v3197 = vunpack.c.h.b16 %v743
    %v3198 = vunpack.c.l.b16 %v744
    %v3199 = vunpack.c.h.b16 %v744
    %v3200 = vunpack.c.l.b16 %v745
    %v3201 = vunpack.c.h.b16 %v745
    %v3202 = vunpack.c.l.b16 %v746
    %v3203 = vunpack.c.h.b16 %v746
    %v3204 = vunpack.c.l.b16 %v747
    %v3205 = vunpack.c.l.b16 %v748
    %v3206 = vunpack.c.h.b16 %v748
    %v3207 = vunpack.c.l.b16 %v749
    %v3208 = vunpack.c.h.b16 %v749
    %v3209 = vunpack.c.l.b16 %v750
    %v3210 = vunpack.c.h.b16 %v750
    %v3211 = vunpack.c.l.b16 %v751
    %v3212 = vunpack.c.h.b16 %v751
    %v3213 = vunpack.c.l.b16 %v752
    %v3214 = vunpack.c.h.b16 %v752
    %v3215 = vunpack.c.l.b16 %v753
    %v3216 = vunpack.c.h.b16 %v753
    %v3217 = vunpack.c.l.b16 %v754
    %v3218 = vunpack.c.h.b16 %v754
    %v3219 = vunpack.c.l.b16 %v755
    %v3220 = vunpack.c.h.b16 %v755
    %v3221 = vunpack.c.l.b16 %v756
    %v3222 = vunpack.c.h.b16 %v756
    %v3223 = vunpack.c.l.b16 %v757
    %v3224 = vunpack.c.h.b16 %v757
    %v3225 = vunpack.c.l.b16 %v758
    %v3226 = vunpack.c.h.b16 %v758
    %v3227 = vunpack.c.l.b16 %v759
    %v3228 = vunpack.c.h.b16 %v759
    %v3229 = vunpack.c.l.b16 %v760
    %v3230 = vunpack.c.l.b16 %v761
    %v3231 = vunpack.c.h.b16 %v761
    %v3232 = vunpack.c.l.b16 %v762
    %v3233 = vunpack.c.h.b16 %v762
    %v3234 = vunpack.c.l.b16 %v763
    %v3235 = vunpack.c.h.b16 %v763
    %v3236 = vunpack.c.l.b16 %v764
    %v3237 = vunpack.c.h.b16 %v764
    %v3238 = vunpack.c.l.b16 %v765
    %v3239 = vunpack.c.h.b16 %v765
    %v3240 = vunpack.c.l.b16 %v766
    %v3241 = vunpack.c.h.b16 %v766
    %v3242 = vunpack.c.l.b16 %v767
    %v3243 = vunpack.c.h.b16 %v767
    %v3244 = vunpack.c.l.b16 %v768
    %v3245 = vunpack.c.h.b16 %v768
    %v3246 = vunpack.c.l.b16 %v769
    %v3247 = vunpack.c.h.b16 %v769
    %v3248 = vunpack.c.l.b16 %v770
    %v3249 = vunpack.c.h.b16 %v770
    %v3250 = vunpack.c.l.b16 %v771
    %v3251 = vunpack.c.h.b16 %v771
    %v3252 = vunpack.c.l.b16 %v772
    %v3253 = vunpack.c.h.b16 %v772
    %v3254 = vunpack.c.l.b16 %v773
    %v3255 = vunpack.c.l.b16 %v774
    %v3256 = vunpack.c.h.b16 %v774
    %v3257 = vunpack.c.l.b16 %v775
    %v3258 = vunpack.c.h.b16 %v775
    %v3259 = vunpack.c.l.b16 %v776
    %v3260 = vunpack.c.h.b16 %v776
    %v3261 = vunpack.c.l.b16 %v777
    %v3262 = vunpack.c.h.b16 %v777
    %v3263 = vunpack.c.l.b16 %v778
    %v3264 = vunpack.c.h.b16 %v778
    %v3265 = vunpack.c.l.b16 %v779
    %v3266 = vunpack.c.h.b16 %v779
    %v3267 = vunpack.c.l.b16 %v780
    %v3268 = vunpack.c.h.b16 %v780
    %v3269 = vunpack.c.l.b16 %v781
    %v3270 = vunpack.c.h.b16 %v781
    %v3271 = vunpack.c.l.b16 %v782
    %v3272 = vunpack.c.h.b16 %v782
    %v3273 = vunpack.c.l.b16 %v783
    %v3274 = vunpack.c.h.b16 %v783
    %v3275 = vunpack.c.l.b16 %v784
    %v3276 = vunpack.c.h.b16 %v784
    %v3277 = vunpack.c.l.b16 %v785
    %v3278 = vunpack.c.h.b16 %v785
    %v3279 = vunpack.c.l.b16 %v786
    %v3280 = vunpack.c.l.b16 %v787
    %v3281 = vunpack.c.h.b16 %v787
    %v3282 = vunpack.c.l.b16 %v788
    %v3283 = vunpack.c.h.b16 %v788
    %v3284 = vunpack.c.l.b16 %v789
    %v3285 = vunpack.c.h.b16 %v789
    %v3286 = vunpack.c.l.b16 %v790
    %v3287 = vunpack.c.h.b16 %v790
    %v3288 = vunpack.c.l.b16 %v791
    %v3289 = vunpack.c.h.b16 %v791
    %v3290 = vunpack.c.l.b16 %v792
    %v3291 = vunpack.c.h.b16 %v792
    %v3292 = vunpack.c.l.b16 %v793
    %v3293 = vunpack.c.h.b16 %v793
    %v3294 = vunpack.c.l.b16 %v794
    %v3295 = vunpack.c.h.b16 %v794
    %v3296 = vunpack.c.l.b16 %v795
    %v3297 = vunpack.c.h.b16 %v795
    %v3298 = vunpack.c.l.b16 %v796
    %v3299 = vunpack.c.h.b16 %v796
    %v3300 = vunpack.c.l.b16 %v797
    %v3301 = vunpack.c.h.b16 %v797
    %v3302 = vunpack.c.l.b16 %v798
    %v3303 = vunpack.c.h.b16 %v798
    %v3304 = vunpack.c.l.b16 %v799
    %v3305 = vunpack.c.l.b16 %v800
    %v3306 = vunpack.c.h.b16 %v800
    %v3307 = vunpack.c.l.b16 %v801
    %v3308 = vunpack.c.h.b16 %v801
    %v3309 = vunpack.c.l.b16 %v802
    %v3310 = vunpack.c.h.b16 %v802
    %v3311 = vunpack.c.l.b16 %v803
    %v3312 = vunpack.c.h.b16 %v803
    %v3313 = vunpack.c.l.b16 %v804
    %v3314 = vunpack.c.h.b16 %v804
    %v3315 = vunpack.c.l.b16 %v805
    %v3316 = vunpack.c.h.b16 %v805
    %v3317 = vunpack.c.l.b16 %v806
    %v3318 = vunpack.c.h.b16 %v806
    %v3319 = vunpack.c.l.b16 %v807
    %v3320 = vunpack.c.h.b16 %v807
    %v3321 = vunpack.c.l.b16 %v808
    %v3322 = vunpack.c.h.b16 %v808
    %v3323 = vunpack.c.l.b16 %v809
    %v3324 = vunpack.c.h.b16 %v809
    %v3325 = vunpack.c.l.b16 %v810
    %v3326 = vunpack.c.h.b16 %v810
    %v3327 = vunpack.c.l.b16 %v811
    %v3328 = vunpack.c.h.b16 %v811
    %v3329 = vunpack.c.l.b16 %v812
    %v3330 = vunpack.c.l.b16 %v813
    %v3331 = vunpack.c.h.b16 %v813
    %v3332 = vunpack.c.l.b16 %v814
    %v3333 = vunpack.c.h.b16 %v814
    %v3334 = vunpack.c.l.b16 %v815
    %v3335 = vunpack.c.h.b16 %v815
    %v3336 = vunpack.c.l.b16 %v816
    %v3337 = vunpack.c.h.b16 %v816
    %v3338 = vunpack.c.l.b16 %v817
    %v3339 = vunpack.c.h.b16 %v817
    %v3340 = vunpack.c.l.b16 %v818
    %v3341 = vunpack.c.h.b16 %v818
    %v3342 = vunpack.c.l.b16 %v819
    %v3343 = vunpack.c.h.b16 %v819
    %v3344 = vunpack.c.l.b16 %v820
    %v3345 = vunpack.c.h.b16 %v820
    %v3346 = vunpack.c.l.b16 %v821
    %v3347 = vunpack.c.h.b16 %v821
    %v3348 = vunpack.c.l.b16 %v822
    %v3349 = vunpack.c.h.b16 %v822
    %v3350 = vunpack.c.l.b16 %v823
    %v3351 = vunpack.c.h.b16 %v823
    %v3352 = vunpack.c.l.b16 %v824
    %v3353 = vunpack.c.h.b16 %v824
    %v3354 = vunpack.c.l.b16 %v825
    %v3355 = vunpack.c.l.b16 %v826
    %v3356 = vunpack.c.h.b16 %v826
    %v3357 = vunpack.c.l.b16 %v827
    %v3358 = vunpack.c.h.b16 %v827
    %v3359 = vunpack.c.l.b16 %v828
    %v3360 = vunpack.c.h.b16 %v828
    %v3361 = vunpack.c.l.b16 %v829
    %v3362 = vunpack.c.h.b16 %v829
    %v3363 = vunpack.c.l.b16 %v830
    %v3364 = vunpack.c.h.b16 %v830
    %v3365 = vunpack.c.l.b16 %v831
    %v3366 = vunpack.c.h.b16 %v831
    %v3367 = vunpack.c.l.b16 %v832
    %v3368 = vunpack.c.h.b16 %v832
    %v3369 = vunpack.c.l.b16 %v833
    %v3370 = vunpack.c.h.b16 %v833
    %v3371 = vunpack.c.l.b16 %v834
    %v3372 = vunpack.c.h.b16 %v834
    %v3373 = vunpack.c.l.b16 %v835
    %v3374 = vunpack.c.h.b16 %v835
    %v3375 = vunpack.c.l.b16 %v836
    %v3376 = vunpack.c.h.b16 %v836
    %v3377 = vunpack.c.l.b16 %v837
    %v3378 = vunpack.c.h.b16 %v837
    %v3379 = vunpack.c.l.b16 %v838
    %v3380 = vunpack.c.l.b16 %v839
    %v3381 = vunpack.c.h.b16 %v839
    %v3382 = vunpack.c.l.b16 %v840
    %v3383 = vunpack.c.h.b16 %v840
    %v3384 = vunpack.c.l.b16 %v841
    %v3385 = vunpack.c.h.b16 %v841
    %v3386 = vunpack.c.l.b16 %v842
    %v3387 = vunpack.c.h.b16 %v842
    %v3388 = vunpack.c.l.b16 %v843
    %v3389 = vunpack.c.h.b16 %v843
    %v3390 = vunpack.c.l.b16 %v844
    %v3391 = vunpack.c.h.b16 %v844
    %v3392 = vunpack.c.l.b16 %v845
    %v3393 = vunpack.c.h.b16 %v845
    %v3394 = vunpack.c.l.b16 %v846
    %v3395 = vunpack.c.h.b16 %v846
    %v3396 = vunpack.c.l.b16 %v847
    %v3397 = vunpack.c.h.b16 %v847
    %v3398 = vunpack.c.l.b16 %v848
    %v3399 = vunpack.c.h.b16 %v848
    %v3400 = vunpack.c.l.b16 %v849
    %v3401 = vunpack.c.h.b16 %v849
    %v3402 = vunpack.c.l.b16 %v850
    %v3403 = vunpack.c.h.b16 %v850
    %v3404 = vunpack.c.l.b16 %v851
    %v3405 = vunpack.c.l.b16 %v852
    %v3406 = vunpack.c.h.b16 %v852
    %v3407 = vunpack.c.l.b16 %v853
    %v3408 = vunpack.c.h.b16 %v853
    %v3409 = vunpack.c.l.b16 %v854
    %v3410 = vunpack.c.h.b16 %v854
    %v3411 = vunpack.c.l.b16 %v855
    %v3412 = vunpack.c.h.b16 %v855
    %v3413 = vunpack.c.l.b16 %v856
    %v3414 = vunpack.c.h.b16 %v856
    %v3415 = vunpack.c.l.b16 %v857
    %v3416 = vunpack.c.h.b16 %v857
    %v3417 = vunpack.c.l.b16 %v858
    %v3418 = vunpack.c.h.b16 %v858
    %v3419 = vunpack.c.l.b16 %v859
    %v3420 = vunpack.c.h.b16 %v859
    %v3421 = vunpack.c.l.b16 %v860
    %v3422 = vunpack.c.h.b16 %v860
    %v3423 = vunpack.c.l.b16 %v861
    %v3424 = vunpack.c.h.b16 %v861
    %v3425 = vunpack.c.l.b16 %v862
    %v3426 = vunpack.c.h.b16 %v862
    %v3427 = vunpack.c.l.b16 %v863
    %v3428 = vunpack.c.h.b16 %v863
    %v3429 = vunpack.c.l.b16 %v864
    %v3430 = vpack.c.b16 %v1855, %v1830
    %v3431 = vpack.c.b16 %v1856, %v1831
    %v3432 = vpack.c.b16 %v1857, %v1832
    %v3433 = vpack.c.b16 %v1858, %v1833
    %v3434 = vpack.c.b16 %v1859, %v1834
    %v3435 = vpack.c.b16 %v1860, %v1835
    %v3436 = vpack.c.b16 %v1861, %v1836
    %v3437 = vpack.c.b16 %v1862, %v1837
    %v3438 = vpack.c.b16 %v1863, %v1838
    %v3439 = vpack.c.b16 %v1864, %v1839
    %v3440 = vpack.c.b16 %v1865, %v1840
    %v3441 = vpack.c.b16 %v1866, %v1841
    %v3442 = vpack.c.b16 %v1867, %v1842
    %v3443 = vpack.c.b16 %v1868, %v1843
    %v3444 = vpack.c.b16 %v1869, %v1844
    %v3445 = vpack.c.b16 %v1870, %v1845
    %v3446 = vpack.c.b16 %v1871, %v1846
    %v3447 = vpack.c.b16 %v1872, %v1847
    %v3448 = vpack.c.b16 %v1873, %v1848
    %v3449 = vpack.c.b16 %v1874, %v1849
    %v3450 = vpack.c.b16 %v1875, %v1850
    %v3451 = vpack.c.b16 %v1876, %v1851
    %v3452 = vpack.c.b16 %v1877, %v1852
    %v3453 = vpack.c.b16 %v1878, %v1853
    %v3454 = vpack.c.b16 %v1879, %v1854
    %v3455 = vpack.c.b16 %v1905, %v1880
    %v3456 = vpack.c.b16 %v1906, %v1881
    %v3457 = vpack.c.b16 %v1907, %v1882
    %v3458 = vpack.c.b16 %v1908, %v1883
    %v3459 = vpack.c.b16 %v1909, %v1884
    %v3460 = vpack.c.b16 %v1910, %v1885
    %v3461 = vpack.c.b16 %v1911, %v1886
    %v3462 = vpack.c.b16 %v1912, %v1887
    %v3463 = vpack.c.b16 %v1913, %v1888
    %v3464 = vpack.c.b16 %v1914, %v1889
    %v3465 = vpack.c.b16 %v1915, %v1890
    %v3466 = vpack.c.b16 %v1916, %v1891
    %v3467 = vpack.c.b16 %v1917, %v1892
    %v3468 = vpack.c.b16 %v1918, %v1893
    %v3469 = vpack.c.b16 %v1919, %v1894
    %v3470 = vpack.c.b16 %v1920, %v1895
    %v3471 = vpack.c.b16 %v1921, %v1896
    %v3472 = vpack.c.b16 %v1922, %v1897
    %v3473 = vpack.c.b16 %v1923, %v1898
    %v3474 = vpack.c.b16 %v1924, %v1899
    %v3475 = vpack.c.b16 %v1925, %v1900
    %v3476 = vpack.c.b16 %v1926, %v1901
    %v3477 = vpack.c.b16 %v1927, %v1902
    %v3478 = vpack.c.b16 %v1928, %v1903
    %v3479 = vpack.c.b16 %v1929, %v1904
    %v3480 = vpack.c.b16 %v1955, %v1930
    %v3481 = vpack.c.b16 %v1956, %v1931
    %v3482 = vpack.c.b16 %v1957, %v1932
    %v3483 = vpack.c.b16 %v1958, %v1933
    %v3484 = vpack.c.b16 %v1959, %v1934
    %v3485 = vpack.c.b16 %v1960, %v1935
    %v3486 = vpack.c.b16 %v1961, %v1936
    %v3487 = vpack.c.b16 %v1962, %v1937
    %v3488 = vpack.c.b16 %v1963, %v1938
    %v3489 = vpack.c.b16 %v1964, %v1939
    %v3490 = vpack.c.b16 %v1965, %v1940
    %v3491 = vpack.c.b16 %v1966, %v1941
    %v3492 = vpack.c.b16 %v1967, %v1942
    %v3493 = vpack.c.b16 %v1968, %v1943
    %v3494 = vpack.c.b16 %v1969, %v1944
    %v3495 = vpack.c.b16 %v1970, %v1945
    %v3496 = vpack.c.b16 %v1971, %v1946
    %v3497 = vpack.c.b16 %v1972, %v1947
    %v3498 = vpack.c.b16 %v1973, %v1948
    %v3499 = vpack.c.b16 %v1974, %v1949
    %v3500 = vpack.c.b16 %v1975, %v1950
    %v3501 = vpack.c.b16 %v1976, %v1951
    %v3502 = vpack.c.b16 %v1977, %v1952
    %v3503 = vpack.c.b16 %v1978, %v1953
    %v3504 = vpack.c.b16 %v1979, %v1954
    %v3505 = vpack.c.b16 %v2005, %v1980
    %v3506 = vpack.c.b16 %v2006, %v1981
    %v3507 = vpack.c.b16 %v2007, %v1982
    %v3508 = vpack.c.b16 %v2008, %v1983
    %v3509 = vpack.c.b16 %v2009, %v1984
    %v3510 = vpack.c.b16 %v2010, %v1985
    %v3511 = vpack.c.b16 %v2011, %v1986
    %v3512 = vpack.c.b16 %v2012, %v1987
    %v3513 = vpack.c.b16 %v2013, %v1988
    %v3514 = vpack.c.b16 %v2014, %v1989
    %v3515 = vpack.c.b16 %v2015, %v1990
    %v3516 = vpack.c.b16 %v2016, %v1991
    %v3517 = vpack.c.b16 %v2017, %v1992
    %v3518 = vpack.c.b16 %v2018, %v1993
    %v3519 = vpack.c.b16 %v2019, %v1994
    %v3520 = vpack.c.b16 %v2020, %v1995
    %v3521 = vpack.c.b16 %v2021, %v1996
    %v3522 = vpack.c.b16 %v2022, %v1997
    %v3523 = vpack.c.b16 %v2023, %v1998
    %v3524 = vpack.c.b16 %v2024, %v1999
    %v3525 = vpack.c.b16 %v2025, %v2000
    %v3526 = vpack.c.b16 %v2026, %v2001
    %v3527 = vpack.c.b16 %v2027, %v2002
    %v3528 = vpack.c.b16 %v2028, %v2003
    %v3529 = vpack.c.b16 %v2029, %v2004
    %v3530 = vpack.c.b16 %v2055, %v2030
    %v3531 = vpack.c.b16 %v2056, %v2031
    %v3532 = vpack.c.b16 %v2057, %v2032
    %v3533 = vpack.c.b16 %v2058, %v2033
    %v3534 = vpack.c.b16 %v2059, %v2034
    %v3535 = vpack.c.b16 %v2060, %v2035
    %v3536 = vpack.c.b16 %v2061, %v2036
    %v3537 = vpack.c.b16 %v2062, %v2037
    %v3538 = vpack.c.b16 %v2063, %v2038
    %v3539 = vpack.c.b16 %v2064, %v2039
    %v3540 = vpack.c.b16 %v2065, %v2040
    %v3541 = vpack.c.b16 %v2066, %v2041
    %v3542 = vpack.c.b16 %v2067, %v2042
    %v3543 = vpack.c.b16 %v2068, %v2043
    %v3544 = vpack.c.b16 %v2069, %v2044
    %v3545 = vpack.c.b16 %v2070, %v2045
    %v3546 = vpack.c.b16 %v2071, %v2046
    %v3547 = vpack.c.b16 %v2072, %v2047
    %v3548 = vpack.c.b16 %v2073, %v2048
    %v3549 = vpack.c.b16 %v2074, %v2049
    %v3550 = vpack.c.b16 %v2075, %v2050
    %v3551 = vpack.c.b16 %v2076, %v2051
    %v3552 = vpack.c.b16 %v2077, %v2052
    %v3553 = vpack.c.b16 %v2078, %v2053
    %v3554 = vpack.c.b16 %v2079, %v2054
    %v3555 = vpack.c.b16 %v2105, %v2080
    %v3556 = vpack.c.b16 %v2106, %v2081
    %v3557 = vpack.c.b16 %v2107, %v2082
    %v3558 = vpack.c.b16 %v2108, %v2083
    %v3559 = vpack.c.b16 %v2109, %v2084
    %v3560 = vpack.c.b16 %v2110, %v2085
    %v3561 = vpack.c.b16 %v2111, %v2086
    %v3562 = vpack.c.b16 %v2112, %v2087
    %v3563 = vpack.c.b16 %v2113, %v2088
    %v3564 = vpack.c.b16 %v2114, %v2089
    %v3565 = vpack.c.b16 %v2115, %v2090
    %v3566 = vpack.c.b16 %v2116, %v2091
    %v3567 = vpack.c.b16 %v2117, %v2092
    %v3568 = vpack.c.b16 %v2118, %v2093
    %v3569 = vpack.c.b16 %v2119, %v2094
    %v3570 = vpack.c.b16 %v2120, %v2095
    %v3571 = vpack.c.b16 %v2121, %v2096
    %v3572 = vpack.c.b16 %v2122, %v2097
    %v3573 = vpack.c.b16 %v2123, %v2098
    %v3574 = vpack.c.b16 %v2124, %v2099
    %v3575 = vpack.c.b16 %v2125, %v2100
    %v3576 = vpack.c.b16 %v2126, %v2101
    %v3577 = vpack.c.b16 %v2127, %v2102
    %v3578 = vpack.c.b16 %v2128, %v2103
    %v3579 = vpack.c.b16 %v2129, %v2104
    %v3580 = vpack.c.b16 %v2155, %v2130
    %v3581 = vpack.c.b16 %v2156, %v2131
    %v3582 = vpack.c.b16 %v2157, %v2132
    %v3583 = vpack.c.b16 %v2158, %v2133
    %v3584 = vpack.c.b16 %v2159, %v2134
    %v3585 = vpack.c.b16 %v2160, %v2135
    %v3586 = vpack.c.b16 %v2161, %v2136
    %v3587 = vpack.c.b16 %v2162, %v2137
    %v3588 = vpack.c.b16 %v2163, %v2138
    %v3589 = vpack.c.b16 %v2164, %v2139
    %v3590 = vpack.c.b16 %v2165, %v2140
    %v3591 = vpack.c.b16 %v2166, %v2141
    %v3592 = vpack.c.b16 %v2167, %v2142
    %v3593 = vpack.c.b16 %v2168, %v2143
    %v3594 = vpack.c.b16 %v2169, %v2144
    %v3595 = vpack.c.b16 %v2170, %v2145
    %v3596 = vpack.c.b16 %v2171, %v2146
    %v3597 = vpack.c.b16 %v2172, %v2147
    %v3598 = vpack.c.b16 %v2173, %v2148
    %v3599 = vpack.c.b16 %v2174, %v2149
    %v3600 = vpack.c.b16 %v2175, %v2150
    %v3601 = vpack.c.b16 %v2176, %v2151
    %v3602 = vpack.c.b16 %v2177, %v2152
    %v3603 = vpack.c.b16 %v2178, %v2153
    %v3604 = vpack.c.b16 %v2179, %v2154
    %v3605 = vpack.c.b16 %v2205, %v2180
    %v3606 = vpack.c.b16 %v2206, %v2181
    %v3607 = vpack.c.b16 %v2207, %v2182
    %v3608 = vpack.c.b16 %v2208, %v2183
    %v3609 = vpack.c.b16 %v2209, %v2184
    %v3610 = vpack.c.b16 %v2210, %v2185
    %v3611 = vpack.c.b16 %v2211, %v2186
    %v3612 = vpack.c.b16 %v2212, %v2187
    %v3613 = vpack.c.b16 %v2213, %v2188
    %v3614 = vpack.c.b16 %v2214, %v2189
    %v3615 = vpack.c.b16 %v2215, %v2190
    %v3616 = vpack.c.b16 %v2216, %v2191
    %v3617 = vpack.c.b16 %v2217, %v2192
    %v3618 = vpack.c.b16 %v2218, %v2193
    %v3619 = vpack.c.b16 %v2219, %v2194
    %v3620 = vpack.c.b16 %v2220, %v2195
    %v3621 = vpack.c.b16 %v2221, %v2196
    %v3622 = vpack.c.b16 %v2222, %v2197
    %v3623 = vpack.c.b16 %v2223, %v2198
    %v3624 = vpack.c.b16 %v2224, %v2199
    %v3625 = vpack.c.b16 %v2225, %v2200
    %v3626 = vpack.c.b16 %v2226, %v2201
    %v3627 = vpack.c.b16 %v2227, %v2202
    %v3628 = vpack.c.b16 %v2228, %v2203
    %v3629 = vpack.c.b16 %v2229, %v2204
    %v3630 = vpack.c.b16 %v2255, %v2230
    %v3631 = vpack.c.b16 %v2256, %v2231
    %v3632 = vpack.c.b16 %v2257, %v2232
    %v3633 = vpack.c.b16 %v2258, %v2233
    %v3634 = vpack.c.b16 %v2259, %v2234
    %v3635 = vpack.c.b16 %v2260, %v2235
    %v3636 = vpack.c.b16 %v2261, %v2236
    %v3637 = vpack.c.b16 %v2262, %v2237
    %v3638 = vpack.c.b16 %v2263, %v2238
    %v3639 = vpack.c.b16 %v2264, %v2239
    %v3640 = vpack.c.b16 %v2265, %v2240
    %v3641 = vpack.c.b16 %v2266, %v2241
    %v3642 = vpack.c.b16 %v2267, %v2242
    %v3643 = vpack.c.b16 %v2268, %v2243
    %v3644 = vpack.c.b16 %v2269, %v2244
    %v3645 = vpack.c.b16 %v2270, %v2245
    %v3646 = vpack.c.b16 %v2271, %v2246
    %v3647 = vpack.c.b16 %v2272, %v2247
    %v3648 = vpack.c.b16 %v2273, %v2248
    %v3649 = vpack.c.b16 %v2274, %v2249
    %v3650 = vpack.c.b16 %v2275, %v2250
    %v3651 = vpack.c.b16 %v2276, %v2251
    %v3652 = vpack.c.b16 %v2277, %v2252
    %v3653 = vpack.c.b16 %v2278, %v2253
    %v3654 = vpack.c.b16 %v2279, %v2254
    %v3655 = vpack.c.b16 %v2305, %v2280
    %v3656 = vpack.c.b16 %v2306, %v2281
    %v3657 = vpack.c.b16 %v2307, %v2282
    %v3658 = vpack.c.b16 %v2308, %v2283
    %v3659 = vpack.c.b16 %v2309, %v2284
    %v3660 = vpack.c.b16 %v2310, %v2285
    %v3661 = vpack.c.b16 %v2311, %v2286
    %v3662 = vpack.c.b16 %v2312, %v2287
    %v3663 = vpack.c.b16 %v2313, %v2288
    %v3664 = vpack.c.b16 %v2314, %v2289
    %v3665 = vpack.c.b16 %v2315, %v2290
    %v3666 = vpack.c.b16 %v2316, %v2291
    %v3667 = vpack.c.b16 %v2317, %v2292
    %v3668 = vpack.c.b16 %v2318, %v2293
    %v3669 = vpack.c.b16 %v2319, %v2294
    %v3670 = vpack.c.b16 %v2320, %v2295
    %v3671 = vpack.c.b16 %v2321, %v2296
    %v3672 = vpack.c.b16 %v2322, %v2297
    %v3673 = vpack.c.b16 %v2323, %v2298
    %v3674 = vpack.c.b16 %v2324, %v2299
    %v3675 = vpack.c.b16 %v2325, %v2300
    %v3676 = vpack.c.b16 %v2326, %v2301
    %v3677 = vpack.c.b16 %v2327, %v2302
    %v3678 = vpack.c.b16 %v2328, %v2303
    %v3679 = vpack.c.b16 %v2329, %v2304
    %v3680 = vpack.c.b16 %v2355, %v2330
    %v3681 = vpack.c.b16 %v2356, %v2331
    %v3682 = vpack.c.b16 %v2357, %v2332
    %v3683 = vpack.c.b16 %v2358, %v2333
    %v3684 = vpack.c.b16 %v2359, %v2334
    %v3685 = vpack.c.b16 %v2360, %v2335
    %v3686 = vpack.c.b16 %v2361, %v2336
    %v3687 = vpack.c.b16 %v2362, %v2337
    %v3688 = vpack.c.b16 %v2363, %v2338
    %v3689 = vpack.c.b16 %v2364, %v2339
    %v3690 = vpack.c.b16 %v2365, %v2340
    %v3691 = vpack.c.b16 %v2366, %v2341
    %v3692 = vpack.c.b16 %v2367, %v2342
    %v3693 = vpack.c.b16 %v2368, %v2343
    %v3694 = vpack.c.b16 %v2369, %v2344
    %v3695 = vpack.c.b16 %v2370, %v2345
    %v3696 = vpack.c.b16 %v2371, %v2346
    %v3697 = vpack.c.b16 %v2372, %v2347
    %v3698 = vpack.c.b16 %v2373, %v2348
    %v3699 = vpack.c.b16 %v2374, %v2349
    %v3700 = vpack.c.b16 %v2375, %v2350
    %v3701 = vpack.c.b16 %v2376, %v2351
    %v3702 = vpack.c.b16 %v2377, %v2352
    %v3703 = vpack.c.b16 %v2378, %v2353
    %v3704 = vpack.c.b16 %v2379, %v2354
    %v3705 = vpack.c.b16 %v2405, %v2380
    %v3706 = vpack.c.b16 %v2406, %v2381
    %v3707 = vpack.c.b16 %v2407, %v2382
    %v3708 = vpack.c.b16 %v2408, %v2383
    %v3709 = vpack.c.b16 %v2409, %v2384
    %v3710 = vpack.c.b16 %v2410, %v2385
    %v3711 = vpack.c.b16 %v2411, %v2386
    %v3712 = vpack.c.b16 %v2412, %v2387
    %v3713 = vpack.c.b16 %v2413, %v2388
    %v3714 = vpack.c.b16 %v2414, %v2389
    %v3715 = vpack.c.b16 %v2415, %v2390
    %v3716 = vpack.c.b16 %v2416, %v2391
    %v3717 = vpack.c.b16 %v2417, %v2392
    %v3718 = vpack.c.b16 %v2418, %v2393
    %v3719 = vpack.c.b16 %v2419, %v2394
    %v3720 = vpack.c.b16 %v2420, %v2395
    %v3721 = vpack.c.b16 %v2421, %v2396
    %v3722 = vpack.c.b16 %v2422, %v2397
    %v3723 = vpack.c.b16 %v2423, %v2398
    %v3724 = vpack.c.b16 %v2424, %v2399
    %v3725 = vpack.c.b16 %v2425, %v2400
    %v3726 = vpack.c.b16 %v2426, %v2401
    %v3727 = vpack.c.b16 %v2427, %v2402
    %v3728 = vpack.c.b16 %v2428, %v2403
    %v3729 = vpack.c.b16 %v2429, %v2404
    %v3730 = vpack.c.b16 %v2455, %v2430
    %v3731 = vpack.c.b16 %v2456, %v2431
    %v3732 = vpack.c.b16 %v2457, %v2432
    %v3733 = vpack.c.b16 %v2458, %v2433
    %v3734 = vpack.c.b16 %v2459, %v2434
    %v3735 = vpack.c.b16 %v2460, %v2435
    %v3736 = vpack.c.b16 %v2461, %v2436
    %v3737 = vpack.c.b16 %v2462, %v2437
    %v3738 = vpack.c.b16 %v2463, %v2438
    %v3739 = vpack.c.b16 %v2464, %v2439
    %v3740 = vpack.c.b16 %v2465, %v2440
    %v3741 = vpack.c.b16 %v2466, %v2441
    %v3742 = vpack.c.b16 %v2467, %v2442
    %v3743 = vpack.c.b16 %v2468, %v2443
    %v3744 = vpack.c.b16 %v2469, %v2444
    %v3745 = vpack.c.b16 %v2470, %v2445
    %v3746 = vpack.c.b16 %v2471, %v2446
    %v3747 = vpack.c.b16 %v2472, %v2447
    %v3748 = vpack.c.b16 %v2473, %v2448
    %v3749 = vpack.c.b16 %v2474, %v2449
    %v3750 = vpack.c.b16 %v2475, %v2450
    %v3751 = vpack.c.b16 %v2476, %v2451
    %v3752 = vpack.c.b16 %v2477, %v2452
    %v3753 = vpack.c.b16 %v2478, %v2453
    %v3754 = vpack.c.b16 %v2479, %v2454
    %v3755 = vpack.c.b16 %v2505, %v2480
    %v3756 = vpack.c.b16 %v2506, %v2481
    %v3757 = vpack.c.b16 %v2507, %v2482
    %v3758 = vpack.c.b16 %v2508, %v2483
    %v3759 = vpack.c.b16 %v2509, %v2484
    %v3760 = vpack.c.b16 %v2510, %v2485
    %v3761 = vpack.c.b16 %v2511, %v2486
    %v3762 = vpack.c.b16 %v2512, %v2487
    %v3763 = vpack.c.b16 %v2513, %v2488
    %v3764 = vpack.c.b16 %v2514, %v2489
    %v3765 = vpack.c.b16 %v2515, %v2490
    %v3766 = vpack.c.b16 %v2516, %v2491
    %v3767 = vpack.c.b16 %v2517, %v2492
    %v3768 = vpack.c.b16 %v2518, %v2493
    %v3769 = vpack.c.b16 %v2519, %v2494
    %v3770 = vpack.c.b16 %v2520, %v2495
    %v3771 = vpack.c.b16 %v2521, %v2496
    %v3772 = vpack.c.b16 %v2522, %v2497
    %v3773 = vpack.c.b16 %v2523, %v2498
    %v3774 = vpack.c.b16 %v2524, %v2499
    %v3775 = vpack.c.b16 %v2525, %v2500
    %v3776 = vpack.c.b16 %v2526, %v2501
    %v3777 = vpack.c.b16 %v2527, %v2502
    %v3778 = vpack.c.b16 %v2528, %v2503
    %v3779 = vpack.c.b16 %v2529, %v2504
    %v3780 = vpack.c.b16 %v2555, %v2530
    %v3781 = vpack.c.b16 %v2556, %v2531
    %v3782 = vpack.c.b16 %v2557, %v2532
    %v3783 = vpack.c.b16 %v2558, %v2533
    %v3784 = vpack.c.b16 %v2559, %v2534
    %v3785 = vpack.c.b16 %v2560, %v2535
    %v3786 = vpack.c.b16 %v2561, %v2536
    %v3787 = vpack.c.b16 %v2562, %v2537
    %v3788 = vpack.c.b16 %v2563, %v2538
    %v3789 = vpack.c.b16 %v2564, %v2539
    %v3790 = vpack.c.b16 %v2565, %v2540
    %v3791 = vpack.c.b16 %v2566, %v2541
    %v3792 = vpack.c.b16 %v2567, %v2542
    %v3793 = vpack.c.b16 %v2568, %v2543
    %v3794 = vpack.c.b16 %v2569, %v2544
    %v3795 = vpack.c.b16 %v2570, %v2545
    %v3796 = vpack.c.b16 %v2571, %v2546
    %v3797 = vpack.c.b16 %v2572, %v2547
    %v3798 = vpack.c.b16 %v2573, %v2548
    %v3799 = vpack.c.b16 %v2574, %v2549
    %v3800 = vpack.c.b16 %v2575, %v2550
    %v3801 = vpack.c.b16 %v2576, %v2551
    %v3802 = vpack.c.b16 %v2577, %v2552
    %v3803 = vpack.c.b16 %v2578, %v2553
    %v3804 = vpack.c.b16 %v2579, %v2554
    %v3805 = vpack.c.b16 %v2605, %v2580
    %v3806 = vpack.c.b16 %v2606, %v2581
    %v3807 = vpack.c.b16 %v2607, %v2582
    %v3808 = vpack.c.b16 %v2608, %v2583
    %v3809 = vpack.c.b16 %v2609, %v2584
    %v3810 = vpack.c.b16 %v2610, %v2585
    %v3811 = vpack.c.b16 %v2611, %v2586
    %v3812 = vpack.c.b16 %v2612, %v2587
    %v3813 = vpack.c.b16 %v2613, %v2588
    %v3814 = vpack.c.b16 %v2614, %v2589
    %v3815 = vpack.c.b16 %v2615, %v2590
    %v3816 = vpack.c.b16 %v2616, %v2591
    %v3817 = vpack.c.b16 %v2617, %v2592
    %v3818 = vpack.c.b16 %v2618, %v2593
    %v3819 = vpack.c.b16 %v2619, %v2594
    %v3820 = vpack.c.b16 %v2620, %v2595
    %v3821 = vpack.c.b16 %v2621, %v2596
    %v3822 = vpack.c.b16 %v2622, %v2597
    %v3823 = vpack.c.b16 %v2623, %v2598
    %v3824 = vpack.c.b16 %v2624, %v2599
    %v3825 = vpack.c.b16 %v2625, %v2600
    %v3826 = vpack.c.b16 %v2626, %v2601
    %v3827 = vpack.c.b16 %v2627, %v2602
    %v3828 = vpack.c.b16 %v2628, %v2603
    %v3829 = vpack.c.b16 %v2629, %v2604
    %v3830 = vpack.c.b16 %v2655, %v2630
    %v3831 = vpack.c.b16 %v2656, %v2631
    %v3832 = vpack.c.b16 %v2657, %v2632
    %v3833 = vpack.c.b16 %v2658, %v2633
    %v3834 = vpack.c.b16 %v2659, %v2634
    %v3835 = vpack.c.b16 %v2660, %v2635
    %v3836 = vpack.c.b16 %v2661, %v2636
    %v3837 = vpack.c.b16 %v2662, %v2637
    %v3838 = vpack.c.b16 %v2663, %v2638
    %v3839 = vpack.c.b16 %v2664, %v2639
    %v3840 = vpack.c.b16 %v2665, %v2640
    %v3841 = vpack.c.b16 %v2666, %v2641
    %v3842 = vpack.c.b16 %v2667, %v2642
    %v3843 = vpack.c.b16 %v2668, %v2643
    %v3844 = vpack.c.b16 %v2669, %v2644
    %v3845 = vpack.c.b16 %v2670, %v2645
    %v3846 = vpack.c.b16 %v2671, %v2646
    %v3847 = vpack.c.b16 %v2672, %v2647
    %v3848 = vpack.c.b16 %v2673, %v2648
    %v3849 = vpack.c.b16 %v2674, %v2649
    %v3850 = vpack.c.b16 %v2675, %v2650
    %v3851 = vpack.c.b16 %v2676, %v2651
    %v3852 = vpack.c.b16 %v2677, %v2652
    %v3853 = vpack.c.b16 %v2678, %v2653
    %v3854 = vpack.c.b16 %v2679, %v2654
    %v3855 = vpack.c.b16 %v2705, %v2680
    %v3856 = vpack.c.b16 %v2706, %v2681
    %v3857 = vpack.c.b16 %v2707, %v2682
    %v3858 = vpack.c.b16 %v2708, %v2683
    %v3859 = vpack.c.b16 %v2709, %v2684
    %v3860 = vpack.c.b16 %v2710, %v2685
    %v3861 = vpack.c.b16 %v2711, %v2686
    %v3862 = vpack.c.b16 %v2712, %v2687
    %v3863 = vpack.c.b16 %v2713, %v2688
    %v3864 = vpack.c.b16 %v2714, %v2689
    %v3865 = vpack.c.b16 %v2715, %v2690
    %v3866 = vpack.c.b16 %v2716, %v2691
    %v3867 = vpack.c.b16 %v2717, %v2692
    %v3868 = vpack.c.b16 %v2718, %v2693
    %v3869 = vpack.c.b16 %v2719, %v2694
    %v3870 = vpack.c.b16 %v2720, %v2695
    %v3871 = vpack.c.b16 %v2721, %v2696
    %v3872 = vpack.c.b16 %v2722, %v2697
    %v3873 = vpack.c.b16 %v2723, %v2698
    %v3874 = vpack.c.b16 %v2724, %v2699
    %v3875 = vpack.c.b16 %v2725, %v2700
    %v3876 = vpack.c.b16 %v2726, %v2701
    %v3877 = vpack.c.b16 %v2727, %v2702
    %v3878 = vpack.c.b16 %v2728, %v2703
    %v3879 = vpack.c.b16 %v2729, %v2704
    %v3880 = vpack.c.b16 %v2755, %v2730
    %v3881 = vpack.c.b16 %v2756, %v2731
    %v3882 = vpack.c.b16 %v2757, %v2732
    %v3883 = vpack.c.b16 %v2758, %v2733
    %v3884 = vpack.c.b16 %v2759, %v2734
    %v3885 = vpack.c.b16 %v2760, %v2735
    %v3886 = vpack.c.b16 %v2761, %v2736
    %v3887 = vpack.c.b16 %v2762, %v2737
    %v3888 = vpack.c.b16 %v2763, %v2738
    %v3889 = vpack.c.b16 %v2764, %v2739
    %v3890 = vpack.c.b16 %v2765, %v2740
    %v3891 = vpack.c.b16 %v2766, %v2741
    %v3892 = vpack.c.b16 %v2767, %v2742
    %v3893 = vpack.c.b16 %v2768, %v2743
    %v3894 = vpack.c.b16 %v2769, %v2744
    %v3895 = vpack.c.b16 %v2770, %v2745
    %v3896 = vpack.c.b16 %v2771, %v2746
    %v3897 = vpack.c.b16 %v2772, %v2747
    %v3898 = vpack.c.b16 %v2773, %v2748
    %v3899 = vpack.c.b16 %v2774, %v2749
    %v3900 = vpack.c.b16 %v2775, %v2750
    %v3901 = vpack.c.b16 %v2776, %v2751
    %v3902 = vpack.c.b16 %v2777, %v2752
    %v3903 = vpack.c.b16 %v2778, %v2753
    %v3904 = vpack.c.b16 %v2779, %v2754
    %v3905 = vpack.c.b16 %v2805, %v2780
    %v3906 = vpack.c.b16 %v2806, %v2781
    %v3907 = vpack.c.b16 %v2807, %v2782
    %v3908 = vpack.c.b16 %v2808, %v2783
    %v3909 = vpack.c.b16 %v2809, %v2784
    %v3910 = vpack.c.b16 %v2810, %v2785
    %v3911 = vpack.c.b16 %v2811, %v2786
    %v3912 = vpack.c.b16 %v2812, %v2787
    %v3913 = vpack.c.b16 %v2813, %v2788
    %v3914 = vpack.c.b16 %v2814, %v2789
    %v3915 = vpack.c.b16 %v2815, %v2790
    %v3916 = vpack.c.b16 %v2816, %v2791
    %v3917 = vpack.c.b16 %v2817, %v2792
    %v3918 = vpack.c.b16 %v2818, %v2793
    %v3919 = vpack.c.b16 %v2819, %v2794
    %v3920 = vpack.c.b16 %v2820, %v2795
    %v3921 = vpack.c.b16 %v2821, %v2796
    %v3922 = vpack.c.b16 %v2822, %v2797
    %v3923 = vpack.c.b16 %v2823, %v2798
    %v3924 = vpack.c.b16 %v2824, %v2799
    %v3925 = vpack.c.b16 %v2825, %v2800
    %v3926 = vpack.c.b16 %v2826, %v2801
    %v3927 = vpack.c.b16 %v2827, %v2802
    %v3928 = vpack.c.b16 %v2828, %v2803
    %v3929 = vpack.c.b16 %v2829, %v2804
    %v3930 = vpack.c.b16 %v2855, %v2830
    %v3931 = vpack.c.b16 %v2856, %v2831
    %v3932 = vpack.c.b16 %v2857, %v2832
    %v3933 = vpack.c.b16 %v2858, %v2833
    %v3934 = vpack.c.b16 %v2859, %v2834
    %v3935 = vpack.c.b16 %v2860, %v2835
    %v3936 = vpack.c.b16 %v2861, %v2836
    %v3937 = vpack.c.b16 %v2862, %v2837
    %v3938 = vpack.c.b16 %v2863, %v2838
    %v3939 = vpack.c.b16 %v2864, %v2839
    %v3940 = vpack.c.b16 %v2865, %v2840
    %v3941 = vpack.c.b16 %v2866, %v2841
    %v3942 = vpack.c.b16 %v2867, %v2842
    %v3943 = vpack.c.b16 %v2868, %v2843
    %v3944 = vpack.c.b16 %v2869, %v2844
    %v3945 = vpack.c.b16 %v2870, %v2845
    %v3946 = vpack.c.b16 %v2871, %v2846
    %v3947 = vpack.c.b16 %v2872, %v2847
    %v3948 = vpack.c.b16 %v2873, %v2848
    %v3949 = vpack.c.b16 %v2874, %v2849
    %v3950 = vpack.c.b16 %v2875, %v2850
    %v3951 = vpack.c.b16 %v2876, %v2851
    %v3952 = vpack.c.b16 %v2877, %v2852
    %v3953 = vpack.c.b16 %v2878, %v2853
    %v3954 = vpack.c.b16 %v2879, %v2854
    %v3955 = vpack.c.b16 %v2905, %v2880
    %v3956 = vpack.c.b16 %v2906, %v2881
    %v3957 = vpack.c.b16 %v2907, %v2882
    %v3958 = vpack.c.b16 %v2908, %v2883
    %v3959 = vpack.c.b16 %v2909, %v2884
    %v3960 = vpack.c.b16 %v2910, %v2885
    %v3961 = vpack.c.b16 %v2911, %v2886
    %v3962 = vpack.c.b16 %v2912, %v2887
    %v3963 = vpack.c.b16 %v2913, %v2888
    %v3964 = vpack.c.b16 %v2914, %v2889
    %v3965 = vpack.c.b16 %v2915, %v2890
    %v3966 = vpack.c.b16 %v2916, %v2891
    %v3967 = vpack.c.b16 %v2917, %v2892
    %v3968 = vpack.c.b16 %v2918, %v2893
    %v3969 = vpack.c.b16 %v2919, %v2894
    %v3970 = vpack.c.b16 %v2920, %v2895
    %v3971 = vpack.c.b16 %v2921, %v2896
    %v3972 = vpack.c.b16 %v2922, %v2897
    %v3973 = vpack.c.b16 %v2923, %v2898
    %v3974 = vpack.c.b16 %v2924, %v2899
    %v3975 = vpack.c.b16 %v2925, %v2900
    %v3976 = vpack.c.b16 %v2926, %v2901
    %v3977 = vpack.c.b16 %v2927, %v2902
    %v3978 = vpack.c.b16 %v2928, %v2903
    %v3979 = vpack.c.b16 %v2929, %v2904
    %v3980 = vpack.c.b16 %v2955, %v2930
    %v3981 = vpack.c.b16 %v2956, %v2931
    %v3982 = vpack.c.b16 %v2957, %v2932
    %v3983 = vpack.c.b16 %v2958, %v2933
    %v3984 = vpack.c.b16 %v2959, %v2934
    %v3985 = vpack.c.b16 %v2960, %v2935
    %v3986 = vpack.c.b16 %v2961, %v2936
    %v3987 = vpack.c.b16 %v2962, %v2937
    %v3988 = vpack.c.b16 %v2963, %v2938
    %v3989 = vpack.c.b16 %v2964, %v2939
    %v3990 = vpack.c.b16 %v2965, %v2940
    %v3991 = vpack.c.b16 %v2966, %v2941
    %v3992 = vpack.c.b16 %v2967, %v2942
    %v3993 = vpack.c.b16 %v2968, %v2943
    %v3994 = vpack.c.b16 %v2969, %v2944
    %v3995 = vpack.c.b16 %v2970, %v2945
    %v3996 = vpack.c.b16 %v2971, %v2946
    %v3997 = vpack.c.b16 %v2972, %v2947
    %v3998 = vpack.c.b16 %v2973, %v2948
    %v3999 = vpack.c.b16 %v2974, %v2949
    %v4000 = vpack.c.b16 %v2975, %v2950
    %v4001 = vpack.c.b16 %v2976, %v2951
    %v4002 = vpack.c.b16 %v2977, %v2952
    %v4003 = vpack.c.b16 %v2978, %v2953
    %v4004 = vpack.c.b16 %v2979, %v2954
    %v4005 = vpack.c.b16 %v3005, %v2980
    %v4006 = vpack.c.b16 %v3006, %v2981
    %v4007 = vpack.c.b16 %v3007, %v2982
    %v4008 = vpack.c.b16 %v3008, %v2983
    %v4009 = vpack.c.b16 %v3009, %v2984
    %v4010 = vpack.c.b16 %v3010, %v2985
    %v4011 = vpack.c.b16 %v3011, %v2986
    %v4012 = vpack.c.b16 %v3012, %v2987
    %v4013 = vpack.c.b16 %v3013, %v2988
    %v4014 = vpack.c.b16 %v3014, %v2989
    %v4015 = vpack.c.b16 %v3015, %v2990
    %v4016 = vpack.c.b16 %v3016, %v2991
    %v4017 = vpack.c.b16 %v3017, %v2992
    %v4018 = vpack.c.b16 %v3018, %v2993
    %v4019 = vpack.c.b16 %v3019, %v2994
    %v4020 = vpack.c.b16 %v3020, %v2995
    %v4021 = vpack.c.b16 %v3021, %v2996
    %v4022 = vpack.c.b16 %v3022, %v2997
    %v4023 = vpack.c.b16 %v3023, %v2998
    %v4024 = vpack.c.b16 %v3024, %v2999
    %v4025 = vpack.c.b16 %v3025, %v3000
    %v4026 = vpack.c.b16 %v3026, %v3001
    %v4027 = vpack.c.b16 %v3027, %v3002
    %v4028 = vpack.c.b16 %v3028, %v3003
    %v4029 = vpack.c.b16 %v3029, %v3004
    %v4030 = vpack.c.b16 %v3055, %v3030
    %v4031 = vpack.c.b16 %v3056, %v3031
    %v4032 = vpack.c.b16 %v3057, %v3032
    %v4033 = vpack.c.b16 %v3058, %v3033
    %v4034 = vpack.c.b16 %v3059, %v3034
    %v4035 = vpack.c.b16 %v3060, %v3035
    %v4036 = vpack.c.b16 %v3061, %v3036
    %v4037 = vpack.c.b16 %v3062, %v3037
    %v4038 = vpack.c.b16 %v3063, %v3038
    %v4039 = vpack.c.b16 %v3064, %v3039
    %v4040 = vpack.c.b16 %v3065, %v3040
    %v4041 = vpack.c.b16 %v3066, %v3041
    %v4042 = vpack.c.b16 %v3067, %v3042
    %v4043 = vpack.c.b16 %v3068, %v3043
    %v4044 = vpack.c.b16 %v3069, %v3044
    %v4045 = vpack.c.b16 %v3070, %v3045
    %v4046 = vpack.c.b16 %v3071, %v3046
    %v4047 = vpack.c.b16 %v3072, %v3047
    %v4048 = vpack.c.b16 %v3073, %v3048
    %v4049 = vpack.c.b16 %v3074, %v3049
    %v4050 = vpack.c.b16 %v3075, %v3050
    %v4051 = vpack.c.b16 %v3076, %v3051
    %v4052 = vpack.c.b16 %v3077, %v3052
    %v4053 = vpack.c.b16 %v3078, %v3053
    %v4054 = vpack.c.b16 %v3079, %v3054
    %v4055 = vpack.c.b16 %v3105, %v3080
    %v4056 = vpack.c.b16 %v3106, %v3081
    %v4057 = vpack.c.b16 %v3107, %v3082
    %v4058 = vpack.c.b16 %v3108, %v3083
    %v4059 = vpack.c.b16 %v3109, %v3084
    %v4060 = vpack.c.b16 %v3110, %v3085
    %v4061 = vpack.c.b16 %v3111, %v3086
    %v4062 = vpack.c.b16 %v3112, %v3087
    %v4063 = vpack.c.b16 %v3113, %v3088
    %v4064 = vpack.c.b16 %v3114, %v3089
    %v4065 = vpack.c.b16 %v3115, %v3090
    %v4066 = vpack.c.b16 %v3116, %v3091
    %v4067 = vpack.c.b16 %v3117, %v3092
    %v4068 = vpack.c.b16 %v3118, %v3093
    %v4069 = vpack.c.b16 %v3119, %v3094
    %v4070 = vpack.c.b16 %v3120, %v3095
    %v4071 = vpack.c.b16 %v3121, %v3096
    %v4072 = vpack.c.b16 %v3122, %v3097
    %v4073 = vpack.c.b16 %v3123, %v3098
    %v4074 = vpack.c.b16 %v3124, %v3099
    %v4075 = vpack.c.b16 %v3125, %v3100
    %v4076 = vpack.c.b16 %v3126, %v3101
    %v4077 = vpack.c.b16 %v3127, %v3102
    %v4078 = vpack.c.b16 %v3128, %v3103
    %v4079 = vpack.c.b16 %v3129, %v3104
    %v4080 = vpack.c.b16 %v3155, %v3130
    %v4081 = vpack.c.b16 %v3156, %v3131
    %v4082 = vpack.c.b16 %v3157, %v3132
    %v4083 = vpack.c.b16 %v3158, %v3133
    %v4084 = vpack.c.b16 %v3159, %v3134
    %v4085 = vpack.c.b16 %v3160, %v3135
    %v4086 = vpack.c.b16 %v3161, %v3136
    %v4087 = vpack.c.b16 %v3162, %v3137
    %v4088 = vpack.c.b16 %v3163, %v3138
    %v4089 = vpack.c.b16 %v3164, %v3139
    %v4090 = vpack.c.b16 %v3165, %v3140
    %v4091 = vpack.c.b16 %v3166, %v3141
    %v4092 = vpack.c.b16 %v3167, %v3142
    %v4093 = vpack.c.b16 %v3168, %v3143
    %v4094 = vpack.c.b16 %v3169, %v3144
    %v4095 = vpack.c.b16 %v3170, %v3145
    %v4096 = vpack.c.b16 %v3171, %v3146
    %v4097 = vpack.c.b16 %v3172, %v3147
    %v4098 = vpack.c.b16 %v3173, %v3148
    %v4099 = vpack.c.b16 %v3174, %v3149
    %v4100 = vpack.c.b16 %v3175, %v3150
    %v4101 = vpack.c.b16 %v3176, %v3151
    %v4102 = vpack.c.b16 %v3177, %v3152
    %v4103 = vpack.c.b16 %v3178, %v3153
    %v4104 = vpack.c.b16 %v3179, %v3154
    %v4105 = vpack.c.b16 %v3205, %v3180
    %v4106 = vpack.c.b16 %v3206, %v3181
    %v4107 = vpack.c.b16 %v3207, %v3182
    %v4108 = vpack.c.b16 %v3208, %v3183
    %v4109 = vpack.c.b16 %v3209, %v3184
    %v4110 = vpack.c.b16 %v3210, %v3185
    %v4111 = vpack.c.b16 %v3211, %v3186
    %v4112 = vpack.c.b16 %v3212, %v3187
    %v4113 = vpack.c.b16 %v3213, %v3188
    %v4114 = vpack.c.b16 %v3214, %v3189
    %v4115 = vpack.c.b16 %v3215, %v3190
    %v4116 = vpack.c.b16 %v3216, %v3191
    %v4117 = vpack.c.b16 %v3217, %v3192
    %v4118 = vpack.c.b16 %v3218, %v3193
    %v4119 = vpack.c.b16 %v3219, %v3194
    %v4120 = vpack.c.b16 %v3220, %v3195
    %v4121 = vpack.c.b16 %v3221, %v3196
    %v4122 = vpack.c.b16 %v3222, %v3197
    %v4123 = vpack.c.b16 %v3223, %v3198
    %v4124 = vpack.c.b16 %v3224, %v3199
    %v4125 = vpack.c.b16 %v3225, %v3200
    %v4126 = vpack.c.b16 %v3226, %v3201
    %v4127 = vpack.c.b16 %v3227, %v3202
    %v4128 = vpack.c.b16 %v3228, %v3203
    %v4129 = vpack.c.b16 %v3229, %v3204
    %v4130 = vpack.c.b16 %v3255, %v3230
    %v4131 = vpack.c.b16 %v3256, %v3231
    %v4132 = vpack.c.b16 %v3257, %v3232
    %v4133 = vpack.c.b16 %v3258, %v3233
    %v4134 = vpack.c.b16 %v3259, %v3234
    %v4135 = vpack.c.b16 %v3260, %v3235
    %v4136 = vpack.c.b16 %v3261, %v3236
    %v4137 = vpack.c.b16 %v3262, %v3237
    %v4138 = vpack.c.b16 %v3263, %v3238
    %v4139 = vpack.c.b16 %v3264, %v3239
    %v4140 = vpack.c.b16 %v3265, %v3240
    %v4141 = vpack.c.b16 %v3266, %v3241
    %v4142 = vpack.c.b16 %v3267, %v3242
    %v4143 = vpack.c.b16 %v3268, %v3243
    %v4144 = vpack.c.b16 %v3269, %v3244
    %v4145 = vpack.c.b16 %v3270, %v3245
    %v4146 = vpack.c.b16 %v3271, %v3246
    %v4147 = vpack.c.b16 %v3272, %v3247
    %v4148 = vpack.c.b16 %v3273, %v3248
    %v4149 = vpack.c.b16 %v3274, %v3249
    %v4150 = vpack.c.b16 %v3275, %v3250
    %v4151 = vpack.c.b16 %v3276, %v3251
    %v4152 = vpack.c.b16 %v3277, %v3252
    %v4153 = vpack.c.b16 %v3278, %v3253
    %v4154 = vpack.c.b16 %v3279, %v3254
    %v4155 = vpack.c.b16 %v3305, %v3280
    %v4156 = vpack.c.b16 %v3306, %v3281
    %v4157 = vpack.c.b16 %v3307, %v3282
    %v4158 = vpack.c.b16 %v3308, %v3283
    %v4159 = vpack.c.b16 %v3309, %v3284
    %v4160 = vpack.c.b16 %v3310, %v3285
    %v4161 = vpack.c.b16 %v3311, %v3286
    %v4162 = vpack.c.b16 %v3312, %v3287
    %v4163 = vpack.c.b16 %v3313, %v3288
    %v4164 = vpack.c.b16 %v3314, %v3289
    %v4165 = vpack.c.b16 %v3315, %v3290
    %v4166 = vpack.c.b16 %v3316, %v3291
    %v4167 = vpack.c.b16 %v3317, %v3292
    %v4168 = vpack.c.b16 %v3318, %v3293
    %v4169 = vpack.c.b16 %v3319, %v3294
    %v4170 = vpack.c.b16 %v3320, %v3295
    %v4171 = vpack.c.b16 %v3321, %v3296
    %v4172 = vpack.c.b16 %v3322, %v3297
    %v4173 = vpack.c.b16 %v3323, %v3298
    %v4174 = vpack.c.b16 %v3324, %v3299
    %v4175 = vpack.c.b16 %v3325, %v3300
    %v4176 = vpack.c.b16 %v3326, %v3301
    %v4177 = vpack.c.b16 %v3327, %v3302
    %v4178 = vpack.c.b16 %v3328, %v3303
    %v4179 = vpack.c.b16 %v3329, %v3304
    %v4180 = vpack.c.b16 %v3355, %v3330
    %v4181 = vpack.c.b16 %v3356, %v3331
    %v4182 = vpack.c.b16 %v3357, %v3332
    %v4183 = vpack.c.b16 %v3358, %v3333
    %v4184 = vpack.c.b16 %v3359, %v3334
    %v4185 = vpack.c.b16 %v3360, %v3335
    %v4186 = vpack.c.b16 %v3361, %v3336
    %v4187 = vpack.c.b16 %v3362, %v3337
    %v4188 = vpack.c.b16 %v3363, %v3338
    %v4189 = vpack.c.b16 %v3364, %v3339
    %v4190 = vpack.c.b16 %v3365, %v3340
    %v4191 = vpack.c.b16 %v3366, %v3341
    %v4192 = vpack.c.b16 %v3367, %v3342
    %v4193 = vpack.c.b16 %v3368, %v3343
    %v4194 = vpack.c.b16 %v3369, %v3344
    %v4195 = vpack.c.b16 %v3370, %v3345
    %v4196 = vpack.c.b16 %v3371, %v3346
    %v4197 = vpack.c.b16 %v3372, %v3347
    %v4198 = vpack.c.b16 %v3373, %v3348
    %v4199 = vpack.c.b16 %v3374, %v3349
    %v4200 = vpack.c.b16 %v3375, %v3350
    %v4201 = vpack.c.b16 %v3376, %v3351
    %v4202 = vpack.c.b16 %v3377, %v3352
    %v4203 = vpack.c.b16 %v3378, %v3353
    %v4204 = vpack.c.b16 %v3379, %v3354
    %v4205 = vpack.c.b16 %v3405, %v3380
    %v4206 = vpack.c.b16 %v3406, %v3381
    %v4207 = vpack.c.b16 %v3407, %v3382
    %v4208 = vpack.c.b16 %v3408, %v3383
    %v4209 = vpack.c.b16 %v3409, %v3384
    %v4210 = vpack.c.b16 %v3410, %v3385
    %v4211 = vpack.c.b16 %v3411, %v3386
    %v4212 = vpack.c.b16 %v3412, %v3387
    %v4213 = vpack.c.b16 %v3413, %v3388
    %v4214 = vpack.c.b16 %v3414, %v3389
    %v4215 = vpack.c.b16 %v3415, %v3390
    %v4216 = vpack.c.b16 %v3416, %v3391
    %v4217 = vpack.c.b16 %v3417, %v3392
    %v4218 = vpack.c.b16 %v3418, %v3393
    %v4219 = vpack.c.b16 %v3419, %v3394
    %v4220 = vpack.c.b16 %v3420, %v3395
    %v4221 = vpack.c.b16 %v3421, %v3396
    %v4222 = vpack.c.b16 %v3422, %v3397
    %v4223 = vpack.c.b16 %v3423, %v3398
    %v4224 = vpack.c.b16 %v3424, %v3399
    %v4225 = vpack.c.b16 %v3425, %v3400
    %v4226 = vpack.c.b16 %v3426, %v3401
    %v4227 = vpack.c.b16 %v3427, %v3402
    %v4228 = vpack.c.b16 %v3428, %v3403
    %v4229 = vpack.c.b16 %v3429, %v3404
    %5030 = vmatprep.subr.bf16.mxu0 %v3431
    %5031 = vmatpush1.bf16.msra.mxu0 %v3430
    %5032 = vmatprep.subr.bf16.mxu0 %v3456
    %5033 = vmatpush1.bf16.msra.mxu0 %v3455
    %5034 = vmatprep.subr.bf16.mxu0 %v3481
    %5035 = vmatpush1.bf16.msra.mxu0 %v3480
    %5036 = vmatprep.subr.bf16.mxu0 %v3506
    %5037 = vmatpush1.bf16.msra.mxu0 %v3505
    %5038 = vmatprep.subr.bf16.mxu0 %v3531
    %5039 = vmatpush1.bf16.msra.mxu0 %v3530
    %5040 = vmatprep.subr.bf16.mxu0 %v3556
    %5041 = vmatpush1.bf16.msra.mxu0 %v3555
    %5042 = vmatprep.subr.bf16.mxu0 %v3581
    %5043 = vmatpush1.bf16.msra.mxu0 %v3580
    %5044 = vmatprep.subr.bf16.mxu0 %v3606
    %5045 = vmatpush1.bf16.msra.mxu0 %v3605
    %5046 = vmatprep.subr.bf16.mxu0 %v3631
    %5047 = vmatpush1.bf16.msra.mxu0 %v3630
    %5048 = vmatprep.subr.bf16.mxu0 %v3656
    %5049 = vmatpush1.bf16.msra.mxu0 %v3655
    %5050 = vmatprep.subr.bf16.mxu0 %v3681
    %5051 = vmatpush1.bf16.msra.mxu0 %v3680
    %5052 = vmatprep.subr.bf16.mxu0 %v3706
    %5053 = vmatpush1.bf16.msra.mxu0 %v3705
    %5054 = vmatprep.subr.bf16.mxu0 %v3731
    %5055 = vmatpush1.bf16.msra.mxu0 %v3730
    %5056 = vmatprep.subr.bf16.mxu0 %v3756
    %5057 = vmatpush1.bf16.msra.mxu0 %v3755
    %5058 = vmatprep.subr.bf16.mxu0 %v3781
    %5059 = vmatpush1.bf16.msra.mxu0 %v3780
    %5060 = vmatprep.subr.bf16.mxu0 %v3806
    %5061 = vmatpush1.bf16.msra.mxu0 %v3805
    %5062 = vmatprep.mubr.bf16.mxu0 %v30
    %5063 = vmatmul.mubr.bf16.gmra.mrb[0].mxu0 %v29
    %v5064 = vpop.f32.mrb[0].mxu0
    %v5065 = vadd.f32 %v876, %v5064
    %v5066 = vpop.f32.mrb[0].mxu0
    %v5067 = vadd.f32 %v880, %v5066
    %v5068 = vpop.f32.mrb[0].mxu0
    %v5069 = vpop.f32.mrb[0].mxu0
    %5070 = vdwg.mxu0
    %5071 = vmatprep.subr.bf16.mxu0 %v3831
    %5072 = vmatpush1.bf16.msra.mxu0 %v3830
    %5073 = vmatprep.subr.bf16.mxu0 %v3856
    %5074 = vmatpush1.bf16.msra.mxu0 %v3855
    %5075 = vmatprep.subr.bf16.mxu0 %v3881
    %5076 = vmatpush1.bf16.msra.mxu0 %v3880
    %5077 = vmatprep.subr.bf16.mxu0 %v3906
    %5078 = vmatpush1.bf16.msra.mxu0 %v3905
    %5079 = vmatprep.subr.bf16.mxu0 %v3931
    %5080 = vmatpush1.bf16.msra.mxu0 %v3930
    %5081 = vmatprep.subr.bf16.mxu0 %v3956
    %5082 = vmatpush1.bf16.msra.mxu0 %v3955
    %5083 = vmatprep.subr.bf16.mxu0 %v3981
    %5084 = vmatpush1.bf16.msra.mxu0 %v3980
    %5085 = vmatprep.subr.bf16.mxu0 %v4006
    %5086 = vmatpush1.bf16.msra.mxu0 %v4005
    %5087 = vmatprep.subr.bf16.mxu0 %v4031
    %5088 = vmatpush1.bf16.msra.mxu0 %v4030
    %5089 = vmatprep.subr.bf16.mxu0 %v4056
    %5090 = vmatpush1.bf16.msra.mxu0 %v4055
    %5091 = vmatprep.subr.bf16.mxu0 %v4081
    %5092 = vmatpush1.bf16.msra.mxu0 %v4080
    %5093 = vmatprep.subr.bf16.mxu0 %v4106
    %5094 = vmatpush1.bf16.msra.mxu0 %v4105
    %5095 = vmatprep.subr.bf16.mxu0 %v4131
    %5096 = vmatpush1.bf16.msra.mxu0 %v4130
    %5097 = vmatprep.subr.bf16.mxu0 %v4156
    %5098 = vmatpush1.bf16.msra.mxu0 %v4155
    %5099 = vmatprep.subr.bf16.mxu0 %v4181
    %5100 = vmatpush1.bf16.msra.mxu0 %v4180
    %5101 = vmatprep.subr.bf16.mxu0 %v4206
    %5102 = vmatpush1.bf16.msra.mxu0 %v4205
    %5103 = vmatprep.mubr.bf16.mxu0 %v32
    %5104 = vmatmul.mubr.bf16.gmra.mrb[0].mxu0 %v31
    %v5105 = vpop.f32.mrb[0].mxu0
    %v5106 = vadd.f32 %v5065, %v5105
    %v5107 = vpop.f32.mrb[0].mxu0
    %v5108 = vadd.f32 %v5067, %v5107
    %v5109 = vpop.f32.mrb[0].mxu0
    %v5110 = vpop.f32.mrb[0].mxu0
    %5111 = vdwg.mxu0
    %5112 = vmatprep.subr.bf16.mxu0 %v3433
    %5113 = vmatpush1.bf16.msra.mxu0 %v3432
    %5114 = vmatprep.subr.bf16.mxu0 %v3458
    %5115 = vmatpush1.bf16.msra.mxu0 %v3457
    %5116 = vmatprep.subr.bf16.mxu0 %v3483
    %5117 = vmatpush1.bf16.msra.mxu0 %v3482
    %5118 = vmatprep.subr.bf16.mxu0 %v3508
    %5119 = vmatpush1.bf16.msra.mxu0 %v3507
    %5120 = vmatprep.subr.bf16.mxu0 %v3533
    %5121 = vmatpush1.bf16.msra.mxu0 %v3532
    %5122 = vmatprep.subr.bf16.mxu0 %v3558
    %5123 = vmatpush1.bf16.msra.mxu0 %v3557
    %5124 = vmatprep.subr.bf16.mxu0 %v3583
    %5125 = vmatpush1.bf16.msra.mxu0 %v3582
    %5126 = vmatprep.subr.bf16.mxu0 %v3608
    %5127 = vmatpush1.bf16.msra.mxu0 %v3607
    %5128 = vmatprep.subr.bf16.mxu0 %v3633
    %5129 = vmatpush1.bf16.msra.mxu0 %v3632
    %5130 = vmatprep.subr.bf16.mxu0 %v3658
    %5131 = vmatpush1.bf16.msra.mxu0 %v3657
    %5132 = vmatprep.subr.bf16.mxu0 %v3683
    %5133 = vmatpush1.bf16.msra.mxu0 %v3682
    %5134 = vmatprep.subr.bf16.mxu0 %v3708
    %5135 = vmatpush1.bf16.msra.mxu0 %v3707
    %5136 = vmatprep.subr.bf16.mxu0 %v3733
    %5137 = vmatpush1.bf16.msra.mxu0 %v3732
    %5138 = vmatprep.subr.bf16.mxu0 %v3758
    %5139 = vmatpush1.bf16.msra.mxu0 %v3757
    %5140 = vmatprep.subr.bf16.mxu0 %v3783
    %5141 = vmatpush1.bf16.msra.mxu0 %v3782
    %5142 = vmatprep.subr.bf16.mxu0 %v3808
    %5143 = vmatpush1.bf16.msra.mxu0 %v3807
    %5144 = vmatprep.mubr.bf16.mxu0 %v30
    %5145 = vmatmul.mubr.bf16.gmra.mrb[0].mxu0 %v29
    %v5146 = vpop.f32.mrb[0].mxu0
    %v5147 = vadd.f32 %v884, %v5146
    %v5148 = vpop.f32.mrb[0].mxu0
    %v5149 = vadd.f32 %v888, %v5148
    %v5150 = vpop.f32.mrb[0].mxu0
    %v5151 = vpop.f32.mrb[0].mxu0
    %5152 = vdwg.mxu0
    %5153 = vmatprep.subr.bf16.mxu0 %v3833
    %5154 = vmatpush1.bf16.msra.mxu0 %v3832
    %5155 = vmatprep.subr.bf16.mxu0 %v3858
    %5156 = vmatpush1.bf16.msra.mxu0 %v3857
    %5157 = vmatprep.subr.bf16.mxu0 %v3883
    %5158 = vmatpush1.bf16.msra.mxu0 %v3882
    %5159 = vmatprep.subr.bf16.mxu0 %v3908
    %5160 = vmatpush1.bf16.msra.mxu0 %v3907
    %5161 = vmatprep.subr.bf16.mxu0 %v3933
    %5162 = vmatpush1.bf16.msra.mxu0 %v3932
    %5163 = vmatprep.subr.bf16.mxu0 %v3958
    %5164 = vmatpush1.bf16.msra.mxu0 %v3957
    %5165 = vmatprep.subr.bf16.mxu0 %v3983
    %5166 = vmatpush1.bf16.msra.mxu0 %v3982
    %5167 = vmatprep.subr.bf16.mxu0 %v4008
    %5168 = vmatpush1.bf16.msra.mxu0 %v4007
    %5169 = vmatprep.subr.bf16.mxu0 %v4033
    %5170 = vmatpush1.bf16.msra.mxu0 %v4032
    %5171 = vmatprep.subr.bf16.mxu0 %v4058
    %5172 = vmatpush1.bf16.msra.mxu0 %v4057
    %5173 = vmatprep.subr.bf16.mxu0 %v4083
    %5174 = vmatpush1.bf16.msra.mxu0 %v4082
    %5175 = vmatprep.subr.bf16.mxu0 %v4108
    %5176 = vmatpush1.bf16.msra.mxu0 %v4107
    %5177 = vmatprep.subr.bf16.mxu0 %v4133
    %5178 = vmatpush1.bf16.msra.mxu0 %v4132
    %5179 = vmatprep.subr.bf16.mxu0 %v4158
    %5180 = vmatpush1.bf16.msra.mxu0 %v4157
    %5181 = vmatprep.subr.bf16.mxu0 %v4183
    %5182 = vmatpush1.bf16.msra.mxu0 %v4182
    %5183 = vmatprep.subr.bf16.mxu0 %v4208
    %5184 = vmatpush1.bf16.msra.mxu0 %v4207
    %5185 = vmatprep.mubr.bf16.mxu0 %v32
    %5186 = vmatmul.mubr.bf16.gmra.mrb[0].mxu0 %v31
    %v5187 = vpop.f32.mrb[0].mxu0
    %v5188 = vadd.f32 %v5147, %v5187
    %v5189 = vpop.f32.mrb[0].mxu0
    %v5190 = vadd.f32 %v5149, %v5189
    %v5191 = vpop.f32.mrb[0].mxu0
    %v5192 = vpop.f32.mrb[0].mxu0
    %5193 = vdwg.mxu0
    %5194 = vmatprep.subr.bf16.mxu0 %v3435
    %5195 = vmatpush1.bf16.msra.mxu0 %v3434
    %5196 = vmatprep.subr.bf16.mxu0 %v3460
    %5197 = vmatpush1.bf16.msra.mxu0 %v3459
    %5198 = vmatprep.subr.bf16.mxu0 %v3485
    %5199 = vmatpush1.bf16.msra.mxu0 %v3484
    %5200 = vmatprep.subr.bf16.mxu0 %v3510
    %5201 = vmatpush1.bf16.msra.mxu0 %v3509
    %5202 = vmatprep.subr.bf16.mxu0 %v3535
    %5203 = vmatpush1.bf16.msra.mxu0 %v3534
    %5204 = vmatprep.subr.bf16.mxu0 %v3560
    %5205 = vmatpush1.bf16.msra.mxu0 %v3559
    %5206 = vmatprep.subr.bf16.mxu0 %v3585
    %5207 = vmatpush1.bf16.msra.mxu0 %v3584
    %5208 = vmatprep.subr.bf16.mxu0 %v3610
    %5209 = vmatpush1.bf16.msra.mxu0 %v3609
    %5210 = vmatprep.subr.bf16.mxu0 %v3635
    %5211 = vmatpush1.bf16.msra.mxu0 %v3634
    %5212 = vmatprep.subr.bf16.mxu0 %v3660
    %5213 = vmatpush1.bf16.msra.mxu0 %v3659
    %5214 = vmatprep.subr.bf16.mxu0 %v3685
    %5215 = vmatpush1.bf16.msra.mxu0 %v3684
    %5216 = vmatprep.subr.bf16.mxu0 %v3710
    %5217 = vmatpush1.bf16.msra.mxu0 %v3709
    %5218 = vmatprep.subr.bf16.mxu0 %v3735
    %5219 = vmatpush1.bf16.msra.mxu0 %v3734
    %5220 = vmatprep.subr.bf16.mxu0 %v3760
    %5221 = vmatpush1.bf16.msra.mxu0 %v3759
    %5222 = vmatprep.subr.bf16.mxu0 %v3785
    %5223 = vmatpush1.bf16.msra.mxu0 %v3784
    %5224 = vmatprep.subr.bf16.mxu0 %v3810
    %5225 = vmatpush1.bf16.msra.mxu0 %v3809
    %5226 = vmatprep.mubr.bf16.mxu0 %v30
    %5227 = vmatmul.mubr.bf16.gmra.mrb[0].mxu0 %v29
    %v5228 = vpop.f32.mrb[0].mxu0
    %v5229 = vadd.f32 %v892, %v5228
    %v5230 = vpop.f32.mrb[0].mxu0
    %v5231 = vadd.f32 %v896, %v5230
    %v5232 = vpop.f32.mrb[0].mxu0
    %v5233 = vpop.f32.mrb[0].mxu0
    %5234 = vdwg.mxu0
    %5235 = vmatprep.subr.bf16.mxu0 %v3835
    %5236 = vmatpush1.bf16.msra.mxu0 %v3834
    %5237 = vmatprep.subr.bf16.mxu0 %v3860
    %5238 = vmatpush1.bf16.msra.mxu0 %v3859
    %5239 = vmatprep.subr.bf16.mxu0 %v3885
    %5240 = vmatpush1.bf16.msra.mxu0 %v3884
    %5241 = vmatprep.subr.bf16.mxu0 %v3910
    %5242 = vmatpush1.bf16.msra.mxu0 %v3909
    %5243 = vmatprep.subr.bf16.mxu0 %v3935
    %5244 = vmatpush1.bf16.msra.mxu0 %v3934
    %5245 = vmatprep.subr.bf16.mxu0 %v3960
    %5246 = vmatpush1.bf16.msra.mxu0 %v3959
    %5247 = vmatprep.subr.bf16.mxu0 %v3985
    %5248 = vmatpush1.bf16.msra.mxu0 %v3984
    %5249 = vmatprep.subr.bf16.mxu0 %v4010
    %5250 = vmatpush1.bf16.msra.mxu0 %v4009
    %5251 = vmatprep.subr.bf16.mxu0 %v4035
    %5252 = vmatpush1.bf16.msra.mxu0 %v4034
    %5253 = vmatprep.subr.bf16.mxu0 %v4060
    %5254 = vmatpush1.bf16.msra.mxu0 %v4059
    %5255 = vmatprep.subr.bf16.mxu0 %v4085
    %5256 = vmatpush1.bf16.msra.mxu0 %v4084
    %5257 = vmatprep.subr.bf16.mxu0 %v4110
    %5258 = vmatpush1.bf16.msra.mxu0 %v4109
    %5259 = vmatprep.subr.bf16.mxu0 %v4135
    %5260 = vmatpush1.bf16.msra.mxu0 %v4134
    %5261 = vmatprep.subr.bf16.mxu0 %v4160
    %5262 = vmatpush1.bf16.msra.mxu0 %v4159
    %5263 = vmatprep.subr.bf16.mxu0 %v4185
    %5264 = vmatpush1.bf16.msra.mxu0 %v4184
    %5265 = vmatprep.subr.bf16.mxu0 %v4210
    %5266 = vmatpush1.bf16.msra.mxu0 %v4209
    %5267 = vmatprep.mubr.bf16.mxu0 %v32
    %5268 = vmatmul.mubr.bf16.gmra.mrb[0].mxu0 %v31
    %v5269 = vpop.f32.mrb[0].mxu0
    %v5270 = vadd.f32 %v5229, %v5269
    %v5271 = vpop.f32.mrb[0].mxu0
    %v5272 = vadd.f32 %v5231, %v5271
    %v5273 = vpop.f32.mrb[0].mxu0
    %v5274 = vpop.f32.mrb[0].mxu0
    %5275 = vdwg.mxu0
    %5276 = vmatprep.subr.bf16.mxu0 %v3437
    %5277 = vmatpush1.bf16.msra.mxu0 %v3436
    %5278 = vmatprep.subr.bf16.mxu0 %v3462
    %5279 = vmatpush1.bf16.msra.mxu0 %v3461
    %5280 = vmatprep.subr.bf16.mxu0 %v3487
    %5281 = vmatpush1.bf16.msra.mxu0 %v3486
    %5282 = vmatprep.subr.bf16.mxu0 %v3512
    %5283 = vmatpush1.bf16.msra.mxu0 %v3511
    %5284 = vmatprep.subr.bf16.mxu0 %v3537
    %5285 = vmatpush1.bf16.msra.mxu0 %v3536
    %5286 = vmatprep.subr.bf16.mxu0 %v3562
    %5287 = vmatpush1.bf16.msra.mxu0 %v3561
    %5288 = vmatprep.subr.bf16.mxu0 %v3587
    %5289 = vmatpush1.bf16.msra.mxu0 %v3586
    %5290 = vmatprep.subr.bf16.mxu0 %v3612
    %5291 = vmatpush1.bf16.msra.mxu0 %v3611
    %5292 = vmatprep.subr.bf16.mxu0 %v3637
    %5293 = vmatpush1.bf16.msra.mxu0 %v3636
    %5294 = vmatprep.subr.bf16.mxu0 %v3662
    %5295 = vmatpush1.bf16.msra.mxu0 %v3661
    %5296 = vmatprep.subr.bf16.mxu0 %v3687
    %5297 = vmatpush1.bf16.msra.mxu0 %v3686
    %5298 = vmatprep.subr.bf16.mxu0 %v3712
    %5299 = vmatpush1.bf16.msra.mxu0 %v3711
    %5300 = vmatprep.subr.bf16.mxu0 %v3737
    %5301 = vmatpush1.bf16.msra.mxu0 %v3736
    %5302 = vmatprep.subr.bf16.mxu0 %v3762
    %5303 = vmatpush1.bf16.msra.mxu0 %v3761
    %5304 = vmatprep.subr.bf16.mxu0 %v3787
    %5305 = vmatpush1.bf16.msra.mxu0 %v3786
    %5306 = vmatprep.subr.bf16.mxu0 %v3812
    %5307 = vmatpush1.bf16.msra.mxu0 %v3811
    %5308 = vmatprep.mubr.bf16.mxu0 %v30
    %5309 = vmatmul.mubr.bf16.gmra.mrb[0].mxu0 %v29
    %v5310 = vpop.f32.mrb[0].mxu0
    %v5311 = vadd.f32 %v900, %v5310
    %v5312 = vpop.f32.mrb[0].mxu0
    %v5313 = vadd.f32 %v904, %v5312
    %v5314 = vpop.f32.mrb[0].mxu0
    %v5315 = vpop.f32.mrb[0].mxu0
    %5316 = vdwg.mxu0
    %5317 = vmatprep.subr.bf16.mxu0 %v3837
    %5318 = vmatpush1.bf16.msra.mxu0 %v3836
    %5319 = vmatprep.subr.bf16.mxu0 %v3862
    %5320 = vmatpush1.bf16.msra.mxu0 %v3861
    %5321 = vmatprep.subr.bf16.mxu0 %v3887
    %5322 = vmatpush1.bf16.msra.mxu0 %v3886
    %5323 = vmatprep.subr.bf16.mxu0 %v3912
    %5324 = vmatpush1.bf16.msra.mxu0 %v3911
    %5325 = vmatprep.subr.bf16.mxu0 %v3937
    %5326 = vmatpush1.bf16.msra.mxu0 %v3936
    %5327 = vmatprep.subr.bf16.mxu0 %v3962
    %5328 = vmatpush1.bf16.msra.mxu0 %v3961
    %5329 = vmatprep.subr.bf16.mxu0 %v3987
    %5330 = vmatpush1.bf16.msra.mxu0 %v3986
    %5331 = vmatprep.subr.bf16.mxu0 %v4012
    %5332 = vmatpush1.bf16.msra.mxu0 %v4011
    %5333 = vmatprep.subr.bf16.mxu0 %v4037
    %5334 = vmatpush1.bf16.msra.mxu0 %v4036
    %5335 = vmatprep.subr.bf16.mxu0 %v4062
    %5336 = vmatpush1.bf16.msra.mxu0 %v4061
    %5337 = vmatprep.subr.bf16.mxu0 %v4087
    %5338 = vmatpush1.bf16.msra.mxu0 %v4086
    %5339 = vmatprep.subr.bf16.mxu0 %v4112
    %5340 = vmatpush1.bf16.msra.mxu0 %v4111
    %5341 = vmatprep.subr.bf16.mxu0 %v4137
    %5342 = vmatpush1.bf16.msra.mxu0 %v4136
    %5343 = vmatprep.subr.bf16.mxu0 %v4162
    %5344 = vmatpush1.bf16.msra.mxu0 %v4161
    %5345 = vmatprep.subr.bf16.mxu0 %v4187
    %5346 = vmatpush1.bf16.msra.mxu0 %v4186
    %5347 = vmatprep.subr.bf16.mxu0 %v4212
    %5348 = vmatpush1.bf16.msra.mxu0 %v4211
    %5349 = vmatprep.mubr.bf16.mxu0 %v32
    %5350 = vmatmul.mubr.bf16.gmra.mrb[0].mxu0 %v31
    %v5351 = vpop.f32.mrb[0].mxu0
    %v5352 = vadd.f32 %v5311, %v5351
    %v5353 = vpop.f32.mrb[0].mxu0
    %v5354 = vadd.f32 %v5313, %v5353
    %v5355 = vpop.f32.mrb[0].mxu0
    %v5356 = vpop.f32.mrb[0].mxu0
    %5357 = vdwg.mxu0
    %5358 = vmatprep.subr.bf16.mxu0 %v3439
    %5359 = vmatpush1.bf16.msra.mxu0 %v3438
    %5360 = vmatprep.subr.bf16.mxu0 %v3464
    %5361 = vmatpush1.bf16.msra.mxu0 %v3463
    %5362 = vmatprep.subr.bf16.mxu0 %v3489
    %5363 = vmatpush1.bf16.msra.mxu0 %v3488
    %5364 = vmatprep.subr.bf16.mxu0 %v3514
    %5365 = vmatpush1.bf16.msra.mxu0 %v3513
    %5366 = vmatprep.subr.bf16.mxu0 %v3539
    %5367 = vmatpush1.bf16.msra.mxu0 %v3538
    %5368 = vmatprep.subr.bf16.mxu0 %v3564
    %5369 = vmatpush1.bf16.msra.mxu0 %v3563
    %5370 = vmatprep.subr.bf16.mxu0 %v3589
    %5371 = vmatpush1.bf16.msra.mxu0 %v3588
    %5372 = vmatprep.subr.bf16.mxu0 %v3614
    %5373 = vmatpush1.bf16.msra.mxu0 %v3613
    %5374 = vmatprep.subr.bf16.mxu0 %v3639
    %5375 = vmatpush1.bf16.msra.mxu0 %v3638
    %5376 = vmatprep.subr.bf16.mxu0 %v3664
    %5377 = vmatpush1.bf16.msra.mxu0 %v3663
    %5378 = vmatprep.subr.bf16.mxu0 %v3689
    %5379 = vmatpush1.bf16.msra.mxu0 %v3688
    %5380 = vmatprep.subr.bf16.mxu0 %v3714
    %5381 = vmatpush1.bf16.msra.mxu0 %v3713
    %5382 = vmatprep.subr.bf16.mxu0 %v3739
    %5383 = vmatpush1.bf16.msra.mxu0 %v3738
    %5384 = vmatprep.subr.bf16.mxu0 %v3764
    %5385 = vmatpush1.bf16.msra.mxu0 %v3763
    %5386 = vmatprep.subr.bf16.mxu0 %v3789
    %5387 = vmatpush1.bf16.msra.mxu0 %v3788
    %5388 = vmatprep.subr.bf16.mxu0 %v3814
    %5389 = vmatpush1.bf16.msra.mxu0 %v3813
    %5390 = vmatprep.mubr.bf16.mxu0 %v30
    %5391 = vmatmul.mubr.bf16.gmra.mrb[0].mxu0 %v29
    %v5392 = vpop.f32.mrb[0].mxu0
    %v5393 = vadd.f32 %v908, %v5392
    %v5394 = vpop.f32.mrb[0].mxu0
    %v5395 = vadd.f32 %v912, %v5394
    %v5396 = vpop.f32.mrb[0].mxu0
    %v5397 = vpop.f32.mrb[0].mxu0
    %5398 = vdwg.mxu0
    %5399 = vmatprep.subr.bf16.mxu0 %v3839
    %5400 = vmatpush1.bf16.msra.mxu0 %v3838
    %5401 = vmatprep.subr.bf16.mxu0 %v3864
    %5402 = vmatpush1.bf16.msra.mxu0 %v3863
    %5403 = vmatprep.subr.bf16.mxu0 %v3889
    %5404 = vmatpush1.bf16.msra.mxu0 %v3888
    %5405 = vmatprep.subr.bf16.mxu0 %v3914
    %5406 = vmatpush1.bf16.msra.mxu0 %v3913
    %5407 = vmatprep.subr.bf16.mxu0 %v3939
    %5408 = vmatpush1.bf16.msra.mxu0 %v3938
    %5409 = vmatprep.subr.bf16.mxu0 %v3964
    %5410 = vmatpush1.bf16.msra.mxu0 %v3963
    %5411 = vmatprep.subr.bf16.mxu0 %v3989
    %5412 = vmatpush1.bf16.msra.mxu0 %v3988
    %5413 = vmatprep.subr.bf16.mxu0 %v4014
    %5414 = vmatpush1.bf16.msra.mxu0 %v4013
    %5415 = vmatprep.subr.bf16.mxu0 %v4039
    %5416 = vmatpush1.bf16.msra.mxu0 %v4038
    %5417 = vmatprep.subr.bf16.mxu0 %v4064
    %5418 = vmatpush1.bf16.msra.mxu0 %v4063
    %5419 = vmatprep.subr.bf16.mxu0 %v4089
    %5420 = vmatpush1.bf16.msra.mxu0 %v4088
    %5421 = vmatprep.subr.bf16.mxu0 %v4114
    %5422 = vmatpush1.bf16.msra.mxu0 %v4113
    %5423 = vmatprep.subr.bf16.mxu0 %v4139
    %5424 = vmatpush1.bf16.msra.mxu0 %v4138
    %5425 = vmatprep.subr.bf16.mxu0 %v4164
    %5426 = vmatpush1.bf16.msra.mxu0 %v4163
    %5427 = vmatprep.subr.bf16.mxu0 %v4189
    %5428 = vmatpush1.bf16.msra.mxu0 %v4188
    %5429 = vmatprep.subr.bf16.mxu0 %v4214
    %5430 = vmatpush1.bf16.msra.mxu0 %v4213
    %5431 = vmatprep.mubr.bf16.mxu0 %v32
    %5432 = vmatmul.mubr.bf16.gmra.mrb[0].mxu0 %v31
    %v5433 = vpop.f32.mrb[0].mxu0
    %v5434 = vadd.f32 %v5393, %v5433
    %v5435 = vpop.f32.mrb[0].mxu0
    %v5436 = vadd.f32 %v5395, %v5435
    %v5437 = vpop.f32.mrb[0].mxu0
    %v5438 = vpop.f32.mrb[0].mxu0
    %5439 = vdwg.mxu0
    %5440 = vmatprep.subr.bf16.mxu0 %v3441
    %5441 = vmatpush1.bf16.msra.mxu0 %v3440
    %5442 = vmatprep.subr.bf16.mxu0 %v3466
    %5443 = vmatpush1.bf16.msra.mxu0 %v3465
    %5444 = vmatprep.subr.bf16.mxu0 %v3491
    %5445 = vmatpush1.bf16.msra.mxu0 %v3490
    %5446 = vmatprep.subr.bf16.mxu0 %v3516
    %5447 = vmatpush1.bf16.msra.mxu0 %v3515
    %5448 = vmatprep.subr.bf16.mxu0 %v3541
    %5449 = vmatpush1.bf16.msra.mxu0 %v3540
    %5450 = vmatprep.subr.bf16.mxu0 %v3566
    %5451 = vmatpush1.bf16.msra.mxu0 %v3565
    %5452 = vmatprep.subr.bf16.mxu0 %v3591
    %5453 = vmatpush1.bf16.msra.mxu0 %v3590
    %5454 = vmatprep.subr.bf16.mxu0 %v3616
    %5455 = vmatpush1.bf16.msra.mxu0 %v3615
    %5456 = vmatprep.subr.bf16.mxu0 %v3641
    %5457 = vmatpush1.bf16.msra.mxu0 %v3640
    %5458 = vmatprep.subr.bf16.mxu0 %v3666
    %5459 = vmatpush1.bf16.msra.mxu0 %v3665
    %5460 = vmatprep.subr.bf16.mxu0 %v3691
    %5461 = vmatpush1.bf16.msra.mxu0 %v3690
    %5462 = vmatprep.subr.bf16.mxu0 %v3716
    %5463 = vmatpush1.bf16.msra.mxu0 %v3715
    %5464 = vmatprep.subr.bf16.mxu0 %v3741
    %5465 = vmatpush1.bf16.msra.mxu0 %v3740
    %5466 = vmatprep.subr.bf16.mxu0 %v3766
    %5467 = vmatpush1.bf16.msra.mxu0 %v3765
    %5468 = vmatprep.subr.bf16.mxu0 %v3791
    %5469 = vmatpush1.bf16.msra.mxu0 %v3790
    %5470 = vmatprep.subr.bf16.mxu0 %v3816
    %5471 = vmatpush1.bf16.msra.mxu0 %v3815
    %5472 = vmatprep.mubr.bf16.mxu0 %v30
    %5473 = vmatmul.mubr.bf16.gmra.mrb[0].mxu0 %v29
    %v5474 = vpop.f32.mrb[0].mxu0
    %v5475 = vadd.f32 %v916, %v5474
    %v5476 = vpop.f32.mrb[0].mxu0
    %v5477 = vadd.f32 %v920, %v5476
    %v5478 = vpop.f32.mrb[0].mxu0
    %v5479 = vpop.f32.mrb[0].mxu0
    %5480 = vdwg.mxu0
    %5481 = vmatprep.subr.bf16.mxu0 %v3841
    %5482 = vmatpush1.bf16.msra.mxu0 %v3840
    %5483 = vmatprep.subr.bf16.mxu0 %v3866
    %5484 = vmatpush1.bf16.msra.mxu0 %v3865
    %5485 = vmatprep.subr.bf16.mxu0 %v3891
    %5486 = vmatpush1.bf16.msra.mxu0 %v3890
    %5487 = vmatprep.subr.bf16.mxu0 %v3916
    %5488 = vmatpush1.bf16.msra.mxu0 %v3915
    %5489 = vmatprep.subr.bf16.mxu0 %v3941
    %5490 = vmatpush1.bf16.msra.mxu0 %v3940
    %5491 = vmatprep.subr.bf16.mxu0 %v3966
    %5492 = vmatpush1.bf16.msra.mxu0 %v3965
    %5493 = vmatprep.subr.bf16.mxu0 %v3991
    %5494 = vmatpush1.bf16.msra.mxu0 %v3990
    %5495 = vmatprep.subr.bf16.mxu0 %v4016
    %5496 = vmatpush1.bf16.msra.mxu0 %v4015
    %5497 = vmatprep.subr.bf16.mxu0 %v4041
    %5498 = vmatpush1.bf16.msra.mxu0 %v4040
    %5499 = vmatprep.subr.bf16.mxu0 %v4066
    %5500 = vmatpush1.bf16.msra.mxu0 %v4065
    %5501 = vmatprep.subr.bf16.mxu0 %v4091
    %5502 = vmatpush1.bf16.msra.mxu0 %v4090
    %5503 = vmatprep.subr.bf16.mxu0 %v4116
    %5504 = vmatpush1.bf16.msra.mxu0 %v4115
    %5505 = vmatprep.subr.bf16.mxu0 %v4141
    %5506 = vmatpush1.bf16.msra.mxu0 %v4140
    %5507 = vmatprep.subr.bf16.mxu0 %v4166
    %5508 = vmatpush1.bf16.msra.mxu0 %v4165
    %5509 = vmatprep.subr.bf16.mxu0 %v4191
    %5510 = vmatpush1.bf16.msra.mxu0 %v4190
    %5511 = vmatprep.subr.bf16.mxu0 %v4216
    %5512 = vmatpush1.bf16.msra.mxu0 %v4215
    %5513 = vmatprep.mubr.bf16.mxu0 %v32
    %5514 = vmatmul.mubr.bf16.gmra.mrb[0].mxu0 %v31
    %v5515 = vpop.f32.mrb[0].mxu0
    %v5516 = vadd.f32 %v5475, %v5515
    %v5517 = vpop.f32.mrb[0].mxu0
    %v5518 = vadd.f32 %v5477, %v5517
    %v5519 = vpop.f32.mrb[0].mxu0
    %v5520 = vpop.f32.mrb[0].mxu0
    %5521 = vdwg.mxu0
    %5522 = vmatprep.subr.bf16.mxu0 %v3443
    %5523 = vmatpush1.bf16.msra.mxu0 %v3442
    %5524 = vmatprep.subr.bf16.mxu0 %v3468
    %5525 = vmatpush1.bf16.msra.mxu0 %v3467
    %5526 = vmatprep.subr.bf16.mxu0 %v3493
    %5527 = vmatpush1.bf16.msra.mxu0 %v3492
    %5528 = vmatprep.subr.bf16.mxu0 %v3518
    %5529 = vmatpush1.bf16.msra.mxu0 %v3517
    %5530 = vmatprep.subr.bf16.mxu0 %v3543
    %5531 = vmatpush1.bf16.msra.mxu0 %v3542
    %5532 = vmatprep.subr.bf16.mxu0 %v3568
    %5533 = vmatpush1.bf16.msra.mxu0 %v3567
    %5534 = vmatprep.subr.bf16.mxu0 %v3593
    %5535 = vmatpush1.bf16.msra.mxu0 %v3592
    %5536 = vmatprep.subr.bf16.mxu0 %v3618
    %5537 = vmatpush1.bf16.msra.mxu0 %v3617
    %5538 = vmatprep.subr.bf16.mxu0 %v3643
    %5539 = vmatpush1.bf16.msra.mxu0 %v3642
    %5540 = vmatprep.subr.bf16.mxu0 %v3668
    %5541 = vmatpush1.bf16.msra.mxu0 %v3667
    %5542 = vmatprep.subr.bf16.mxu0 %v3693
    %5543 = vmatpush1.bf16.msra.mxu0 %v3692
    %5544 = vmatprep.subr.bf16.mxu0 %v3718
    %5545 = vmatpush1.bf16.msra.mxu0 %v3717
    %5546 = vmatprep.subr.bf16.mxu0 %v3743
    %5547 = vmatpush1.bf16.msra.mxu0 %v3742
    %5548 = vmatprep.subr.bf16.mxu0 %v3768
    %5549 = vmatpush1.bf16.msra.mxu0 %v3767
    %5550 = vmatprep.subr.bf16.mxu0 %v3793
    %5551 = vmatpush1.bf16.msra.mxu0 %v3792
    %5552 = vmatprep.subr.bf16.mxu0 %v3818
    %5553 = vmatpush1.bf16.msra.mxu0 %v3817
    %5554 = vmatprep.mubr.bf16.mxu0 %v30
    %5555 = vmatmul.mubr.bf16.gmra.mrb[0].mxu0 %v29
    %v5556 = vpop.f32.mrb[0].mxu0
    %v5557 = vadd.f32 %v924, %v5556
    %v5558 = vpop.f32.mrb[0].mxu0
    %v5559 = vadd.f32 %v928, %v5558
    %v5560 = vpop.f32.mrb[0].mxu0
    %v5561 = vpop.f32.mrb[0].mxu0
    %5562 = vdwg.mxu0
    %5563 = vmatprep.subr.bf16.mxu0 %v3843
    %5564 = vmatpush1.bf16.msra.mxu0 %v3842
    %5565 = vmatprep.subr.bf16.mxu0 %v3868
    %5566 = vmatpush1.bf16.msra.mxu0 %v3867
    %5567 = vmatprep.subr.bf16.mxu0 %v3893
    %5568 = vmatpush1.bf16.msra.mxu0 %v3892
    %5569 = vmatprep.subr.bf16.mxu0 %v3918
    %5570 = vmatpush1.bf16.msra.mxu0 %v3917
    %5571 = vmatprep.subr.bf16.mxu0 %v3943
    %5572 = vmatpush1.bf16.msra.mxu0 %v3942
    %5573 = vmatprep.subr.bf16.mxu0 %v3968
    %5574 = vmatpush1.bf16.msra.mxu0 %v3967
    %5575 = vmatprep.subr.bf16.mxu0 %v3993
    %5576 = vmatpush1.bf16.msra.mxu0 %v3992
    %5577 = vmatprep.subr.bf16.mxu0 %v4018
    %5578 = vmatpush1.bf16.msra.mxu0 %v4017
    %5579 = vmatprep.subr.bf16.mxu0 %v4043
    %5580 = vmatpush1.bf16.msra.mxu0 %v4042
    %5581 = vmatprep.subr.bf16.mxu0 %v4068
    %5582 = vmatpush1.bf16.msra.mxu0 %v4067
    %5583 = vmatprep.subr.bf16.mxu0 %v4093
    %5584 = vmatpush1.bf16.msra.mxu0 %v4092
    %5585 = vmatprep.subr.bf16.mxu0 %v4118
    %5586 = vmatpush1.bf16.msra.mxu0 %v4117
    %5587 = vmatprep.subr.bf16.mxu0 %v4143
    %5588 = vmatpush1.bf16.msra.mxu0 %v4142
    %5589 = vmatprep.subr.bf16.mxu0 %v4168
    %5590 = vmatpush1.bf16.msra.mxu0 %v4167
    %5591 = vmatprep.subr.bf16.mxu0 %v4193
    %5592 = vmatpush1.bf16.msra.mxu0 %v4192
    %5593 = vmatprep.subr.bf16.mxu0 %v4218
    %5594 = vmatpush1.bf16.msra.mxu0 %v4217
    %5595 = vmatprep.mubr.bf16.mxu0 %v32
    %5596 = vmatmul.mubr.bf16.gmra.mrb[0].mxu0 %v31
    %v5597 = vpop.f32.mrb[0].mxu0
    %v5598 = vadd.f32 %v5557, %v5597
    %v5599 = vpop.f32.mrb[0].mxu0
    %v5600 = vadd.f32 %v5559, %v5599
    %v5601 = vpop.f32.mrb[0].mxu0
    %v5602 = vpop.f32.mrb[0].mxu0
    %5603 = vdwg.mxu0
    %5604 = vmatprep.subr.bf16.mxu0 %v3445
    %5605 = vmatpush1.bf16.msra.mxu0 %v3444
    %5606 = vmatprep.subr.bf16.mxu0 %v3470
    %5607 = vmatpush1.bf16.msra.mxu0 %v3469
    %5608 = vmatprep.subr.bf16.mxu0 %v3495
    %5609 = vmatpush1.bf16.msra.mxu0 %v3494
    %5610 = vmatprep.subr.bf16.mxu0 %v3520
    %5611 = vmatpush1.bf16.msra.mxu0 %v3519
    %5612 = vmatprep.subr.bf16.mxu0 %v3545
    %5613 = vmatpush1.bf16.msra.mxu0 %v3544
    %5614 = vmatprep.subr.bf16.mxu0 %v3570
    %5615 = vmatpush1.bf16.msra.mxu0 %v3569
    %5616 = vmatprep.subr.bf16.mxu0 %v3595
    %5617 = vmatpush1.bf16.msra.mxu0 %v3594
    %5618 = vmatprep.subr.bf16.mxu0 %v3620
    %5619 = vmatpush1.bf16.msra.mxu0 %v3619
    %5620 = vmatprep.subr.bf16.mxu0 %v3645
    %5621 = vmatpush1.bf16.msra.mxu0 %v3644
    %5622 = vmatprep.subr.bf16.mxu0 %v3670
    %5623 = vmatpush1.bf16.msra.mxu0 %v3669
    %5624 = vmatprep.subr.bf16.mxu0 %v3695
    %5625 = vmatpush1.bf16.msra.mxu0 %v3694
    %5626 = vmatprep.subr.bf16.mxu0 %v3720
    %5627 = vmatpush1.bf16.msra.mxu0 %v3719
    %5628 = vmatprep.subr.bf16.mxu0 %v3745
    %5629 = vmatpush1.bf16.msra.mxu0 %v3744
    %5630 = vmatprep.subr.bf16.mxu0 %v3770
    %5631 = vmatpush1.bf16.msra.mxu0 %v3769
    %5632 = vmatprep.subr.bf16.mxu0 %v3795
    %5633 = vmatpush1.bf16.msra.mxu0 %v3794
    %5634 = vmatprep.subr.bf16.mxu0 %v3820
    %5635 = vmatpush1.bf16.msra.mxu0 %v3819
    %5636 = vmatprep.mubr.bf16.mxu0 %v30
    %5637 = vmatmul.mubr.bf16.gmra.mrb[0].mxu0 %v29
    %v5638 = vpop.f32.mrb[0].mxu0
    %v5639 = vadd.f32 %v932, %v5638
    %v5640 = vpop.f32.mrb[0].mxu0
    %v5641 = vadd.f32 %v936, %v5640
    %v5642 = vpop.f32.mrb[0].mxu0
    %v5643 = vpop.f32.mrb[0].mxu0
    %5644 = vdwg.mxu0
    %5645 = vmatprep.subr.bf16.mxu0 %v3845
    %5646 = vmatpush1.bf16.msra.mxu0 %v3844
    %5647 = vmatprep.subr.bf16.mxu0 %v3870
    %5648 = vmatpush1.bf16.msra.mxu0 %v3869
    %5649 = vmatprep.subr.bf16.mxu0 %v3895
    %5650 = vmatpush1.bf16.msra.mxu0 %v3894
    %5651 = vmatprep.subr.bf16.mxu0 %v3920
    %5652 = vmatpush1.bf16.msra.mxu0 %v3919
    %5653 = vmatprep.subr.bf16.mxu0 %v3945
    %5654 = vmatpush1.bf16.msra.mxu0 %v3944
    %5655 = vmatprep.subr.bf16.mxu0 %v3970
    %5656 = vmatpush1.bf16.msra.mxu0 %v3969
    %5657 = vmatprep.subr.bf16.mxu0 %v3995
    %5658 = vmatpush1.bf16.msra.mxu0 %v3994
    %5659 = vmatprep.subr.bf16.mxu0 %v4020
    %5660 = vmatpush1.bf16.msra.mxu0 %v4019
    %5661 = vmatprep.subr.bf16.mxu0 %v4045
    %5662 = vmatpush1.bf16.msra.mxu0 %v4044
    %5663 = vmatprep.subr.bf16.mxu0 %v4070
    %5664 = vmatpush1.bf16.msra.mxu0 %v4069
    %5665 = vmatprep.subr.bf16.mxu0 %v4095
    %5666 = vmatpush1.bf16.msra.mxu0 %v4094
    %5667 = vmatprep.subr.bf16.mxu0 %v4120
    %5668 = vmatpush1.bf16.msra.mxu0 %v4119
    %5669 = vmatprep.subr.bf16.mxu0 %v4145
    %5670 = vmatpush1.bf16.msra.mxu0 %v4144
    %5671 = vmatprep.subr.bf16.mxu0 %v4170
    %5672 = vmatpush1.bf16.msra.mxu0 %v4169
    %5673 = vmatprep.subr.bf16.mxu0 %v4195
    %5674 = vmatpush1.bf16.msra.mxu0 %v4194
    %5675 = vmatprep.subr.bf16.mxu0 %v4220
    %5676 = vmatpush1.bf16.msra.mxu0 %v4219
    %5677 = vmatprep.mubr.bf16.mxu0 %v32
    %5678 = vmatmul.mubr.bf16.gmra.mrb[0].mxu0 %v31
    %v5679 = vpop.f32.mrb[0].mxu0
    %v5680 = vadd.f32 %v5639, %v5679
    %v5681 = vpop.f32.mrb[0].mxu0
    %v5682 = vadd.f32 %v5641, %v5681
    %v5683 = vpop.f32.mrb[0].mxu0
    %v5684 = vpop.f32.mrb[0].mxu0
    %5685 = vdwg.mxu0
    %5686 = vmatprep.subr.bf16.mxu0 %v3447
    %5687 = vmatpush1.bf16.msra.mxu0 %v3446
    %5688 = vmatprep.subr.bf16.mxu0 %v3472
    %5689 = vmatpush1.bf16.msra.mxu0 %v3471
    %5690 = vmatprep.subr.bf16.mxu0 %v3497
    %5691 = vmatpush1.bf16.msra.mxu0 %v3496
    %5692 = vmatprep.subr.bf16.mxu0 %v3522
    %5693 = vmatpush1.bf16.msra.mxu0 %v3521
    %5694 = vmatprep.subr.bf16.mxu0 %v3547
    %5695 = vmatpush1.bf16.msra.mxu0 %v3546
    %5696 = vmatprep.subr.bf16.mxu0 %v3572
    %5697 = vmatpush1.bf16.msra.mxu0 %v3571
    %5698 = vmatprep.subr.bf16.mxu0 %v3597
    %5699 = vmatpush1.bf16.msra.mxu0 %v3596
    %5700 = vmatprep.subr.bf16.mxu0 %v3622
    %5701 = vmatpush1.bf16.msra.mxu0 %v3621
    %5702 = vmatprep.subr.bf16.mxu0 %v3647
    %5703 = vmatpush1.bf16.msra.mxu0 %v3646
    %5704 = vmatprep.subr.bf16.mxu0 %v3672
    %5705 = vmatpush1.bf16.msra.mxu0 %v3671
    %5706 = vmatprep.subr.bf16.mxu0 %v3697
    %5707 = vmatpush1.bf16.msra.mxu0 %v3696
    %5708 = vmatprep.subr.bf16.mxu0 %v3722
    %5709 = vmatpush1.bf16.msra.mxu0 %v3721
    %5710 = vmatprep.subr.bf16.mxu0 %v3747
    %5711 = vmatpush1.bf16.msra.mxu0 %v3746
    %5712 = vmatprep.subr.bf16.mxu0 %v3772
    %5713 = vmatpush1.bf16.msra.mxu0 %v3771
    %5714 = vmatprep.subr.bf16.mxu0 %v3797
    %5715 = vmatpush1.bf16.msra.mxu0 %v3796
    %5716 = vmatprep.subr.bf16.mxu0 %v3822
    %5717 = vmatpush1.bf16.msra.mxu0 %v3821
    %5718 = vmatprep.mubr.bf16.mxu0 %v30
    %5719 = vmatmul.mubr.bf16.gmra.mrb[0].mxu0 %v29
    %v5720 = vpop.f32.mrb[0].mxu0
    %v5721 = vadd.f32 %v940, %v5720
    %v5722 = vpop.f32.mrb[0].mxu0
    %v5723 = vadd.f32 %v944, %v5722
    %v5724 = vpop.f32.mrb[0].mxu0
    %v5725 = vpop.f32.mrb[0].mxu0
    %5726 = vdwg.mxu0
    %5727 = vmatprep.subr.bf16.mxu0 %v3847
    %5728 = vmatpush1.bf16.msra.mxu0 %v3846
    %5729 = vmatprep.subr.bf16.mxu0 %v3872
    %5730 = vmatpush1.bf16.msra.mxu0 %v3871
    %5731 = vmatprep.subr.bf16.mxu0 %v3897
    %5732 = vmatpush1.bf16.msra.mxu0 %v3896
    %5733 = vmatprep.subr.bf16.mxu0 %v3922
    %5734 = vmatpush1.bf16.msra.mxu0 %v3921
    %5735 = vmatprep.subr.bf16.mxu0 %v3947
    %5736 = vmatpush1.bf16.msra.mxu0 %v3946
    %5737 = vmatprep.subr.bf16.mxu0 %v3972
    %5738 = vmatpush1.bf16.msra.mxu0 %v3971
    %5739 = vmatprep.subr.bf16.mxu0 %v3997
    %5740 = vmatpush1.bf16.msra.mxu0 %v3996
    %5741 = vmatprep.subr.bf16.mxu0 %v4022
    %5742 = vmatpush1.bf16.msra.mxu0 %v4021
    %5743 = vmatprep.subr.bf16.mxu0 %v4047
    %5744 = vmatpush1.bf16.msra.mxu0 %v4046
    %5745 = vmatprep.subr.bf16.mxu0 %v4072
    %5746 = vmatpush1.bf16.msra.mxu0 %v4071
    %5747 = vmatprep.subr.bf16.mxu0 %v4097
    %5748 = vmatpush1.bf16.msra.mxu0 %v4096
    %5749 = vmatprep.subr.bf16.mxu0 %v4122
    %5750 = vmatpush1.bf16.msra.mxu0 %v4121
    %5751 = vmatprep.subr.bf16.mxu0 %v4147
    %5752 = vmatpush1.bf16.msra.mxu0 %v4146
    %5753 = vmatprep.subr.bf16.mxu0 %v4172
    %5754 = vmatpush1.bf16.msra.mxu0 %v4171
    %5755 = vmatprep.subr.bf16.mxu0 %v4197
    %5756 = vmatpush1.bf16.msra.mxu0 %v4196
    %5757 = vmatprep.subr.bf16.mxu0 %v4222
    %5758 = vmatpush1.bf16.msra.mxu0 %v4221
    %5759 = vmatprep.mubr.bf16.mxu0 %v32
    %5760 = vmatmul.mubr.bf16.gmra.mrb[0].mxu0 %v31
    %v5761 = vpop.f32.mrb[0].mxu0
    %v5762 = vadd.f32 %v5721, %v5761
    %v5763 = vpop.f32.mrb[0].mxu0
    %v5764 = vadd.f32 %v5723, %v5763
    %v5765 = vpop.f32.mrb[0].mxu0
    %v5766 = vpop.f32.mrb[0].mxu0
    %5767 = vdwg.mxu0
    %5768 = vmatprep.subr.bf16.mxu0 %v3449
    %5769 = vmatpush1.bf16.msra.mxu0 %v3448
    %5770 = vmatprep.subr.bf16.mxu0 %v3474
    %5771 = vmatpush1.bf16.msra.mxu0 %v3473
    %5772 = vmatprep.subr.bf16.mxu0 %v3499
    %5773 = vmatpush1.bf16.msra.mxu0 %v3498
    %5774 = vmatprep.subr.bf16.mxu0 %v3524
    %5775 = vmatpush1.bf16.msra.mxu0 %v3523
    %5776 = vmatprep.subr.bf16.mxu0 %v3549
    %5777 = vmatpush1.bf16.msra.mxu0 %v3548
    %5778 = vmatprep.subr.bf16.mxu0 %v3574
    %5779 = vmatpush1.bf16.msra.mxu0 %v3573
    %5780 = vmatprep.subr.bf16.mxu0 %v3599
    %5781 = vmatpush1.bf16.msra.mxu0 %v3598
    %5782 = vmatprep.subr.bf16.mxu0 %v3624
    %5783 = vmatpush1.bf16.msra.mxu0 %v3623
    %5784 = vmatprep.subr.bf16.mxu0 %v3649
    %5785 = vmatpush1.bf16.msra.mxu0 %v3648
    %5786 = vmatprep.subr.bf16.mxu0 %v3674
    %5787 = vmatpush1.bf16.msra.mxu0 %v3673
    %5788 = vmatprep.subr.bf16.mxu0 %v3699
    %5789 = vmatpush1.bf16.msra.mxu0 %v3698
    %5790 = vmatprep.subr.bf16.mxu0 %v3724
    %5791 = vmatpush1.bf16.msra.mxu0 %v3723
    %5792 = vmatprep.subr.bf16.mxu0 %v3749
    %5793 = vmatpush1.bf16.msra.mxu0 %v3748
    %5794 = vmatprep.subr.bf16.mxu0 %v3774
    %5795 = vmatpush1.bf16.msra.mxu0 %v3773
    %5796 = vmatprep.subr.bf16.mxu0 %v3799
    %5797 = vmatpush1.bf16.msra.mxu0 %v3798
    %5798 = vmatprep.subr.bf16.mxu0 %v3824
    %5799 = vmatpush1.bf16.msra.mxu0 %v3823
    %5800 = vmatprep.mubr.bf16.mxu0 %v30
    %5801 = vmatmul.mubr.bf16.gmra.mrb[0].mxu0 %v29
    %v5802 = vpop.f32.mrb[0].mxu0
    %v5803 = vadd.f32 %v948, %v5802
    %v5804 = vpop.f32.mrb[0].mxu0
    %v5805 = vadd.f32 %v952, %v5804
    %v5806 = vpop.f32.mrb[0].mxu0
    %v5807 = vpop.f32.mrb[0].mxu0
    %5808 = vdwg.mxu0
    %5809 = vmatprep.subr.bf16.mxu0 %v3849
    %5810 = vmatpush1.bf16.msra.mxu0 %v3848
    %5811 = vmatprep.subr.bf16.mxu0 %v3874
    %5812 = vmatpush1.bf16.msra.mxu0 %v3873
    %5813 = vmatprep.subr.bf16.mxu0 %v3899
    %5814 = vmatpush1.bf16.msra.mxu0 %v3898
    %5815 = vmatprep.subr.bf16.mxu0 %v3924
    %5816 = vmatpush1.bf16.msra.mxu0 %v3923
    %5817 = vmatprep.subr.bf16.mxu0 %v3949
    %5818 = vmatpush1.bf16.msra.mxu0 %v3948
    %5819 = vmatprep.subr.bf16.mxu0 %v3974
    %5820 = vmatpush1.bf16.msra.mxu0 %v3973
    %5821 = vmatprep.subr.bf16.mxu0 %v3999
    %5822 = vmatpush1.bf16.msra.mxu0 %v3998
    %5823 = vmatprep.subr.bf16.mxu0 %v4024
    %5824 = vmatpush1.bf16.msra.mxu0 %v4023
    %5825 = vmatprep.subr.bf16.mxu0 %v4049
    %5826 = vmatpush1.bf16.msra.mxu0 %v4048
    %5827 = vmatprep.subr.bf16.mxu0 %v4074
    %5828 = vmatpush1.bf16.msra.mxu0 %v4073
    %5829 = vmatprep.subr.bf16.mxu0 %v4099
    %5830 = vmatpush1.bf16.msra.mxu0 %v4098
    %5831 = vmatprep.subr.bf16.mxu0 %v4124
    %5832 = vmatpush1.bf16.msra.mxu0 %v4123
    %5833 = vmatprep.subr.bf16.mxu0 %v4149
    %5834 = vmatpush1.bf16.msra.mxu0 %v4148
    %5835 = vmatprep.subr.bf16.mxu0 %v4174
    %5836 = vmatpush1.bf16.msra.mxu0 %v4173
    %5837 = vmatprep.subr.bf16.mxu0 %v4199
    %5838 = vmatpush1.bf16.msra.mxu0 %v4198
    %5839 = vmatprep.subr.bf16.mxu0 %v4224
    %5840 = vmatpush1.bf16.msra.mxu0 %v4223
    %5841 = vmatprep.mubr.bf16.mxu0 %v32
    %5842 = vmatmul.mubr.bf16.gmra.mrb[0].mxu0 %v31
    %v5843 = vpop.f32.mrb[0].mxu0
    %v5844 = vadd.f32 %v5803, %v5843
    %v5845 = vpop.f32.mrb[0].mxu0
    %v5846 = vadd.f32 %v5805, %v5845
    %v5847 = vpop.f32.mrb[0].mxu0
    %v5848 = vpop.f32.mrb[0].mxu0
    %5849 = vdwg.mxu0
    %5850 = vmatprep.subr.bf16.mxu0 %v3451
    %5851 = vmatpush1.bf16.msra.mxu0 %v3450
    %5852 = vmatprep.subr.bf16.mxu0 %v3476
    %5853 = vmatpush1.bf16.msra.mxu0 %v3475
    %5854 = vmatprep.subr.bf16.mxu0 %v3501
    %5855 = vmatpush1.bf16.msra.mxu0 %v3500
    %5856 = vmatprep.subr.bf16.mxu0 %v3526
    %5857 = vmatpush1.bf16.msra.mxu0 %v3525
    %5858 = vmatprep.subr.bf16.mxu0 %v3551
    %5859 = vmatpush1.bf16.msra.mxu0 %v3550
    %5860 = vmatprep.subr.bf16.mxu0 %v3576
    %5861 = vmatpush1.bf16.msra.mxu0 %v3575
    %5862 = vmatprep.subr.bf16.mxu0 %v3601
    %5863 = vmatpush1.bf16.msra.mxu0 %v3600
    %5864 = vmatprep.subr.bf16.mxu0 %v3626
    %5865 = vmatpush1.bf16.msra.mxu0 %v3625
    %5866 = vmatprep.subr.bf16.mxu0 %v3651
    %5867 = vmatpush1.bf16.msra.mxu0 %v3650
    %5868 = vmatprep.subr.bf16.mxu0 %v3676
    %5869 = vmatpush1.bf16.msra.mxu0 %v3675
    %5870 = vmatprep.subr.bf16.mxu0 %v3701
    %5871 = vmatpush1.bf16.msra.mxu0 %v3700
    %5872 = vmatprep.subr.bf16.mxu0 %v3726
    %5873 = vmatpush1.bf16.msra.mxu0 %v3725
    %5874 = vmatprep.subr.bf16.mxu0 %v3751
    %5875 = vmatpush1.bf16.msra.mxu0 %v3750
    %5876 = vmatprep.subr.bf16.mxu0 %v3776
    %5877 = vmatpush1.bf16.msra.mxu0 %v3775
    %5878 = vmatprep.subr.bf16.mxu0 %v3801
    %5879 = vmatpush1.bf16.msra.mxu0 %v3800
    %5880 = vmatprep.subr.bf16.mxu0 %v3826
    %5881 = vmatpush1.bf16.msra.mxu0 %v3825
    %5882 = vmatprep.mubr.bf16.mxu0 %v30
    %5883 = vmatmul.mubr.bf16.gmra.mrb[0].mxu0 %v29
    %v5884 = vpop.f32.mrb[0].mxu0
    %v5885 = vadd.f32 %v956, %v5884
    %v5886 = vpop.f32.mrb[0].mxu0
    %v5887 = vadd.f32 %v960, %v5886
    %v5888 = vpop.f32.mrb[0].mxu0
    %v5889 = vpop.f32.mrb[0].mxu0
    %5890 = vdwg.mxu0
    %5891 = vmatprep.subr.bf16.mxu0 %v3851
    %5892 = vmatpush1.bf16.msra.mxu0 %v3850
    %5893 = vmatprep.subr.bf16.mxu0 %v3876
    %5894 = vmatpush1.bf16.msra.mxu0 %v3875
    %5895 = vmatprep.subr.bf16.mxu0 %v3901
    %5896 = vmatpush1.bf16.msra.mxu0 %v3900
    %5897 = vmatprep.subr.bf16.mxu0 %v3926
    %5898 = vmatpush1.bf16.msra.mxu0 %v3925
    %5899 = vmatprep.subr.bf16.mxu0 %v3951
    %5900 = vmatpush1.bf16.msra.mxu0 %v3950
    %5901 = vmatprep.subr.bf16.mxu0 %v3976
    %5902 = vmatpush1.bf16.msra.mxu0 %v3975
    %5903 = vmatprep.subr.bf16.mxu0 %v4001
    %5904 = vmatpush1.bf16.msra.mxu0 %v4000
    %5905 = vmatprep.subr.bf16.mxu0 %v4026
    %5906 = vmatpush1.bf16.msra.mxu0 %v4025
    %5907 = vmatprep.subr.bf16.mxu0 %v4051
    %5908 = vmatpush1.bf16.msra.mxu0 %v4050
    %5909 = vmatprep.subr.bf16.mxu0 %v4076
    %5910 = vmatpush1.bf16.msra.mxu0 %v4075
    %5911 = vmatprep.subr.bf16.mxu0 %v4101
    %5912 = vmatpush1.bf16.msra.mxu0 %v4100
    %5913 = vmatprep.subr.bf16.mxu0 %v4126
    %5914 = vmatpush1.bf16.msra.mxu0 %v4125
    %5915 = vmatprep.subr.bf16.mxu0 %v4151
    %5916 = vmatpush1.bf16.msra.mxu0 %v4150
    %5917 = vmatprep.subr.bf16.mxu0 %v4176
    %5918 = vmatpush1.bf16.msra.mxu0 %v4175
    %5919 = vmatprep.subr.bf16.mxu0 %v4201
    %5920 = vmatpush1.bf16.msra.mxu0 %v4200
    %5921 = vmatprep.subr.bf16.mxu0 %v4226
    %5922 = vmatpush1.bf16.msra.mxu0 %v4225
    %5923 = vmatprep.mubr.bf16.mxu0 %v32
    %5924 = vmatmul.mubr.bf16.gmra.mrb[0].mxu0 %v31
    %v5925 = vpop.f32.mrb[0].mxu0
    %v5926 = vadd.f32 %v5885, %v5925
    %v5927 = vpop.f32.mrb[0].mxu0
    %v5928 = vadd.f32 %v5887, %v5927
    %v5929 = vpop.f32.mrb[0].mxu0
    %v5930 = vpop.f32.mrb[0].mxu0
    %5931 = vdwg.mxu0
    %5932 = vmatprep.subr.bf16.mxu0 %v3453
    %5933 = vmatpush1.bf16.msra.mxu0 %v3452
    %5934 = vmatprep.subr.bf16.mxu0 %v3478
    %5935 = vmatpush1.bf16.msra.mxu0 %v3477
    %5936 = vmatprep.subr.bf16.mxu0 %v3503
    %5937 = vmatpush1.bf16.msra.mxu0 %v3502
    %5938 = vmatprep.subr.bf16.mxu0 %v3528
    %5939 = vmatpush1.bf16.msra.mxu0 %v3527
    %5940 = vmatprep.subr.bf16.mxu0 %v3553
    %5941 = vmatpush1.bf16.msra.mxu0 %v3552
    %5942 = vmatprep.subr.bf16.mxu0 %v3578
    %5943 = vmatpush1.bf16.msra.mxu0 %v3577
    %5944 = vmatprep.subr.bf16.mxu0 %v3603
    %5945 = vmatpush1.bf16.msra.mxu0 %v3602
    %5946 = vmatprep.subr.bf16.mxu0 %v3628
    %5947 = vmatpush1.bf16.msra.mxu0 %v3627
    %5948 = vmatprep.subr.bf16.mxu0 %v3653
    %5949 = vmatpush1.bf16.msra.mxu0 %v3652
    %5950 = vmatprep.subr.bf16.mxu0 %v3678
    %5951 = vmatpush1.bf16.msra.mxu0 %v3677
    %5952 = vmatprep.subr.bf16.mxu0 %v3703
    %5953 = vmatpush1.bf16.msra.mxu0 %v3702
    %5954 = vmatprep.subr.bf16.mxu0 %v3728
    %5955 = vmatpush1.bf16.msra.mxu0 %v3727
    %5956 = vmatprep.subr.bf16.mxu0 %v3753
    %5957 = vmatpush1.bf16.msra.mxu0 %v3752
    %5958 = vmatprep.subr.bf16.mxu0 %v3778
    %5959 = vmatpush1.bf16.msra.mxu0 %v3777
    %5960 = vmatprep.subr.bf16.mxu0 %v3803
    %5961 = vmatpush1.bf16.msra.mxu0 %v3802
    %5962 = vmatprep.subr.bf16.mxu0 %v3828
    %5963 = vmatpush1.bf16.msra.mxu0 %v3827
    %5964 = vmatprep.mubr.bf16.mxu0 %v30
    %5965 = vmatmul.mubr.bf16.gmra.mrb[0].mxu0 %v29
    %v5966 = vpop.f32.mrb[0].mxu0
    %v5967 = vadd.f32 %v964, %v5966
    %v5968 = vpop.f32.mrb[0].mxu0
    %v5969 = vadd.f32 %v968, %v5968
    %v5970 = vpop.f32.mrb[0].mxu0
    %v5971 = vpop.f32.mrb[0].mxu0
    %5972 = vdwg.mxu0
    %5973 = vmatprep.subr.bf16.mxu0 %v3853
    %5974 = vmatpush1.bf16.msra.mxu0 %v3852
    %5975 = vmatprep.subr.bf16.mxu0 %v3878
    %5976 = vmatpush1.bf16.msra.mxu0 %v3877
    %5977 = vmatprep.subr.bf16.mxu0 %v3903
    %5978 = vmatpush1.bf16.msra.mxu0 %v3902
    %5979 = vmatprep.subr.bf16.mxu0 %v3928
    %5980 = vmatpush1.bf16.msra.mxu0 %v3927
    %5981 = vmatprep.subr.bf16.mxu0 %v3953
    %5982 = vmatpush1.bf16.msra.mxu0 %v3952
    %5983 = vmatprep.subr.bf16.mxu0 %v3978
    %5984 = vmatpush1.bf16.msra.mxu0 %v3977
    %5985 = vmatprep.subr.bf16.mxu0 %v4003
    %5986 = vmatpush1.bf16.msra.mxu0 %v4002
    %5987 = vmatprep.subr.bf16.mxu0 %v4028
    %5988 = vmatpush1.bf16.msra.mxu0 %v4027
    %5989 = vmatprep.subr.bf16.mxu0 %v4053
    %5990 = vmatpush1.bf16.msra.mxu0 %v4052
    %5991 = vmatprep.subr.bf16.mxu0 %v4078
    %5992 = vmatpush1.bf16.msra.mxu0 %v4077
    %5993 = vmatprep.subr.bf16.mxu0 %v4103
    %5994 = vmatpush1.bf16.msra.mxu0 %v4102
    %5995 = vmatprep.subr.bf16.mxu0 %v4128
    %5996 = vmatpush1.bf16.msra.mxu0 %v4127
    %5997 = vmatprep.subr.bf16.mxu0 %v4153
    %5998 = vmatpush1.bf16.msra.mxu0 %v4152
    %5999 = vmatprep.subr.bf16.mxu0 %v4178
    %6000 = vmatpush1.bf16.msra.mxu0 %v4177
    %6001 = vmatprep.subr.bf16.mxu0 %v4203
    %6002 = vmatpush1.bf16.msra.mxu0 %v4202
    %6003 = vmatprep.subr.bf16.mxu0 %v4228
    %6004 = vmatpush1.bf16.msra.mxu0 %v4227
    %6005 = vmatprep.mubr.bf16.mxu0 %v32
    %6006 = vmatmul.mubr.bf16.gmra.mrb[0].mxu0 %v31
    %v6007 = vpop.f32.mrb[0].mxu0
    %v6008 = vadd.f32 %v5967, %v6007
    %v6009 = vpop.f32.mrb[0].mxu0
    %v6010 = vadd.f32 %v5969, %v6009
    %v6011 = vpop.f32.mrb[0].mxu0
    %v6012 = vpop.f32.mrb[0].mxu0
    %6013 = vdwg.mxu0
    %6014 = vmatprep.subr.bf16.mxu0 0
    %6015 = vmatpush1.bf16.msra.mxu0 %v3454
    %6016 = vmatprep.subr.bf16.mxu0 0
    %6017 = vmatpush1.bf16.msra.mxu0 %v3479
    %6018 = vmatprep.subr.bf16.mxu0 0
    %6019 = vmatpush1.bf16.msra.mxu0 %v3504
    %6020 = vmatprep.subr.bf16.mxu0 0
    %6021 = vmatpush1.bf16.msra.mxu0 %v3529
    %6022 = vmatprep.subr.bf16.mxu0 0
    %6023 = vmatpush1.bf16.msra.mxu0 %v3554
    %6024 = vmatprep.subr.bf16.mxu0 0
    %6025 = vmatpush1.bf16.msra.mxu0 %v3579
    %6026 = vmatprep.subr.bf16.mxu0 0
    %6027 = vmatpush1.bf16.msra.mxu0 %v3604
    %6028 = vmatprep.subr.bf16.mxu0 0
    %6029 = vmatpush1.bf16.msra.mxu0 %v3629
    %6030 = vmatprep.subr.bf16.mxu0 0
    %6031 = vmatpush1.bf16.msra.mxu0 %v3654
    %6032 = vmatprep.subr.bf16.mxu0 0
    %6033 = vmatpush1.bf16.msra.mxu0 %v3679
    %6034 = vmatprep.subr.bf16.mxu0 0
    %6035 = vmatpush1.bf16.msra.mxu0 %v3704
    %6036 = vmatprep.subr.bf16.mxu0 0
    %6037 = vmatpush1.bf16.msra.mxu0 %v3729
    %6038 = vmatprep.subr.bf16.mxu0 0
    %6039 = vmatpush1.bf16.msra.mxu0 %v3754
    %6040 = vmatprep.subr.bf16.mxu0 0
    %6041 = vmatpush1.bf16.msra.mxu0 %v3779
    %6042 = vmatprep.subr.bf16.mxu0 0
    %6043 = vmatpush1.bf16.msra.mxu0 %v3804
    %6044 = vmatprep.subr.bf16.mxu0 0
    %6045 = vmatpush1.bf16.msra.mxu0 %v3829
    %6046 = vmatprep.mubr.bf16.mxu0 %v30
    %6047 = vmatmul.mubr.bf16.gmra.mrb[0].mxu0 %v29
    %v6048 = vpop.f32.mrb[0].mxu0
    %v6049 = vadd.f32 %v972, %v6048
    %v6050 = vpop.f32.mrb[0].mxu0
    %v6051 = vpop.f32.mrb[0].mxu0
    %v6052 = vpop.f32.mrb[0].mxu0
    %6053 = vdwg.mxu0
    %6054 = vmatprep.subr.bf16.mxu0 0
    %6055 = vmatpush1.bf16.msra.mxu0 %v3854
    %6056 = vmatprep.subr.bf16.mxu0 0
    %6057 = vmatpush1.bf16.msra.mxu0 %v3879
    %6058 = vmatprep.subr.bf16.mxu0 0
    %6059 = vmatpush1.bf16.msra.mxu0 %v3904
    %6060 = vmatprep.subr.bf16.mxu0 0
    %6061 = vmatpush1.bf16.msra.mxu0 %v3929
    %6062 = vmatprep.subr.bf16.mxu0 0
    %6063 = vmatpush1.bf16.msra.mxu0 %v3954
    %6064 = vmatprep.subr.bf16.mxu0 0
    %6065 = vmatpush1.bf16.msra.mxu0 %v3979
    %6066 = vmatprep.subr.bf16.mxu0 0
    %6067 = vmatpush1.bf16.msra.mxu0 %v4004
    %6068 = vmatprep.subr.bf16.mxu0 0
    %6069 = vmatpush1.bf16.msra.mxu0 %v4029
    %6070 = vmatprep.subr.bf16.mxu0 0
    %6071 = vmatpush1.bf16.msra.mxu0 %v4054
    %6072 = vmatprep.subr.bf16.mxu0 0
    %6073 = vmatpush1.bf16.msra.mxu0 %v4079
    %6074 = vmatprep.subr.bf16.mxu0 0
    %6075 = vmatpush1.bf16.msra.mxu0 %v4104
    %6076 = vmatprep.subr.bf16.mxu0 0
    %6077 = vmatpush1.bf16.msra.mxu0 %v4129
    %6078 = vmatprep.subr.bf16.mxu0 0
    %6079 = vmatpush1.bf16.msra.mxu0 %v4154
    %6080 = vmatprep.subr.bf16.mxu0 0
    %6081 = vmatpush1.bf16.msra.mxu0 %v4179
    %6082 = vmatprep.subr.bf16.mxu0 0
    %6083 = vmatpush1.bf16.msra.mxu0 %v4204
    %6084 = vmatprep.subr.bf16.mxu0 0
    %6085 = vmatpush1.bf16.msra.mxu0 %v4229
    %6086 = vmatprep.mubr.bf16.mxu0 %v32
    %6087 = vmatmul.mubr.bf16.gmra.mrb[0].mxu0 %v31
    %v6088 = vpop.f32.mrb[0].mxu0
    %v6089 = vadd.f32 %v6049, %v6088
    %v6090 = vpop.f32.mrb[0].mxu0
    %v6091 = vpop.f32.mrb[0].mxu0
    %v6092 = vpop.f32.mrb[0].mxu0
    %6093 = vdwg.mxu0
    %v6118 = vcombine.low %v5106, %v5108
    %v6119 = vcombine.low %v5188, %v5190
    %v6120 = vcombine.low %v5270, %v5272
    %v6121 = vcombine.low %v5352, %v5354
    %v6122 = vcombine.low %v5434, %v5436
    %v6123 = vcombine.low %v5516, %v5518
    %v6124 = vcombine.low %v5598, %v5600
    %v6125 = vcombine.low %v5680, %v5682
    %v6126 = vcombine.low %v5762, %v5764
    %v6127 = vcombine.low %v5844, %v5846
    %v6128 = vcombine.low %v5926, %v5928
    %v6129 = vcombine.low %v6008, %v6010
    %6142 = vst [vmem:[#allocation2] sm:$0xff] %v6118
    %6143 = vst [vmem:[#allocation2 + $0x8] sm:$0xff] %v6119
    %6144 = vst [vmem:[#allocation2 + $0x10] sm:$0xff] %v6120
    %6145 = vst [vmem:[#allocation2 + $0x18] sm:$0xff] %v6121
    %6146 = vst [vmem:[#allocation2 + $0x20] sm:$0xff] %v6122
    %6147 = vst [vmem:[#allocation2 + $0x28] sm:$0xff] %v6123
    %6148 = vst [vmem:[#allocation2 + $0x30] sm:$0xff] %v6124
    %6149 = vst [vmem:[#allocation2 + $0x38] sm:$0xff] %v6125
    %6150 = vst [vmem:[#allocation2 + $0x40] sm:$0xff] %v6126
    %6151 = vst [vmem:[#allocation2 + $0x48] sm:$0xff] %v6127
    %6152 = vst [vmem:[#allocation2 + $0x50] sm:$0xff] %v6128
    %6153 = vst [vmem:[#allocation2 + $0x58] sm:$0xff] %v6129
    %vm6154 = vcmask 461824
    %6155 = vst.msk [vmem:[#allocation2 + $0x60] sm:$0xf] %vm6154, %v6089
    %v6156 = vsub.f32 0.0, %v5106
    %v6157 = vsub.f32 0.0, %v5108
    %v6158 = vsub.f32 0.0, %v5188
    %v6159 = vsub.f32 0.0, %v5190
    %v6160 = vsub.f32 0.0, %v5270
    %v6161 = vsub.f32 0.0, %v5272
    %v6162 = vsub.f32 0.0, %v5352
    %v6163 = vsub.f32 0.0, %v5354
    %v6164 = vsub.f32 0.0, %v5434
    %v6165 = vsub.f32 0.0, %v5436
    %v6166 = vsub.f32 0.0, %v5516
    %v6167 = vsub.f32 0.0, %v5518
    %v6168 = vsub.f32 0.0, %v5598
    %v6169 = vsub.f32 0.0, %v5600
    %v6170 = vsub.f32 0.0, %v5680
    %v6171 = vsub.f32 0.0, %v5682
    %v6172 = vsub.f32 0.0, %v5762
    %v6173 = vsub.f32 0.0, %v5764
    %v6174 = vsub.f32 0.0, %v5844
    %v6175 = vsub.f32 0.0, %v5846
    %v6176 = vsub.f32 0.0, %v5926
    %v6177 = vsub.f32 0.0, %v5928
    %v6178 = vsub.f32 0.0, %v6008
    %v6179 = vsub.f32 0.0, %v6010
    %v6180 = vsub.f32 0.0, %v6089
    %v6181 = vmul.f32 %v6156, 1.442695
    %v6182 = vpow.pop %v6181
    %v6183 = vmul.f32 %v6157, 1.442695
    %v6184 = vpow.pop %v6183
    %v6185 = vmul.f32 %v6158, 1.442695
    %v6186 = vpow.pop %v6185
    %v6187 = vmul.f32 %v6159, 1.442695
    %v6188 = vpow.pop %v6187
    %v6189 = vmul.f32 %v6160, 1.442695
    %v6190 = vpow.pop %v6189
    %v6191 = vmul.f32 %v6161, 1.442695
    %v6192 = vpow.pop %v6191
    %v6193 = vmul.f32 %v6162, 1.442695
    %v6194 = vpow.pop %v6193
    %v6195 = vmul.f32 %v6163, 1.442695
    %v6196 = vpow.pop %v6195
    %v6197 = vmul.f32 %v6164, 1.442695
    %v6198 = vpow.pop %v6197
    %v6199 = vmul.f32 %v6165, 1.442695
    %v6200 = vpow.pop %v6199
    %v6201 = vmul.f32 %v6166, 1.442695
    %v6202 = vpow.pop %v6201
    %v6203 = vmul.f32 %v6167, 1.442695
    %v6204 = vpow.pop %v6203
    %v6205 = vmul.f32 %v6168, 1.442695
    %v6206 = vpow.pop %v6205
    %v6207 = vmul.f32 %v6169, 1.442695
    %v6208 = vpow.pop %v6207
    %v6209 = vmul.f32 %v6170, 1.442695
    %v6210 = vpow.pop %v6209
    %v6211 = vmul.f32 %v6171, 1.442695
    %v6212 = vpow.pop %v6211
    %v6213 = vmul.f32 %v6172, 1.442695
    %v6214 = vpow.pop %v6213
    %v6215 = vmul.f32 %v6173, 1.442695
    %v6216 = vpow.pop %v6215
    %v6217 = vmul.f32 %v6174, 1.442695
    %v6218 = vpow.pop %v6217
    %v6219 = vmul.f32 %v6175, 1.442695
    %v6220 = vpow.pop %v6219
    %v6221 = vmul.f32 %v6176, 1.442695
    %v6222 = vpow.pop %v6221
    %v6223 = vmul.f32 %v6177, 1.442695
    %v6224 = vpow.pop %v6223
    %v6225 = vmul.f32 %v6178, 1.442695
    %v6226 = vpow.pop %v6225
    %v6227 = vmul.f32 %v6179, 1.442695
    %v6228 = vpow.pop %v6227
    %v6229 = vmul.f32 %v6180, 1.442695
    %v6230 = vpow.pop %v6229
    %v6231 = vadd.f32 %v6182, 1.0
    %v6232 = vadd.f32 %v6184, 1.0
    %v6233 = vadd.f32 %v6186, 1.0
    %v6234 = vadd.f32 %v6188, 1.0
    %v6235 = vadd.f32 %v6190, 1.0
    %v6236 = vadd.f32 %v6192, 1.0
    %v6237 = vadd.f32 %v6194, 1.0
    %v6238 = vadd.f32 %v6196, 1.0
    %v6239 = vadd.f32 %v6198, 1.0
    %v6240 = vadd.f32 %v6200, 1.0
    %v6241 = vadd.f32 %v6202, 1.0
    %v6242 = vadd.f32 %v6204, 1.0
    %v6243 = vadd.f32 %v6206, 1.0
    %v6244 = vadd.f32 %v6208, 1.0
    %v6245 = vadd.f32 %v6210, 1.0
    %v6246 = vadd.f32 %v6212, 1.0
    %v6247 = vadd.f32 %v6214, 1.0
    %v6248 = vadd.f32 %v6216, 1.0
    %v6249 = vadd.f32 %v6218, 1.0
    %v6250 = vadd.f32 %v6220, 1.0
    %v6251 = vadd.f32 %v6222, 1.0
    %v6252 = vadd.f32 %v6224, 1.0
    %v6253 = vadd.f32 %v6226, 1.0
    %v6254 = vadd.f32 %v6228, 1.0
    %v6255 = vadd.f32 %v6230, 1.0
    %v6256 = vrcp.pop %v6231
    %v6257 = vrcp.pop %v6232
    %v6258 = vrcp.pop %v6233
    %v6259 = vrcp.pop %v6234
    %v6260 = vrcp.pop %v6235
    %v6261 = vrcp.pop %v6236
    %v6262 = vrcp.pop %v6237
    %v6263 = vrcp.pop %v6238
    %v6264 = vrcp.pop %v6239
    %v6265 = vrcp.pop %v6240
    %v6266 = vrcp.pop %v6241
    %v6267 = vrcp.pop %v6242
    %v6268 = vrcp.pop %v6243
    %v6269 = vrcp.pop %v6244
    %v6270 = vrcp.pop %v6245
    %v6271 = vrcp.pop %v6246
    %v6272 = vrcp.pop %v6247
    %v6273 = vrcp.pop %v6248
    %v6274 = vrcp.pop %v6249
    %v6275 = vrcp.pop %v6250
    %v6276 = vrcp.pop %v6251
    %v6277 = vrcp.pop %v6252
    %v6278 = vrcp.pop %v6253
    %v6279 = vrcp.pop %v6254
    %v6280 = vrcp.pop %v6255
    %v6305 = vcombine.low %v6256, %v6257
    %v6306 = vcombine.low %v6258, %v6259
    %v6307 = vcombine.low %v6260, %v6261
    %v6308 = vcombine.low %v6262, %v6263
    %v6309 = vcombine.low %v6264, %v6265
    %v6310 = vcombine.low %v6266, %v6267
    %v6311 = vcombine.low %v6268, %v6269
    %v6312 = vcombine.low %v6270, %v6271
    %v6313 = vcombine.low %v6272, %v6273
    %v6314 = vcombine.low %v6274, %v6275
    %v6315 = vcombine.low %v6276, %v6277
    %v6316 = vcombine.low %v6278, %v6279
    %6329 = vst [vmem:[#allocation4] sm:$0xff] %v6305
    %6330 = vst [vmem:[#allocation4 + $0x8] sm:$0xff] %v6306
    %6331 = vst [vmem:[#allocation4 + $0x10] sm:$0xff] %v6307
    %6332 = vst [vmem:[#allocation4 + $0x18] sm:$0xff] %v6308
    %6333 = vst [vmem:[#allocation4 + $0x20] sm:$0xff] %v6309
    %6334 = vst [vmem:[#allocation4 + $0x28] sm:$0xff] %v6310
    %6335 = vst [vmem:[#allocation4 + $0x30] sm:$0xff] %v6311
    %6336 = vst [vmem:[#allocation4 + $0x38] sm:$0xff] %v6312
    %6337 = vst [vmem:[#allocation4 + $0x40] sm:$0xff] %v6313
    %6338 = vst [vmem:[#allocation4 + $0x48] sm:$0xff] %v6314
    %6339 = vst [vmem:[#allocation4 + $0x50] sm:$0xff] %v6315
    %6340 = vst [vmem:[#allocation4 + $0x58] sm:$0xff] %v6316
    %6341 = vst.msk [vmem:[#allocation4 + $0x60] sm:$0xf] %vm6154, %v6280
    // Predicated region
    $region14: #{answer_classifier_apply.1} parent=1 // pred_check
      _
    $region15: #{answer_classifier_apply.1} parent=1 // pred_check_branch
      %6343 = sbr.rel (0) target = $region17
    $region16: #{answer_classifier_apply.1} parent=1 // pred_region
      %s6345 = ssub.s32 1600, 1600
      %6346 = vsyncadd [#allocation3], %s6345
      %s6348 = sshll.u32 [#allocation2], 4
      %s6349 = int_to_ptr.vmem [resolvable:$true] %s6348
      %6351 = dma.vmem_to_hbm [thread:$0]  %s6349, 1600, %s3, [#allocation3]
    $region17: #{answer_classifier_apply.1} parent=1 // pred_fallthru
      _
    // Predicated region
    $region18: #{answer_classifier_apply.1} parent=1 // pred_check
      _
    $region19: #{answer_classifier_apply.1} parent=1 // pred_check_branch
      %6353 = sbr.rel (0) target = $region21
    $region20: #{answer_classifier_apply.1} parent=1 // pred_region
      %s6355 = ssub.s32 1600, 1600
      %6356 = vsyncadd [#allocation5], %s6355
      %s6358 = sshll.u32 [#allocation4], 4
      %s6359 = int_to_ptr.vmem [resolvable:$true] %s6358
      %6361 = dma.vmem_to_hbm [thread:$0]  %s6359, 1600, %s4, [#allocation5]
    $region21: #{answer_classifier_apply.1} parent=1 // pred_fallthru
      _
    // Predicated region
    $region22: #{answer_classifier_apply.1} parent=1 // pred_check
      _
    $region23: #{answer_classifier_apply.1} parent=1 // pred_check_branch
      %6363 = sbr.rel (0) target = $region25
    $region24: #{answer_classifier_apply.1} parent=1 // pred_region
      %6364 = dma.done [#allocation3], 1600
    $region25: #{answer_classifier_apply.1} parent=1 // pred_fallthru
      _
    // Predicated region
    $region26: #{answer_classifier_apply.1} parent=1 // pred_check
      _
    $region27: #{answer_classifier_apply.1} parent=1 // pred_check_branch
      %6366 = sbr.rel (0) target = $region29
    $region28: #{answer_classifier_apply.1} parent=1 // pred_region
      %6367 = dma.done [#allocation5], 1600
    $region29: #{answer_classifier_apply.1} parent=1 // pred_fallthru
      _
    %6368 = vsyncpa [#allocation3], 1
    %6369 = vsyncpa [#allocation5], 1

</llo_original>
